<compile_context>
chip_gen: v7x
topology: tpu7x:2x2x1
jax: 0.10.0
libtpu: 0.0.40
codegen_flags: <defaults>
</compile_context>

<pallas_src>
import numpy as np
import jax
import jax.numpy as jnp
from jax.experimental import pallas as pl
from jax.experimental.pallas import tpu as pltpu

# ----------------------------- model dimensions ------------------------------
B      = 2          # batch
WIN    = 64         # analysis window (samples)
HOP    = 32         # hop (samples)
T      = 16         # number of frames
N      = WIN + (T - 1) * HOP          # waveform samples = 544
NFREQ  = 32         # DFT bins kept
NMELS  = 24         # mel filters (feature dim)
C      = 64         # TDNN channel width
C2     = 128        # MFA / pooling channel width
ATT    = 64         # attention hidden dim
EMB    = 32         # embedding dim
NCLS   = 2          # classifier outputs
MAXPAD = 3          # max time padding over all conv blocks (k=3, d=3)


# ------------------------------ fused Pallas kernel ---------------------------
def ecapa_fused_kernel(frames_ref, win_ref, dft_ref, mel_ref,
                       l1_w_ref, l1_bb_ref, l2_w_ref, l2_bb_ref,
                       l3_w_ref, l3_bb_ref, mfa_w_ref, mfa_bb_ref,
                       a_w1_ref, a_b1_ref, a_w2_ref, a_b2_ref,
                       out_w_ref, out_b_ref,
                       out_ref,
                       pad_buf):
    """One utterance per grid step: fbank -> norm -> encoder -> classifier."""
    # ---- Fbank: windowed DFT power -> mel -> log (single DFT matmul) --------
    f = frames_ref[0] * win_ref[...]                                     # [T, WIN]
    spec = jnp.dot(f, dft_ref[...],
                   preferred_element_type=jnp.float32)                   # [T, 2*NFREQ] = [re|im]
    # (re^2 + im^2) @ mel  ==  (spec*spec) @ [mel; mel]
    fb = jnp.dot(spec * spec, mel_ref[...],
                 preferred_element_type=jnp.float32)                     # [T, NMELS]
    feats = jnp.log(fb + 1e-6)
    # mean_var_norm with lengths == 1: subtract per-utterance mean over time.
    feats = feats - jnp.mean(feats, axis=0, keepdims=True)               # [T, NMELS]

    # ---- TDNN conv block: dilated conv as k tap-matmuls on a padded scratch --
    # TODO(synk): Res2Net dilated sub-convs and SE channel gating inside each
    #             SE-Res2Block are simplified to a single dilated TDNN block.
    def conv_relu_bn(x, w_ref, bb_ref, k, d, cin, cout):
        p = (k - 1) // 2 * d
        pad_buf[...] = jnp.zeros_like(pad_buf)
        pad_buf[pl.ds(p, T), pl.ds(0, cin)] = x
        acc = jnp.zeros((T, cout), jnp.float32)
        for i in range(k):                                   # static, unrolled
            tap = pad_buf[pl.ds(i * d, T), pl.ds(0, cin)]    # [T, cin]
            acc = acc + jnp.dot(tap, w_ref[pl.ds(i * cin, cin), :],
                                preferred_element_type=jnp.float32)
        # BN gamma already folded into w/b at init; beta kept post-ReLU.
        y = jnp.maximum(acc + bb_ref[pl.ds(0, 1), :], 0.0)
        return y + bb_ref[pl.ds(1, 1), :]

    h1 = conv_relu_bn(feats, l1_w_ref, l1_bb_ref, 5, 1, NMELS, C)        # [T, C]
    h2 = conv_relu_bn(h1,    l2_w_ref, l2_bb_ref, 3, 2, C,     C)        # [T, C]
    h3 = conv_relu_bn(h2,    l3_w_ref, l3_bb_ref, 3, 3, C,     C)        # [T, C]

    # ---- MFA 1x1 conv over [h1|h2|h3]: sum of per-branch matmuls (no concat) -
    z = (jnp.dot(h1, mfa_w_ref[pl.ds(0, C), :], preferred_element_type=jnp.float32)
         + jnp.dot(h2, mfa_w_ref[pl.ds(C, C), :], preferred_element_type=jnp.float32)
         + jnp.dot(h3, mfa_w_ref[pl.ds(2 * C, C), :], preferred_element_type=jnp.float32))
    z = jnp.maximum(z + mfa_bb_ref[pl.ds(0, 1), :], 0.0)
    h = z + mfa_bb_ref[pl.ds(1, 1), :]                                   # [T, C2]

    # ---- Attentive statistics pooling ---------------------------------------
    # TODO(synk): ECAPA concatenates global context [h; mu; sigma] before the
    #             attention MLP; here attention is computed from h only.
    a = jnp.tanh(jnp.dot(h, a_w1_ref[...], preferred_element_type=jnp.float32)
                 + a_b1_ref[...])                                        # [T, ATT]
    e = jnp.dot(a, a_w2_ref[...], preferred_element_type=jnp.float32) + a_b2_ref[...]
    e = e - jnp.max(e, axis=0, keepdims=True)
    att = jnp.exp(e)
    att = att / jnp.sum(att, axis=0, keepdims=True)                      # exact softmax
    mean = jnp.sum(att * h, axis=0, keepdims=True)                       # [1, C2]
    var = jnp.sum(att * h * h, axis=0, keepdims=True) - mean * mean
    std = jnp.sqrt(jnp.clip(var, 1e-6, None))                            # [1, C2]

    # ---- fc -> classifier folded into one matmul; pooled handled in halves ---
    logits = (jnp.dot(mean, out_w_ref[pl.ds(0, C2), :], preferred_element_type=jnp.float32)
              + jnp.dot(std, out_w_ref[pl.ds(C2, C2), :], preferred_element_type=jnp.float32)
              + out_b_ref[...])                                          # [1, NCLS]
    out_ref[0] = logits


# ------------------------------- JAX wrapper -----------------------------------
@jax.jit
def fine_tuned_ecapa_forward(wav, fp):
    # Framing kept as a tiny XLA gather (8 KiB); everything else is one kernel.
    idx = jnp.arange(WIN)[None, :] + HOP * jnp.arange(T)[:, None]        # [T, WIN]
    frames = wav[:, idx]                                                 # [B, T, WIN]

    const = lambda b: (0, 0)                                             # shared weights
    out = pl.pallas_call(
        ecapa_fused_kernel,
        out_shape=jax.ShapeDtypeStruct((B, 1, NCLS), jnp.float32),
        grid=(B,),
        in_specs=[
            pl.BlockSpec((1, T, WIN), lambda b: (b, 0, 0)),      # frames
            pl.BlockSpec((1, WIN), const),                       # window
            pl.BlockSpec((WIN, 2 * NFREQ), const),               # packed DFT [cos|-sin]
            pl.BlockSpec((2 * NFREQ, NMELS), const),             # [mel; mel]
            pl.BlockSpec((5 * NMELS, C), const),                 # l1 weight (gamma folded)
            pl.BlockSpec((2, C), const),                         # l1 [bias; beta]
            pl.BlockSpec((3 * C, C), const),                     # l2 weight
            pl.BlockSpec((2, C), const),
            pl.BlockSpec((3 * C, C), const),                     # l3 weight
            pl.BlockSpec((2, C), const),
            pl.BlockSpec((3 * C, C2), const),                    # MFA weight
            pl.BlockSpec((2, C2), const),
            pl.BlockSpec((C2, ATT), const),                      # ASP attn W1
            pl.BlockSpec((1, ATT), const),
            pl.BlockSpec((ATT, C2), const),                      # ASP attn W2
            pl.BlockSpec((1, C2), const),
            pl.BlockSpec((2 * C2, NCLS), const),                 # fused fc@classifier W
            pl.BlockSpec((1, NCLS), const),                      # fused bias
        ],
        out_specs=pl.BlockSpec((1, 1, NCLS), lambda b: (b, 0, 0)),
        scratch_shapes=[
            pltpu.VMEM((T + 2 * MAXPAD, C), jnp.float32),        # zero-padded conv input
        ],
        compiler_params=pltpu.CompilerParams(
            dimension_semantics=("parallel",)),                  # 2 TCs on v7x
    )(frames, fp["window"], fp["dft"], fp["mel2"],
      fp["l1_w"], fp["l1_bb"], fp["l2_w"], fp["l2_bb"],
      fp["l3_w"], fp["l3_bb"], fp["mfa_w"], fp["mfa_bb"],
      fp["a_w1"], fp["a_b1"], fp["a_w2"], fp["a_b2"],
      fp["out_w"], fp["out_b"])
    return out[:, 0, :]                                          # [B, NCLS]


# ------------------------------- parameter setup ------------------------------
def make_tri_fb(nfreq, nmels):
    pts = np.linspace(0.0, nfreq - 1.0, nmels + 2)
    fbm = np.zeros((nfreq, nmels), np.float32)
    bins = np.arange(nfreq, dtype=np.float32)
    for m in range(nmels):
        l, c, r = pts[m], pts[m + 1], pts[m + 2]
        up = (bins - l) / max(c - l, 1e-6)
        down = (r - bins) / max(r - c, 1e-6)
        fbm[:, m] = np.clip(np.minimum(up, down), 0.0, 1.0)
    return jnp.asarray(fbm)


def init_params(key):
    """Original (PyTorch-like) parameterization."""
    ks = jax.random.split(key, 16)

    def dense(k, shape):
        return (jax.random.normal(k, shape, jnp.float32)
                / jnp.sqrt(jnp.float32(shape[0])))

    n = np.arange(WIN)[:, None]
    kk = np.arange(NFREQ)[None, :]
    ang = 2.0 * np.pi * n * kk / WIN
    p = {
        "window": jnp.asarray(0.5 - 0.5 * np.cos(2 * np.pi * np.arange(WIN) / WIN),
                              jnp.float32)[None, :],
        "Wr": jnp.asarray(np.cos(ang), jnp.float32),
        "Wi": jnp.asarray(-np.sin(ang), jnp.float32),
        "mel": make_tri_fb(NFREQ, NMELS),
    }
    p["l1_w"] = dense(ks[0], (5 * NMELS, C));  p["l1_b"] = jnp.zeros((1, C))
    p["l1_g"] = jnp.ones((1, C));              p["l1_be"] = jnp.zeros((1, C))
    p["l2_w"] = dense(ks[1], (3 * C, C));      p["l2_b"] = jnp.zeros((1, C))
    p["l2_g"] = jnp.ones((1, C));              p["l2_be"] = jnp.zeros((1, C))
    p["l3_w"] = dense(ks[2], (3 * C, C));      p["l3_b"] = jnp.zeros((1, C))
    p["l3_g"] = jnp.ones((1, C));              p["l3_be"] = jnp.zeros((1, C))
    p["mfa_w"] = dense(ks[3], (3 * C, C2));    p["mfa_b"] = jnp.zeros((1, C2))
    p["mfa_g"] = jnp.ones((1, C2));            p["mfa_be"] = jnp.zeros((1, C2))
    p["a_w1"] = dense(ks[4], (C2, ATT));       p["a_b1"] = jnp.zeros((1, ATT))
    p["a_w2"] = dense(ks[5], (ATT, C2));       p["a_b2"] = jnp.zeros((1, C2))
    p["fc_w"] = dense(ks[6], (2 * C2, EMB));   p["fc_b"] = jnp.zeros((1, EMB))
    p["cls_w"] = dense(ks[7], (EMB, NCLS));    p["cls_b"] = jnp.zeros((1, NCLS))
    return p


def fold_params(p):
    """One-time folding of BN gamma, fc+classifier, and DFT/mel packing."""
    def fold_block(w, b, g, be):
        # relu(xW + b) * g + be == relu(x(Wg) + bg) + be   (gamma >= 0 here)
        return w * g, jnp.concatenate([b * g, be], axis=0)   # (KC,Cout), (2,Cout)

    fp = {
        "window": p["window"],
        "dft": jnp.concatenate([p["Wr"], p["Wi"]], axis=1),      # [WIN, 2*NFREQ]
        "mel2": jnp.concatenate([p["mel"], p["mel"]], axis=0),   # [2*NFREQ, NMELS]
    }
    for name in ("l1", "l2", "l3", "mfa"):
        w, bb = fold_block(p[f"{name}_w"], p[f"{name}_b"],
                           p[f"{name}_g"], p[f"{name}_be"])
        fp[f"{name}_w"] = w
        fp[f"{name}_bb"] = bb
    fp["a_w1"], fp["a_b1"] = p["a_w1"], p["a_b1"]
    fp["a_w2"], fp["a_b2"] = p["a_w2"], p["a_b2"]
    # No nonlinearity between fc and classifier -> exact fold.
    fp["out_w"] = p["fc_w"] @ p["cls_w"]                          # [2*C2, NCLS]
    fp["out_b"] = p["fc_b"] @ p["cls_w"] + p["cls_b"]             # [1, NCLS]
    return fp


# ----------------------------------- main --------------------------------------
if __name__ == "__main__":
    key = jax.random.PRNGKey(0)
    k_wav, k_par = jax.random.split(key)
    wav = jax.random.normal(k_wav, (B, N), jnp.float32)   # input waveform [2, 544]
    params = init_params(k_par)
    fparams = fold_params(params)

    out = fine_tuned_ecapa_forward(wav, fparams)
    out = jax.block_until_ready(out)
    assert out.shape == (B, NCLS) and out.dtype == jnp.float32
    assert bool(jnp.all(jnp.isfinite(out)))
    print("KERNEL_OK")
</pallas_src>

<mosaic_0001>
module attributes {stable_mosaic.version = 11 : i64} {
  func.func @ecapa_fused_kernel(%arg0: i32, %arg1: memref<1x16x64xf32, #tpu.memory_space<vmem>>, %arg2: memref<1x64xf32, #tpu.memory_space<vmem>>, %arg3: memref<64x64xf32, #tpu.memory_space<vmem>>, %arg4: memref<64x24xf32, #tpu.memory_space<vmem>>, %arg5: memref<120x64xf32, #tpu.memory_space<vmem>>, %arg6: memref<2x64xf32, #tpu.memory_space<vmem>>, %arg7: memref<192x64xf32, #tpu.memory_space<vmem>>, %arg8: memref<2x64xf32, #tpu.memory_space<vmem>>, %arg9: memref<192x64xf32, #tpu.memory_space<vmem>>, %arg10: memref<2x64xf32, #tpu.memory_space<vmem>>, %arg11: memref<192x128xf32, #tpu.memory_space<vmem>>, %arg12: memref<2x128xf32, #tpu.memory_space<vmem>>, %arg13: memref<128x64xf32, #tpu.memory_space<vmem>>, %arg14: memref<1x64xf32, #tpu.memory_space<vmem>>, %arg15: memref<64x128xf32, #tpu.memory_space<vmem>>, %arg16: memref<1x128xf32, #tpu.memory_space<vmem>>, %arg17: memref<256x2xf32, #tpu.memory_space<vmem>>, %arg18: memref<1x2xf32, #tpu.memory_space<vmem>>, %arg19: memref<1x1x2xf32, #tpu.memory_space<vmem>>, %arg20: memref<22x64xf32, #tpu.memory_space<vmem>>) attributes {dimension_semantics = [#tpu.dimension_semantics<parallel>], iteration_bounds = array<i64: 2>, scalar_prefetch = 0 : i64, scratch_operands = 1 : i64, tpu.core_type = #tpu.core_type<tc>, window_params = [{transform_indices = @transform_0, window_bounds = array<i64: 1, 16, 64>}, {pipeline_mode = #tpu.pipeline_mode<synchronous>, transform_indices = @transform_1, window_bounds = array<i64: 1, 64>}, {pipeline_mode = #tpu.pipeline_mode<synchronous>, transform_indices = @transform_2, window_bounds = array<i64: 64, 64>}, {pipeline_mode = #tpu.pipeline_mode<synchronous>, transform_indices = @transform_3, window_bounds = array<i64: 64, 24>}, {pipeline_mode = #tpu.pipeline_mode<synchronous>, transform_indices = @transform_4, window_bounds = array<i64: 120, 64>}, {pipeline_mode = #tpu.pipeline_mode<synchronous>, transform_indices = @transform_5, window_bounds = array<i64: 2, 64>}, {pipeline_mode = #tpu.pipeline_mode<synchronous>, transform_indices = @transform_6, window_bounds = array<i64: 192, 64>}, {pipeline_mode = #tpu.pipeline_mode<synchronous>, transform_indices = @transform_7, window_bounds = array<i64: 2, 64>}, {pipeline_mode = #tpu.pipeline_mode<synchronous>, transform_indices = @transform_8, window_bounds = array<i64: 192, 64>}, {pipeline_mode = #tpu.pipeline_mode<synchronous>, transform_indices = @transform_9, window_bounds = array<i64: 2, 64>}, {pipeline_mode = #tpu.pipeline_mode<synchronous>, transform_indices = @transform_10, window_bounds = array<i64: 192, 128>}, {pipeline_mode = #tpu.pipeline_mode<synchronous>, transform_indices = @transform_11, window_bounds = array<i64: 2, 128>}, {pipeline_mode = #tpu.pipeline_mode<synchronous>, transform_indices = @transform_12, window_bounds = array<i64: 128, 64>}, {pipeline_mode = #tpu.pipeline_mode<synchronous>, transform_indices = @transform_13, window_bounds = array<i64: 1, 64>}, {pipeline_mode = #tpu.pipeline_mode<synchronous>, transform_indices = @transform_14, window_bounds = array<i64: 64, 128>}, {pipeline_mode = #tpu.pipeline_mode<synchronous>, transform_indices = @transform_15, window_bounds = array<i64: 1, 128>}, {pipeline_mode = #tpu.pipeline_mode<synchronous>, transform_indices = @transform_16, window_bounds = array<i64: 256, 2>}, {pipeline_mode = #tpu.pipeline_mode<synchronous>, transform_indices = @transform_17, window_bounds = array<i64: 1, 2>}, {transform_indices = @transform_18, window_bounds = array<i64: 1, 1, 2>}]} {
    %c0 = arith.constant 0 : index
    %c0_0 = arith.constant 0 : index
    %c0_1 = arith.constant 0 : index
    %0 = vector.load %arg1[%c0, %c0_0, %c0_1] : memref<1x16x64xf32, #tpu.memory_space<vmem>>, vector<1x16x64xf32>
    %1 = vector.shape_cast %0 : vector<1x16x64xf32> to vector<16x64xf32>
    %c0_2 = arith.constant 0 : index
    %c0_3 = arith.constant 0 : index
    %2 = vector.load %arg2[%c0_2, %c0_3] : memref<1x64xf32, #tpu.memory_space<vmem>>, vector<1x64xf32>
    %3 = vector.broadcast %2 : vector<1x64xf32> to vector<16x64xf32>
    %4 = arith.mulf %1, %3 : vector<16x64xf32>
    %c0_4 = arith.constant 0 : index
    %c0_5 = arith.constant 0 : index
    %5 = vector.load %arg3[%c0_4, %c0_5] : memref<64x64xf32, #tpu.memory_space<vmem>>, vector<64x64xf32>
    %cst = arith.constant dense<0.000000e+00> : vector<16x64xf32>
    %6 = tpu.matmul %4, %5, %cst {dimension_numbers = #tpu.dot_dimension_numbers<[1], [0], [0], [1], [0, 0, 1, 1], [], []>} : vector<16x64xf32>, vector<64x64xf32>, vector<16x64xf32> -> vector<16x64xf32>
    %7 = arith.mulf %6, %6 : vector<16x64xf32>
    %c0_6 = arith.constant 0 : index
    %c0_7 = arith.constant 0 : index
    %8 = vector.load %arg4[%c0_6, %c0_7] : memref<64x24xf32, #tpu.memory_space<vmem>>, vector<64x24xf32>
    %cst_8 = arith.constant dense<0.000000e+00> : vector<16x24xf32>
    %9 = tpu.matmul %7, %8, %cst_8 {dimension_numbers = #tpu.dot_dimension_numbers<[1], [0], [0], [1], [0, 0, 1, 1], [], []>} : vector<16x64xf32>, vector<64x24xf32>, vector<16x24xf32> -> vector<16x24xf32>
    %cst_9 = arith.constant 9.99999997E-7 : f32
    %10 = vector.broadcast %cst_9 : f32 to vector<16x24xf32>
    %11 = arith.addf %9, %10 : vector<16x24xf32>
    %12 = math.log %11 : vector<16x24xf32>
    %cst_10 = arith.constant dense<0.000000e+00> : vector<24xf32>
    %13 = vector.multi_reduction <add>, %12, %cst_10 [0] : vector<16x24xf32> to vector<24xf32>
    %14 = vector.shape_cast %13 : vector<24xf32> to vector<1x24xf32>
    %cst_11 = arith.constant 1.600000e+01 : f32
    %15 = vector.broadcast %cst_11 : f32 to vector<1x24xf32>
    %16 = arith.divf %14, %15 : vector<1x24xf32>
    %17 = vector.broadcast %16 : vector<1x24xf32> to vector<16x24xf32>
    %18 = arith.subf %12, %17 : vector<16x24xf32>
    %cst_12 = arith.constant 0.000000e+00 : f32
    %19 = vector.broadcast %cst_12 : f32 to vector<22x64xf32>
    %c0_13 = arith.constant 0 : index
    %c0_14 = arith.constant 0 : index
    %20 = vector.load %arg20[%c0_13, %c0_14] : memref<22x64xf32, #tpu.memory_space<vmem>>, vector<22x64xf32>
    tpu.vector_store %arg20[%c0_13, %c0_14], %19 {strides = array<i32>} : memref<22x64xf32, #tpu.memory_space<vmem>>, vector<22x64xf32>,
    %c2 = arith.constant 2 : index
    %c0_15 = arith.constant 0 : index
    %21 = vector.load %arg20[%c2, %c0_15] : memref<22x64xf32, #tpu.memory_space<vmem>>, vector<16x24xf32>
    tpu.vector_store %arg20[%c2, %c0_15], %18 {strides = array<i32>} : memref<22x64xf32, #tpu.memory_space<vmem>>, vector<16x24xf32>,
    %cst_16 = arith.constant 0.000000e+00 : f32
    %22 = vector.broadcast %cst_16 : f32 to vector<16x64xf32>
    %c0_17 = arith.constant 0 : index
    %c0_18 = arith.constant 0 : index
    %23 = vector.load %arg20[%c0_17, %c0_18] : memref<22x64xf32, #tpu.memory_space<vmem>>, vector<16x24xf32>
    %c0_19 = arith.constant 0 : index
    %c0_20 = arith.constant 0 : index
    %24 = vector.load %arg5[%c0_19, %c0_20] : memref<120x64xf32, #tpu.memory_space<vmem>>, vector<24x64xf32>
    %cst_21 = arith.constant dense<0.000000e+00> : vector<16x64xf32>
    %25 = tpu.matmul %23, %24, %cst_21 {dimension_numbers = #tpu.dot_dimension_numbers<[1], [0], [0], [1], [0, 0, 1, 1], [], []>} : vector<16x24xf32>, vector<24x64xf32>, vector<16x64xf32> -> vector<16x64xf32>
    %26 = arith.addf %22, %25 : vector<16x64xf32>
    %c1 = arith.constant 1 : index
    %c0_22 = arith.constant 0 : index
    %27 = vector.load %arg20[%c1, %c0_22] : memref<22x64xf32, #tpu.memory_space<vmem>>, vector<16x24xf32>
    %c24 = arith.constant 24 : index
    %c0_23 = arith.constant 0 : index
    %28 = vector.load %arg5[%c24, %c0_23] : memref<120x64xf32, #tpu.memory_space<vmem>>, vector<24x64xf32>
    %cst_24 = arith.constant dense<0.000000e+00> : vector<16x64xf32>
    %29 = tpu.matmul %27, %28, %cst_24 {dimension_numbers = #tpu.dot_dimension_numbers<[1], [0], [0], [1], [0, 0, 1, 1], [], []>} : vector<16x24xf32>, vector<24x64xf32>, vector<16x64xf32> -> vector<16x64xf32>
    %30 = arith.addf %26, %29 : vector<16x64xf32>
    %c2_25 = arith.constant 2 : index
    %c0_26 = arith.constant 0 : index
    %31 = vector.load %arg20[%c2_25, %c0_26] : memref<22x64xf32, #tpu.memory_space<vmem>>, vector<16x24xf32>
    %c48 = arith.constant 48 : index
    %c0_27 = arith.constant 0 : index
    %32 = vector.load %arg5[%c48, %c0_27] : memref<120x64xf32, #tpu.memory_space<vmem>>, vector<24x64xf32>
    %cst_28 = arith.constant dense<0.000000e+00> : vector<16x64xf32>
    %33 = tpu.matmul %31, %32, %cst_28 {dimension_numbers = #tpu.dot_dimension_numbers<[1], [0], [0], [1], [0, 0, 1, 1], [], []>} : vector<16x24xf32>, vector<24x64xf32>, vector<16x64xf32> -> vector<16x64xf32>
    %34 = arith.addf %30, %33 : vector<16x64xf32>
    %c3 = arith.constant 3 : index
    %c0_29 = arith.constant 0 : index
    %35 = vector.load %arg20[%c3, %c0_29] : memref<22x64xf32, #tpu.memory_space<vmem>>, vector<16x24xf32>
    %c72 = arith.constant 72 : index
    %c0_30 = arith.constant 0 : index
    %36 = vector.load %arg5[%c72, %c0_30] : memref<120x64xf32, #tpu.memory_space<vmem>>, vector<24x64xf32>
    %cst_31 = arith.constant dense<0.000000e+00> : vector<16x64xf32>
    %37 = tpu.matmul %35, %36, %cst_31 {dimension_numbers = #tpu.dot_dimension_numbers<[1], [0], [0], [1], [0, 0, 1, 1], [], []>} : vector<16x24xf32>, vector<24x64xf32>, vector<16x64xf32> -> vector<16x64xf32>
    %38 = arith.addf %34, %37 : vector<16x64xf32>
    %c4 = arith.constant 4 : index
    %c0_32 = arith.constant 0 : index
    %39 = vector.load %arg20[%c4, %c0_32] : memref<22x64xf32, #tpu.memory_space<vmem>>, vector<16x24xf32>
    %c96 = arith.constant 96 : index
    %c0_33 = arith.constant 0 : index
    %40 = vector.load %arg5[%c96, %c0_33] : memref<120x64xf32, #tpu.memory_space<vmem>>, vector<24x64xf32>
    %cst_34 = arith.constant dense<0.000000e+00> : vector<16x64xf32>
    %41 = tpu.matmul %39, %40, %cst_34 {dimension_numbers = #tpu.dot_dimension_numbers<[1], [0], [0], [1], [0, 0, 1, 1], [], []>} : vector<16x24xf32>, vector<24x64xf32>, vector<16x64xf32> -> vector<16x64xf32>
    %42 = arith.addf %38, %41 : vector<16x64xf32>
    %c0_35 = arith.constant 0 : index
    %c0_36 = arith.constant 0 : index
    %43 = vector.load %arg6[%c0_35, %c0_36] : memref<2x64xf32, #tpu.memory_space<vmem>>, vector<1x64xf32>
    %44 = vector.broadcast %43 : vector<1x64xf32> to vector<16x64xf32>
    %45 = arith.addf %42, %44 : vector<16x64xf32>
    %cst_37 = arith.constant 0.000000e+00 : f32
    %46 = vector.broadcast %cst_37 : f32 to vector<16x64xf32>
    %47 = arith.maximumf %45, %46 : vector<16x64xf32>
    %c1_38 = arith.constant 1 : index
    %c0_39 = arith.constant 0 : index
    %48 = vector.load %arg6[%c1_38, %c0_39] : memref<2x64xf32, #tpu.memory_space<vmem>>, vector<1x64xf32>
    %49 = vector.broadcast %48 : vector<1x64xf32> to vector<16x64xf32>
    %50 = arith.addf %47, %49 : vector<16x64xf32>
    %cst_40 = arith.constant 0.000000e+00 : f32
    %51 = vector.broadcast %cst_40 : f32 to vector<22x64xf32>
    %c0_41 = arith.constant 0 : index
    %c0_42 = arith.constant 0 : index
    %52 = vector.load %arg20[%c0_41, %c0_42] : memref<22x64xf32, #tpu.memory_space<vmem>>, vector<22x64xf32>
    tpu.vector_store %arg20[%c0_41, %c0_42], %51 {strides = array<i32>} : memref<22x64xf32, #tpu.memory_space<vmem>>, vector<22x64xf32>,
    %c2_43 = arith.constant 2 : index
    %c0_44 = arith.constant 0 : index
    %53 = vector.load %arg20[%c2_43, %c0_44] : memref<22x64xf32, #tpu.memory_space<vmem>>, vector<16x64xf32>
    tpu.vector_store %arg20[%c2_43, %c0_44], %50 {strides = array<i32>} : memref<22x64xf32, #tpu.memory_space<vmem>>, vector<16x64xf32>,
    %cst_45 = arith.constant 0.000000e+00 : f32
    %54 = vector.broadcast %cst_45 : f32 to vector<16x64xf32>
    %c0_46 = arith.constant 0 : index
    %c0_47 = arith.constant 0 : index
    %55 = vector.load %arg20[%c0_46, %c0_47] : memref<22x64xf32, #tpu.memory_space<vmem>>, vector<16x64xf32>
    %c0_48 = arith.constant 0 : index
    %c0_49 = arith.constant 0 : index
    %56 = vector.load %arg7[%c0_48, %c0_49] : memref<192x64xf32, #tpu.memory_space<vmem>>, vector<64x64xf32>
    %cst_50 = arith.constant dense<0.000000e+00> : vector<16x64xf32>
    %57 = tpu.matmul %55, %56, %cst_50 {dimension_numbers = #tpu.dot_dimension_numbers<[1], [0], [0], [1], [0, 0, 1, 1], [], []>} : vector<16x64xf32>, vector<64x64xf32>, vector<16x64xf32> -> vector<16x64xf32>
    %58 = arith.addf %54, %57 : vector<16x64xf32>
    %c2_51 = arith.constant 2 : index
    %c0_52 = arith.constant 0 : index
    %59 = vector.load %arg20[%c2_51, %c0_52] : memref<22x64xf32, #tpu.memory_space<vmem>>, vector<16x64xf32>
    %c64 = arith.constant 64 : index
    %c0_53 = arith.constant 0 : index
    %60 = vector.load %arg7[%c64, %c0_53] : memref<192x64xf32, #tpu.memory_space<vmem>>, vector<64x64xf32>
    %cst_54 = arith.constant dense<0.000000e+00> : vector<16x64xf32>
    %61 = tpu.matmul %59, %60, %cst_54 {dimension_numbers = #tpu.dot_dimension_numbers<[1], [0], [0], [1], [0, 0, 1, 1], [], []>} : vector<16x64xf32>, vector<64x64xf32>, vector<16x64xf32> -> vector<16x64xf32>
    %62 = arith.addf %58, %61 : vector<16x64xf32>
    %c4_55 = arith.constant 4 : index
    %c0_56 = arith.constant 0 : index
    %63 = vector.load %arg20[%c4_55, %c0_56] : memref<22x64xf32, #tpu.memory_space<vmem>>, vector<16x64xf32>
    %c128 = arith.constant 128 : index
    %c0_57 = arith.constant 0 : index
    %64 = vector.load %arg7[%c128, %c0_57] : memref<192x64xf32, #tpu.memory_space<vmem>>, vector<64x64xf32>
    %cst_58 = arith.constant dense<0.000000e+00> : vector<16x64xf32>
    %65 = tpu.matmul %63, %64, %cst_58 {dimension_numbers = #tpu.dot_dimension_numbers<[1], [0], [0], [1], [0, 0, 1, 1], [], []>} : vector<16x64xf32>, vector<64x64xf32>, vector<16x64xf32> -> vector<16x64xf32>
    %66 = arith.addf %62, %65 : vector<16x64xf32>
    %c0_59 = arith.constant 0 : index
    %c0_60 = arith.constant 0 : index
    %67 = vector.load %arg8[%c0_59, %c0_60] : memref<2x64xf32, #tpu.memory_space<vmem>>, vector<1x64xf32>
    %68 = vector.broadcast %67 : vector<1x64xf32> to vector<16x64xf32>
    %69 = arith.addf %66, %68 : vector<16x64xf32>
    %cst_61 = arith.constant 0.000000e+00 : f32
    %70 = vector.broadcast %cst_61 : f32 to vector<16x64xf32>
    %71 = arith.maximumf %69, %70 : vector<16x64xf32>
    %c1_62 = arith.constant 1 : index
    %c0_63 = arith.constant 0 : index
    %72 = vector.load %arg8[%c1_62, %c0_63] : memref<2x64xf32, #tpu.memory_space<vmem>>, vector<1x64xf32>
    %73 = vector.broadcast %72 : vector<1x64xf32> to vector<16x64xf32>
    %74 = arith.addf %71, %73 : vector<16x64xf32>
    %cst_64 = arith.constant 0.000000e+00 : f32
    %75 = vector.broadcast %cst_64 : f32 to vector<22x64xf32>
    %c0_65 = arith.constant 0 : index
    %c0_66 = arith.constant 0 : index
    %76 = vector.load %arg20[%c0_65, %c0_66] : memref<22x64xf32, #tpu.memory_space<vmem>>, vector<22x64xf32>
    tpu.vector_store %arg20[%c0_65, %c0_66], %75 {strides = array<i32>} : memref<22x64xf32, #tpu.memory_space<vmem>>, vector<22x64xf32>,
    %c3_67 = arith.constant 3 : index
    %c0_68 = arith.constant 0 : index
    %77 = vector.load %arg20[%c3_67, %c0_68] : memref<22x64xf32, #tpu.memory_space<vmem>>, vector<16x64xf32>
    tpu.vector_store %arg20[%c3_67, %c0_68], %74 {strides = array<i32>} : memref<22x64xf32, #tpu.memory_space<vmem>>, vector<16x64xf32>,
    %cst_69 = arith.constant 0.000000e+00 : f32
    %78 = vector.broadcast %cst_69 : f32 to vector<16x64xf32>
    %c0_70 = arith.constant 0 : index
    %c0_71 = arith.constant 0 : index
    %79 = vector.load %arg20[%c0_70, %c0_71] : memref<22x64xf32, #tpu.memory_space<vmem>>, vector<16x64xf32>
    %c0_72 = arith.constant 0 : index
    %c0_73 = arith.constant 0 : index
    %80 = vector.load %arg9[%c0_72, %c0_73] : memref<192x64xf32, #tpu.memory_space<vmem>>, vector<64x64xf32>
    %cst_74 = arith.constant dense<0.000000e+00> : vector<16x64xf32>
    %81 = tpu.matmul %79, %80, %cst_74 {dimension_numbers = #tpu.dot_dimension_numbers<[1], [0], [0], [1], [0, 0, 1, 1], [], []>} : vector<16x64xf32>, vector<64x64xf32>, vector<16x64xf32> -> vector<16x64xf32>
    %82 = arith.addf %78, %81 : vector<16x64xf32>
    %c3_75 = arith.constant 3 : index
    %c0_76 = arith.constant 0 : index
    %83 = vector.load %arg20[%c3_75, %c0_76] : memref<22x64xf32, #tpu.memory_space<vmem>>, vector<16x64xf32>
    %c64_77 = arith.constant 64 : index
    %c0_78 = arith.constant 0 : index
    %84 = vector.load %arg9[%c64_77, %c0_78] : memref<192x64xf32, #tpu.memory_space<vmem>>, vector<64x64xf32>
    %cst_79 = arith.constant dense<0.000000e+00> : vector<16x64xf32>
    %85 = tpu.matmul %83, %84, %cst_79 {dimension_numbers = #tpu.dot_dimension_numbers<[1], [0], [0], [1], [0, 0, 1, 1], [], []>} : vector<16x64xf32>, vector<64x64xf32>, vector<16x64xf32> -> vector<16x64xf32>
    %86 = arith.addf %82, %85 : vector<16x64xf32>
    %c6 = arith.constant 6 : index
    %c0_80 = arith.constant 0 : index
    %87 = vector.load %arg20[%c6, %c0_80] : memref<22x64xf32, #tpu.memory_space<vmem>>, vector<16x64xf32>
    %c128_81 = arith.constant 128 : index
    %c0_82 = arith.constant 0 : index
    %88 = vector.load %arg9[%c128_81, %c0_82] : memref<192x64xf32, #tpu.memory_space<vmem>>, vector<64x64xf32>
    %cst_83 = arith.constant dense<0.000000e+00> : vector<16x64xf32>
    %89 = tpu.matmul %87, %88, %cst_83 {dimension_numbers = #tpu.dot_dimension_numbers<[1], [0], [0], [1], [0, 0, 1, 1], [], []>} : vector<16x64xf32>, vector<64x64xf32>, vector<16x64xf32> -> vector<16x64xf32>
    %90 = arith.addf %86, %89 : vector<16x64xf32>
    %c0_84 = arith.constant 0 : index
    %c0_85 = arith.constant 0 : index
    %91 = vector.load %arg10[%c0_84, %c0_85] : memref<2x64xf32, #tpu.memory_space<vmem>>, vector<1x64xf32>
    %92 = vector.broadcast %91 : vector<1x64xf32> to vector<16x64xf32>
    %93 = arith.addf %90, %92 : vector<16x64xf32>
    %cst_86 = arith.constant 0.000000e+00 : f32
    %94 = vector.broadcast %cst_86 : f32 to vector<16x64xf32>
    %95 = arith.maximumf %93, %94 : vector<16x64xf32>
    %c1_87 = arith.constant 1 : index
    %c0_88 = arith.constant 0 : index
    %96 = vector.load %arg10[%c1_87, %c0_88] : memref<2x64xf32, #tpu.memory_space<vmem>>, vector<1x64xf32>
    %97 = vector.broadcast %96 : vector<1x64xf32> to vector<16x64xf32>
    %98 = arith.addf %95, %97 : vector<16x64xf32>
    %c0_89 = arith.constant 0 : index
    %c0_90 = arith.constant 0 : index
    %99 = vector.load %arg11[%c0_89, %c0_90] : memref<192x128xf32, #tpu.memory_space<vmem>>, vector<64x128xf32>
    %cst_91 = arith.constant dense<0.000000e+00> : vector<16x128xf32>
    %100 = tpu.matmul %50, %99, %cst_91 {dimension_numbers = #tpu.dot_dimension_numbers<[1], [0], [0], [1], [0, 0, 1, 1], [], []>} : vector<16x64xf32>, vector<64x128xf32>, vector<16x128xf32> -> vector<16x128xf32>
    %c64_92 = arith.constant 64 : index
    %c0_93 = arith.constant 0 : index
    %101 = vector.load %arg11[%c64_92, %c0_93] : memref<192x128xf32, #tpu.memory_space<vmem>>, vector<64x128xf32>
    %cst_94 = arith.constant dense<0.000000e+00> : vector<16x128xf32>
    %102 = tpu.matmul %74, %101, %cst_94 {dimension_numbers = #tpu.dot_dimension_numbers<[1], [0], [0], [1], [0, 0, 1, 1], [], []>} : vector<16x64xf32>, vector<64x128xf32>, vector<16x128xf32> -> vector<16x128xf32>
    %103 = arith.addf %100, %102 : vector<16x128xf32>
    %c128_95 = arith.constant 128 : index
    %c0_96 = arith.constant 0 : index
    %104 = vector.load %arg11[%c128_95, %c0_96] : memref<192x128xf32, #tpu.memory_space<vmem>>, vector<64x128xf32>
    %cst_97 = arith.constant dense<0.000000e+00> : vector<16x128xf32>
    %105 = tpu.matmul %98, %104, %cst_97 {dimension_numbers = #tpu.dot_dimension_numbers<[1], [0], [0], [1], [0, 0, 1, 1], [], []>} : vector<16x64xf32>, vector<64x128xf32>, vector<16x128xf32> -> vector<16x128xf32>
    %106 = arith.addf %103, %105 : vector<16x128xf32>
    %c0_98 = arith.constant 0 : index
    %c0_99 = arith.constant 0 : index
    %107 = vector.load %arg12[%c0_98, %c0_99] : memref<2x128xf32, #tpu.memory_space<vmem>>, vector<1x128xf32>
    %108 = vector.broadcast %107 : vector<1x128xf32> to vector<16x128xf32>
    %109 = arith.addf %106, %108 : vector<16x128xf32>
    %cst_100 = arith.constant 0.000000e+00 : f32
    %110 = vector.broadcast %cst_100 : f32 to vector<16x128xf32>
    %111 = arith.maximumf %109, %110 : vector<16x128xf32>
    %c1_101 = arith.constant 1 : index
    %c0_102 = arith.constant 0 : index
    %112 = vector.load %arg12[%c1_101, %c0_102] : memref<2x128xf32, #tpu.memory_space<vmem>>, vector<1x128xf32>
    %113 = vector.broadcast %112 : vector<1x128xf32> to vector<16x128xf32>
    %114 = arith.addf %111, %113 : vector<16x128xf32>
    %c0_103 = arith.constant 0 : index
    %c0_104 = arith.constant 0 : index
    %115 = vector.load %arg13[%c0_103, %c0_104] : memref<128x64xf32, #tpu.memory_space<vmem>>, vector<128x64xf32>
    %cst_105 = arith.constant dense<0.000000e+00> : vector<16x64xf32>
    %116 = tpu.matmul %114, %115, %cst_105 {dimension_numbers = #tpu.dot_dimension_numbers<[1], [0], [0], [1], [0, 0, 1, 1], [], []>} : vector<16x128xf32>, vector<128x64xf32>, vector<16x64xf32> -> vector<16x64xf32>
    %c0_106 = arith.constant 0 : index
    %c0_107 = arith.constant 0 : index
    %117 = vector.load %arg14[%c0_106, %c0_107] : memref<1x64xf32, #tpu.memory_space<vmem>>, vector<1x64xf32>
    %118 = vector.broadcast %117 : vector<1x64xf32> to vector<16x64xf32>
    %119 = arith.addf %116, %118 : vector<16x64xf32>
    %120 = math.tanh %119 : vector<16x64xf32>
    %c0_108 = arith.constant 0 : index
    %c0_109 = arith.constant 0 : index
    %121 = vector.load %arg15[%c0_108, %c0_109] : memref<64x128xf32, #tpu.memory_space<vmem>>, vector<64x128xf32>
    %cst_110 = arith.constant dense<0.000000e+00> : vector<16x128xf32>
    %122 = tpu.matmul %120, %121, %cst_110 {dimension_numbers = #tpu.dot_dimension_numbers<[1], [0], [0], [1], [0, 0, 1, 1], [], []>} : vector<16x64xf32>, vector<64x128xf32>, vector<16x128xf32> -> vector<16x128xf32>
    %c0_111 = arith.constant 0 : index
    %c0_112 = arith.constant 0 : index
    %123 = vector.load %arg16[%c0_111, %c0_112] : memref<1x128xf32, #tpu.memory_space<vmem>>, vector<1x128xf32>
    %124 = vector.broadcast %123 : vector<1x128xf32> to vector<16x128xf32>
    %125 = arith.addf %122, %124 : vector<16x128xf32>
    %cst_113 = arith.constant dense<0xFF800000> : vector<128xf32>
    %126 = vector.multi_reduction <maximumf>, %125, %cst_113 [0] : vector<16x128xf32> to vector<128xf32>
    %127 = vector.shape_cast %126 : vector<128xf32> to vector<1x128xf32>
    %128 = vector.broadcast %127 : vector<1x128xf32> to vector<16x128xf32>
    %129 = arith.subf %125, %128 : vector<16x128xf32>
    %130 = math.exp %129 : vector<16x128xf32>
    %cst_114 = arith.constant dense<0.000000e+00> : vector<128xf32>
    %131 = vector.multi_reduction <add>, %130, %cst_114 [0] : vector<16x128xf32> to vector<128xf32>
    %132 = vector.shape_cast %131 : vector<128xf32> to vector<1x128xf32>
    %133 = vector.broadcast %132 : vector<1x128xf32> to vector<16x128xf32>
    %134 = arith.divf %130, %133 : vector<16x128xf32>
    %135 = arith.mulf %134, %114 : vector<16x128xf32>
    %cst_115 = arith.constant dense<0.000000e+00> : vector<128xf32>
    %136 = vector.multi_reduction <add>, %135, %cst_115 [0] : vector<16x128xf32> to vector<128xf32>
    %137 = vector.shape_cast %136 : vector<128xf32> to vector<1x128xf32>
    %138 = arith.mulf %134, %114 : vector<16x128xf32>
    %139 = arith.mulf %138, %114 : vector<16x128xf32>
    %cst_116 = arith.constant dense<0.000000e+00> : vector<128xf32>
    %140 = vector.multi_reduction <add>, %139, %cst_116 [0] : vector<16x128xf32> to vector<128xf32>
    %141 = vector.shape_cast %140 : vector<128xf32> to vector<1x128xf32>
    %142 = arith.mulf %137, %137 : vector<1x128xf32>
    %143 = arith.subf %141, %142 : vector<1x128xf32>
    %cst_117 = arith.constant 9.99999997E-7 : f32
    %144 = vector.broadcast %cst_117 : f32 to vector<1x128xf32>
    %145 = arith.maximumf %144, %143 : vector<1x128xf32>
    %146 = math.sqrt %145 : vector<1x128xf32>
    %c0_118 = arith.constant 0 : index
    %c0_119 = arith.constant 0 : index
    %147 = vector.load %arg17[%c0_118, %c0_119] : memref<256x2xf32, #tpu.memory_space<vmem>>, vector<128x2xf32>
    %cst_120 = arith.constant dense<0.000000e+00> : vector<1x2xf32>
    %148 = tpu.matmul %137, %147, %cst_120 {dimension_numbers = #tpu.dot_dimension_numbers<[1], [0], [0], [1], [0, 0, 1, 1], [], []>} : vector<1x128xf32>, vector<128x2xf32>, vector<1x2xf32> -> vector<1x2xf32>
    %c128_121 = arith.constant 128 : index
    %c0_122 = arith.constant 0 : index
    %149 = vector.load %arg17[%c128_121, %c0_122] : memref<256x2xf32, #tpu.memory_space<vmem>>, vector<128x2xf32>
    %cst_123 = arith.constant dense<0.000000e+00> : vector<1x2xf32>
    %150 = tpu.matmul %146, %149, %cst_123 {dimension_numbers = #tpu.dot_dimension_numbers<[1], [0], [0], [1], [0, 0, 1, 1], [], []>} : vector<1x128xf32>, vector<128x2xf32>, vector<1x2xf32> -> vector<1x2xf32>
    %151 = arith.addf %148, %150 : vector<1x2xf32>
    %c0_124 = arith.constant 0 : index
    %c0_125 = arith.constant 0 : index
    %152 = vector.load %arg18[%c0_124, %c0_125] : memref<1x2xf32, #tpu.memory_space<vmem>>, vector<1x2xf32>
    %153 = arith.addf %151, %152 : vector<1x2xf32>
    %c0_126 = arith.constant 0 : index
    %c0_127 = arith.constant 0 : index
    %c0_128 = arith.constant 0 : index
    %154 = vector.load %arg19[%c0_126, %c0_127, %c0_128] : memref<1x1x2xf32, #tpu.memory_space<vmem>>, vector<1x1x2xf32>
    %155 = vector.shape_cast %154 : vector<1x1x2xf32> to vector<1x2xf32>
    %156 = vector.shape_cast %153 : vector<1x2xf32> to vector<1x1x2xf32>
    tpu.vector_store %arg19[%c0_126, %c0_127, %c0_128], %156 {strides = array<i32>} : memref<1x1x2xf32, #tpu.memory_space<vmem>>, vector<1x1x2xf32>,
    return
  }
  func.func @transform_0(%arg0: i32) -> (i32, i32, i32) {
    %c0_i32 = arith.constant 0 : i32
    %c0_i32_0 = arith.constant 0 : i32
    %c0_i32_1 = arith.constant 0 : i32
    return %arg0, %c0_i32, %c0_i32_0 : i32, i32, i32
  }
  func.func @transform_1(%arg0: i32) -> (i32, i32) {
    %c0_i32 = arith.constant 0 : i32
    %c0_i32_0 = arith.constant 0 : i32
    %c0_i32_1 = arith.constant 0 : i32
    return %c0_i32, %c0_i32_0 : i32, i32
  }
  func.func @transform_2(%arg0: i32) -> (i32, i32) {
    %c0_i32 = arith.constant 0 : i32
    %c0_i32_0 = arith.constant 0 : i32
    %c0_i32_1 = arith.constant 0 : i32
    return %c0_i32, %c0_i32_0 : i32, i32
  }
  func.func @transform_3(%arg0: i32) -> (i32, i32) {
    %c0_i32 = arith.constant 0 : i32
    %c0_i32_0 = arith.constant 0 : i32
    %c0_i32_1 = arith.constant 0 : i32
    return %c0_i32, %c0_i32_0 : i32, i32
  }
  func.func @transform_4(%arg0: i32) -> (i32, i32) {
    %c0_i32 = arith.constant 0 : i32
    %c0_i32_0 = arith.constant 0 : i32
    %c0_i32_1 = arith.constant 0 : i32
    return %c0_i32, %c0_i32_0 : i32, i32
  }
  func.func @transform_5(%arg0: i32) -> (i32, i32) {
    %c0_i32 = arith.constant 0 : i32
    %c0_i32_0 = arith.constant 0 : i32
    %c0_i32_1 = arith.constant 0 : i32
    return %c0_i32, %c0_i32_0 : i32, i32
  }
  func.func @transform_6(%arg0: i32) -> (i32, i32) {
    %c0_i32 = arith.constant 0 : i32
    %c0_i32_0 = arith.constant 0 : i32
    %c0_i32_1 = arith.constant 0 : i32
    return %c0_i32, %c0_i32_0 : i32, i32
  }
  func.func @transform_7(%arg0: i32) -> (i32, i32) {
    %c0_i32 = arith.constant 0 : i32
    %c0_i32_0 = arith.constant 0 : i32
    %c0_i32_1 = arith.constant 0 : i32
    return %c0_i32, %c0_i32_0 : i32, i32
  }
  func.func @transform_8(%arg0: i32) -> (i32, i32) {
    %c0_i32 = arith.constant 0 : i32
    %c0_i32_0 = arith.constant 0 : i32
    %c0_i32_1 = arith.constant 0 : i32
    return %c0_i32, %c0_i32_0 : i32, i32
  }
  func.func @transform_9(%arg0: i32) -> (i32, i32) {
    %c0_i32 = arith.constant 0 : i32
    %c0_i32_0 = arith.constant 0 : i32
    %c0_i32_1 = arith.constant 0 : i32
    return %c0_i32, %c0_i32_0 : i32, i32
  }
  func.func @transform_10(%arg0: i32) -> (i32, i32) {
    %c0_i32 = arith.constant 0 : i32
    %c0_i32_0 = arith.constant 0 : i32
    %c0_i32_1 = arith.constant 0 : i32
    return %c0_i32, %c0_i32_0 : i32, i32
  }
  func.func @transform_11(%arg0: i32) -> (i32, i32) {
    %c0_i32 = arith.constant 0 : i32
    %c0_i32_0 = arith.constant 0 : i32
    %c0_i32_1 = arith.constant 0 : i32
    return %c0_i32, %c0_i32_0 : i32, i32
  }
  func.func @transform_12(%arg0: i32) -> (i32, i32) {
    %c0_i32 = arith.constant 0 : i32
    %c0_i32_0 = arith.constant 0 : i32
    %c0_i32_1 = arith.constant 0 : i32
    return %c0_i32, %c0_i32_0 : i32, i32
  }
  func.func @transform_13(%arg0: i32) -> (i32, i32) {
    %c0_i32 = arith.constant 0 : i32
    %c0_i32_0 = arith.constant 0 : i32
    %c0_i32_1 = arith.constant 0 : i32
    return %c0_i32, %c0_i32_0 : i32, i32
  }
  func.func @transform_14(%arg0: i32) -> (i32, i32) {
    %c0_i32 = arith.constant 0 : i32
    %c0_i32_0 = arith.constant 0 : i32
    %c0_i32_1 = arith.constant 0 : i32
    return %c0_i32, %c0_i32_0 : i32, i32
  }
  func.func @transform_15(%arg0: i32) -> (i32, i32) {
    %c0_i32 = arith.constant 0 : i32
    %c0_i32_0 = arith.constant 0 : i32
    %c0_i32_1 = arith.constant 0 : i32
    return %c0_i32, %c0_i32_0 : i32, i32
  }
  func.func @transform_16(%arg0: i32) -> (i32, i32) {
    %c0_i32 = arith.constant 0 : i32
    %c0_i32_0 = arith.constant 0 : i32
    %c0_i32_1 = arith.constant 0 : i32
    return %c0_i32, %c0_i32_0 : i32, i32
  }
  func.func @transform_17(%arg0: i32) -> (i32, i32) {
    %c0_i32 = arith.constant 0 : i32
    %c0_i32_0 = arith.constant 0 : i32
    %c0_i32_1 = arith.constant 0 : i32
    return %c0_i32, %c0_i32_0 : i32, i32
  }
  func.func @transform_18(%arg0: i32) -> (i32, i32, i32) {
    %c0_i32 = arith.constant 0 : i32
    %c0_i32_0 = arith.constant 0 : i32
    %c0_i32_1 = arith.constant 0 : i32
    return %arg0, %c0_i32, %c0_i32_0 : i32, i32, i32
  }
}

</mosaic_0001>

<llo_original>
// kernel: fine_tuned_ecapa_forward.1
$region0: #{fine_tuned_ecapa_forward.1}
  #allocation0 [shape = 'u32[]', space=smem, size = 0x4, offset = 0x4, fixed_abs, tag = 'smem constant byte address 0x4 - core index']
  #allocation1 [shape = 'u32[144,128]{1,0:T(1,128)}', space=vmem, size = 0x12000, scoped, tag = 'internal scratch']
  #allocation2 [shape = 'f32[22,64]{1,0:T(8,128)}', space=vmem, size = 0x3000, scoped, tag = 'scratch operand']
  %s0 = inlined_call_operand.vmem [shape: f32[2,16,64], index: 0, kind: input, shape index: {}]
  %s1 = inlined_call_operand.vmem [shape: f32[1,64], index: 1, kind: input, shape index: {}]
  %s2 = inlined_call_operand.vmem [shape: f32[64,64], index: 2, kind: input, shape index: {}]
  %s3 = inlined_call_operand.vmem [shape: f32[64,24], index: 3, kind: input, shape index: {}]
  %s4 = inlined_call_operand.vmem [shape: f32[120,64], index: 4, kind: input, shape index: {}]
  %s5 = inlined_call_operand.vmem [shape: f32[2,64], index: 5, kind: input, shape index: {}]
  %s6 = inlined_call_operand.vmem [shape: f32[192,64], index: 6, kind: input, shape index: {}]
  %s7 = inlined_call_operand.vmem [shape: f32[2,64], index: 7, kind: input, shape index: {}]
  %s8 = inlined_call_operand.vmem [shape: f32[192,64], index: 8, kind: input, shape index: {}]
  %s9 = inlined_call_operand.vmem [shape: f32[2,64], index: 9, kind: input, shape index: {}]
  %s10 = inlined_call_operand.vmem [shape: f32[192,128], index: 10, kind: input, shape index: {}]
  %s11 = inlined_call_operand.vmem [shape: f32[2,128], index: 11, kind: input, shape index: {}]
  %s12 = inlined_call_operand.vmem [shape: f32[128,64], index: 12, kind: input, shape index: {}]
  %s13 = inlined_call_operand.vmem [shape: f32[1,64], index: 13, kind: input, shape index: {}]
  %s14 = inlined_call_operand.vmem [shape: f32[64,128], index: 14, kind: input, shape index: {}]
  %s15 = inlined_call_operand.vmem [shape: f32[1,128], index: 15, kind: input, shape index: {}]
  %s16 = inlined_call_operand.vmem [shape: f32[256,2], index: 16, kind: input, shape index: {}]
  %s17 = inlined_call_operand.vmem [shape: f32[1,2], index: 17, kind: input, shape index: {}]
  %s18 = inlined_call_operand.hbm [shape: f32[2,1,2], index: 18, kind: output, shape index: {}]
  %s19 = sld [smem:[#allocation0]]
  $region105: #{fine_tuned_ecapa_forward.1} parent=0
    _
  %s21 = ssub.s32 1, %s19
  %s22 = scalar_select 0, %s21, %s19
  $region1: #{fine_tuned_ecapa_forward.1} parent=0
    #allocation3 [shape = 'u8[1024]{0}', space=vmem, size = 0x400, scoped, tag = 'output window, operand 0']
    #allocation4 [shape = 's32[2]{0}', space=sflag, size = 0x8, scoped, tag = 'scoped memory for fine_tuned_ecapa_forward.1']
    %23 = vsyncpa [#allocation4], 0
    %s24 = scalar_lea.sflag [#allocation4], 1
    %25 = vsyncpa %s24, 0
    loop: start=0, step=1, limit=4
    $region2: #{fine_tuned_ecapa_forward.1} parent=1 // loop_pre_header
      _
    $region3: #{fine_tuned_ecapa_forward.1} parent=1 // loop_header
      %s27 = sphi 0, %s31
      %p28 = scmp.ge.s32.totalorder %s27, 4
      %s37 = sphi 0, %s39
      %s40 = sphi 0, %s37
      %s41 = sphi 0, %s40
      %s57 = sphi 0, %s41
      %s61 = sphi 0, %s61
      %s63 = sphi 0, %s61
      %s64 = sphi 0, %s63
      %s78 = sphi 0, %s64
      %s82 = sphi 0, %s82
      %s84 = sphi 0, %s82
      %s85 = sphi 0, %s84
      %s99 = sphi 0, %s85
      %s103 = sphi 0, %s103
      %s105 = sphi 0, %s103
      %s106 = sphi 0, %s105
      %s120 = sphi 0, %s106
      %s124 = sphi 0, %s124
      %s126 = sphi 0, %s124
      %s127 = sphi 0, %s126
      %s141 = sphi 0, %s127
      %s145 = sphi 0, %s145
      %s147 = sphi 0, %s145
      %s148 = sphi 0, %s147
      %s162 = sphi 0, %s148
      %s166 = sphi 0, %s166
      %s168 = sphi 0, %s166
      %s169 = sphi 0, %s168
      %s183 = sphi 0, %s169
      %s187 = sphi 0, %s187
      %s189 = sphi 0, %s187
      %s190 = sphi 0, %s189
      %s204 = sphi 0, %s190
      %s208 = sphi 0, %s208
      %s210 = sphi 0, %s208
      %s211 = sphi 0, %s210
      %s225 = sphi 0, %s211
      %s229 = sphi 0, %s229
      %s231 = sphi 0, %s229
      %s232 = sphi 0, %s231
      %s246 = sphi 0, %s232
      %s250 = sphi 0, %s250
      %s252 = sphi 0, %s250
      %s253 = sphi 0, %s252
      %s267 = sphi 0, %s253
      %s271 = sphi 0, %s271
      %s273 = sphi 0, %s271
      %s274 = sphi 0, %s273
      %s288 = sphi 0, %s274
      %s292 = sphi 0, %s292
      %s294 = sphi 0, %s292
      %s295 = sphi 0, %s294
      %s309 = sphi 0, %s295
      %s313 = sphi 0, %s313
      %s315 = sphi 0, %s313
      %s316 = sphi 0, %s315
      %s330 = sphi 0, %s316
      %s334 = sphi 0, %s334
      %s336 = sphi 0, %s334
      %s337 = sphi 0, %s336
      %s351 = sphi 0, %s337
      %s355 = sphi 0, %s355
      %s357 = sphi 0, %s355
      %s358 = sphi 0, %s357
      %s372 = sphi 0, %s358
      %s376 = sphi 0, %s376
      %s378 = sphi 0, %s376
      %s379 = sphi 0, %s378
      %s393 = sphi 0, %s379
      %s397 = sphi 0, %s397
      %s399 = sphi 0, %s397
      %s400 = sphi 0, %s399
      %s414 = sphi 0, %s400
      %s420 = sphi 0, %s422
      %s423 = sphi 0, %s420
      %s424 = sphi 0, %s423
      %s440 = sphi 0, %s424
    $region4: #{fine_tuned_ecapa_forward.1} parent=1 // loop_header_branch
      %30 = sbr.rel (%p28) target = $region8
    $region5: #{fine_tuned_ecapa_forward.1} parent=1 // loop_body
      %s32 = ssub.s32 %s27, 1
      %s33 = ssub.s32 %s27, 2
      %s34 = sadd.s32 %s27, 1
      %s35 = ssub.s32 %s27, %s34
      %p36 = scmp.eq.s32.totalorder %s35, 0
      %s38 = sadd.s32 %s37, 1
      %s39 = scalar_select %p36, %s37, %s38
      %p42 = pneg %p36
      %p43 = scmp.eq.s32.totalorder %s27, 1
      %p44 = por %p42, %p43
      %p45 = scmp.ne.s32.totalorder %s37, %s40
      %p46 = scmp.eq.s32.totalorder %s27, 0
      %p47 = por %p45, %p46
      %p48 = scmp.ne.s32.totalorder %s37, %s40
      %p49 = scmp.eq.s32.totalorder %s32, 1
      %p50 = por %p48, %p49
      %p51 = scmp.ne.s32.totalorder %s40, %s41
      %p52 = scmp.eq.s32.totalorder %s32, 0
      %p53 = por %p51, %p52
      %p54 = scmp.ne.s32.totalorder %s40, %s41
      %p55 = scmp.eq.s32.totalorder %s33, 1
      %p56 = por %p54, %p55
      %p58 = scmp.ne.s32.totalorder %s41, %s57
      %p59 = scmp.eq.s32.totalorder %s33, 0
      %p60 = por %p58, %p59
      %s62 = sadd.s32 %s61, 1
      %p65 = scmp.eq.s32.totalorder %s27, 1
      %p66 = scmp.ne.s32.totalorder %s61, %s63
      %p67 = scmp.eq.s32.totalorder %s27, 0
      %p68 = por %p66, %p67
      %p69 = scmp.ne.s32.totalorder %s61, %s63
      %p70 = scmp.eq.s32.totalorder %s32, 1
      %p71 = por %p69, %p70
      %p72 = scmp.ne.s32.totalorder %s63, %s64
      %p73 = scmp.eq.s32.totalorder %s32, 0
      %p74 = por %p72, %p73
      %p75 = scmp.ne.s32.totalorder %s63, %s64
      %p76 = scmp.eq.s32.totalorder %s33, 1
      %p77 = por %p75, %p76
      %p79 = scmp.ne.s32.totalorder %s64, %s78
      %p80 = scmp.eq.s32.totalorder %s33, 0
      %p81 = por %p79, %p80
      %s83 = sadd.s32 %s82, 1
      %p86 = scmp.eq.s32.totalorder %s27, 1
      %p87 = scmp.ne.s32.totalorder %s82, %s84
      %p88 = scmp.eq.s32.totalorder %s27, 0
      %p89 = por %p87, %p88
      %p90 = scmp.ne.s32.totalorder %s82, %s84
      %p91 = scmp.eq.s32.totalorder %s32, 1
      %p92 = por %p90, %p91
      %p93 = scmp.ne.s32.totalorder %s84, %s85
      %p94 = scmp.eq.s32.totalorder %s32, 0
      %p95 = por %p93, %p94
      %p96 = scmp.ne.s32.totalorder %s84, %s85
      %p97 = scmp.eq.s32.totalorder %s33, 1
      %p98 = por %p96, %p97
      %p100 = scmp.ne.s32.totalorder %s85, %s99
      %p101 = scmp.eq.s32.totalorder %s33, 0
      %p102 = por %p100, %p101
      %s104 = sadd.s32 %s103, 1
      %p107 = scmp.eq.s32.totalorder %s27, 1
      %p108 = scmp.ne.s32.totalorder %s103, %s105
      %p109 = scmp.eq.s32.totalorder %s27, 0
      %p110 = por %p108, %p109
      %p111 = scmp.ne.s32.totalorder %s103, %s105
      %p112 = scmp.eq.s32.totalorder %s32, 1
      %p113 = por %p111, %p112
      %p114 = scmp.ne.s32.totalorder %s105, %s106
      %p115 = scmp.eq.s32.totalorder %s32, 0
      %p116 = por %p114, %p115
      %p117 = scmp.ne.s32.totalorder %s105, %s106
      %p118 = scmp.eq.s32.totalorder %s33, 1
      %p119 = por %p117, %p118
      %p121 = scmp.ne.s32.totalorder %s106, %s120
      %p122 = scmp.eq.s32.totalorder %s33, 0
      %p123 = por %p121, %p122
      %s125 = sadd.s32 %s124, 1
      %p128 = scmp.eq.s32.totalorder %s27, 1
      %p129 = scmp.ne.s32.totalorder %s124, %s126
      %p130 = scmp.eq.s32.totalorder %s27, 0
      %p131 = por %p129, %p130
      %p132 = scmp.ne.s32.totalorder %s124, %s126
      %p133 = scmp.eq.s32.totalorder %s32, 1
      %p134 = por %p132, %p133
      %p135 = scmp.ne.s32.totalorder %s126, %s127
      %p136 = scmp.eq.s32.totalorder %s32, 0
      %p137 = por %p135, %p136
      %p138 = scmp.ne.s32.totalorder %s126, %s127
      %p139 = scmp.eq.s32.totalorder %s33, 1
      %p140 = por %p138, %p139
      %p142 = scmp.ne.s32.totalorder %s127, %s141
      %p143 = scmp.eq.s32.totalorder %s33, 0
      %p144 = por %p142, %p143
      %s146 = sadd.s32 %s145, 1
      %p149 = scmp.eq.s32.totalorder %s27, 1
      %p150 = scmp.ne.s32.totalorder %s145, %s147
      %p151 = scmp.eq.s32.totalorder %s27, 0
      %p152 = por %p150, %p151
      %p153 = scmp.ne.s32.totalorder %s145, %s147
      %p154 = scmp.eq.s32.totalorder %s32, 1
      %p155 = por %p153, %p154
      %p156 = scmp.ne.s32.totalorder %s147, %s148
      %p157 = scmp.eq.s32.totalorder %s32, 0
      %p158 = por %p156, %p157
      %p159 = scmp.ne.s32.totalorder %s147, %s148
      %p160 = scmp.eq.s32.totalorder %s33, 1
      %p161 = por %p159, %p160
      %p163 = scmp.ne.s32.totalorder %s148, %s162
      %p164 = scmp.eq.s32.totalorder %s33, 0
      %p165 = por %p163, %p164
      %s167 = sadd.s32 %s166, 1
      %p170 = scmp.eq.s32.totalorder %s27, 1
      %p171 = scmp.ne.s32.totalorder %s166, %s168
      %p172 = scmp.eq.s32.totalorder %s27, 0
      %p173 = por %p171, %p172
      %p174 = scmp.ne.s32.totalorder %s166, %s168
      %p175 = scmp.eq.s32.totalorder %s32, 1
      %p176 = por %p174, %p175
      %p177 = scmp.ne.s32.totalorder %s168, %s169
      %p178 = scmp.eq.s32.totalorder %s32, 0
      %p179 = por %p177, %p178
      %p180 = scmp.ne.s32.totalorder %s168, %s169
      %p181 = scmp.eq.s32.totalorder %s33, 1
      %p182 = por %p180, %p181
      %p184 = scmp.ne.s32.totalorder %s169, %s183
      %p185 = scmp.eq.s32.totalorder %s33, 0
      %p186 = por %p184, %p185
      %s188 = sadd.s32 %s187, 1
      %p191 = scmp.eq.s32.totalorder %s27, 1
      %p192 = scmp.ne.s32.totalorder %s187, %s189
      %p193 = scmp.eq.s32.totalorder %s27, 0
      %p194 = por %p192, %p193
      %p195 = scmp.ne.s32.totalorder %s187, %s189
      %p196 = scmp.eq.s32.totalorder %s32, 1
      %p197 = por %p195, %p196
      %p198 = scmp.ne.s32.totalorder %s189, %s190
      %p199 = scmp.eq.s32.totalorder %s32, 0
      %p200 = por %p198, %p199
      %p201 = scmp.ne.s32.totalorder %s189, %s190
      %p202 = scmp.eq.s32.totalorder %s33, 1
      %p203 = por %p201, %p202
      %p205 = scmp.ne.s32.totalorder %s190, %s204
      %p206 = scmp.eq.s32.totalorder %s33, 0
      %p207 = por %p205, %p206
      %s209 = sadd.s32 %s208, 1
      %p212 = scmp.eq.s32.totalorder %s27, 1
      %p213 = scmp.ne.s32.totalorder %s208, %s210
      %p214 = scmp.eq.s32.totalorder %s27, 0
      %p215 = por %p213, %p214
      %p216 = scmp.ne.s32.totalorder %s208, %s210
      %p217 = scmp.eq.s32.totalorder %s32, 1
      %p218 = por %p216, %p217
      %p219 = scmp.ne.s32.totalorder %s210, %s211
      %p220 = scmp.eq.s32.totalorder %s32, 0
      %p221 = por %p219, %p220
      %p222 = scmp.ne.s32.totalorder %s210, %s211
      %p223 = scmp.eq.s32.totalorder %s33, 1
      %p224 = por %p222, %p223
      %p226 = scmp.ne.s32.totalorder %s211, %s225
      %p227 = scmp.eq.s32.totalorder %s33, 0
      %p228 = por %p226, %p227
      %s230 = sadd.s32 %s229, 1
      %p233 = scmp.eq.s32.totalorder %s27, 1
      %p234 = scmp.ne.s32.totalorder %s229, %s231
      %p235 = scmp.eq.s32.totalorder %s27, 0
      %p236 = por %p234, %p235
      %p237 = scmp.ne.s32.totalorder %s229, %s231
      %p238 = scmp.eq.s32.totalorder %s32, 1
      %p239 = por %p237, %p238
      %p240 = scmp.ne.s32.totalorder %s231, %s232
      %p241 = scmp.eq.s32.totalorder %s32, 0
      %p242 = por %p240, %p241
      %p243 = scmp.ne.s32.totalorder %s231, %s232
      %p244 = scmp.eq.s32.totalorder %s33, 1
      %p245 = por %p243, %p244
      %p247 = scmp.ne.s32.totalorder %s232, %s246
      %p248 = scmp.eq.s32.totalorder %s33, 0
      %p249 = por %p247, %p248
      %s251 = sadd.s32 %s250, 1
      %p254 = scmp.eq.s32.totalorder %s27, 1
      %p255 = scmp.ne.s32.totalorder %s250, %s252
      %p256 = scmp.eq.s32.totalorder %s27, 0
      %p257 = por %p255, %p256
      %p258 = scmp.ne.s32.totalorder %s250, %s252
      %p259 = scmp.eq.s32.totalorder %s32, 1
      %p260 = por %p258, %p259
      %p261 = scmp.ne.s32.totalorder %s252, %s253
      %p262 = scmp.eq.s32.totalorder %s32, 0
      %p263 = por %p261, %p262
      %p264 = scmp.ne.s32.totalorder %s252, %s253
      %p265 = scmp.eq.s32.totalorder %s33, 1
      %p266 = por %p264, %p265
      %p268 = scmp.ne.s32.totalorder %s253, %s267
      %p269 = scmp.eq.s32.totalorder %s33, 0
      %p270 = por %p268, %p269
      %s272 = sadd.s32 %s271, 1
      %p275 = scmp.eq.s32.totalorder %s27, 1
      %p276 = scmp.ne.s32.totalorder %s271, %s273
      %p277 = scmp.eq.s32.totalorder %s27, 0
      %p278 = por %p276, %p277
      %p279 = scmp.ne.s32.totalorder %s271, %s273
      %p280 = scmp.eq.s32.totalorder %s32, 1
      %p281 = por %p279, %p280
      %p282 = scmp.ne.s32.totalorder %s273, %s274
      %p283 = scmp.eq.s32.totalorder %s32, 0
      %p284 = por %p282, %p283
      %p285 = scmp.ne.s32.totalorder %s273, %s274
      %p286 = scmp.eq.s32.totalorder %s33, 1
      %p287 = por %p285, %p286
      %p289 = scmp.ne.s32.totalorder %s274, %s288
      %p290 = scmp.eq.s32.totalorder %s33, 0
      %p291 = por %p289, %p290
      %s293 = sadd.s32 %s292, 1
      %p296 = scmp.eq.s32.totalorder %s27, 1
      %p297 = scmp.ne.s32.totalorder %s292, %s294
      %p298 = scmp.eq.s32.totalorder %s27, 0
      %p299 = por %p297, %p298
      %p300 = scmp.ne.s32.totalorder %s292, %s294
      %p301 = scmp.eq.s32.totalorder %s32, 1
      %p302 = por %p300, %p301
      %p303 = scmp.ne.s32.totalorder %s294, %s295
      %p304 = scmp.eq.s32.totalorder %s32, 0
      %p305 = por %p303, %p304
      %p306 = scmp.ne.s32.totalorder %s294, %s295
      %p307 = scmp.eq.s32.totalorder %s33, 1
      %p308 = por %p306, %p307
      %p310 = scmp.ne.s32.totalorder %s295, %s309
      %p311 = scmp.eq.s32.totalorder %s33, 0
      %p312 = por %p310, %p311
      %s314 = sadd.s32 %s313, 1
      %p317 = scmp.eq.s32.totalorder %s27, 1
      %p318 = scmp.ne.s32.totalorder %s313, %s315
      %p319 = scmp.eq.s32.totalorder %s27, 0
      %p320 = por %p318, %p319
      %p321 = scmp.ne.s32.totalorder %s313, %s315
      %p322 = scmp.eq.s32.totalorder %s32, 1
      %p323 = por %p321, %p322
      %p324 = scmp.ne.s32.totalorder %s315, %s316
      %p325 = scmp.eq.s32.totalorder %s32, 0
      %p326 = por %p324, %p325
      %p327 = scmp.ne.s32.totalorder %s315, %s316
      %p328 = scmp.eq.s32.totalorder %s33, 1
      %p329 = por %p327, %p328
      %p331 = scmp.ne.s32.totalorder %s316, %s330
      %p332 = scmp.eq.s32.totalorder %s33, 0
      %p333 = por %p331, %p332
      %s335 = sadd.s32 %s334, 1
      %p338 = scmp.eq.s32.totalorder %s27, 1
      %p339 = scmp.ne.s32.totalorder %s334, %s336
      %p340 = scmp.eq.s32.totalorder %s27, 0
      %p341 = por %p339, %p340
      %p342 = scmp.ne.s32.totalorder %s334, %s336
      %p343 = scmp.eq.s32.totalorder %s32, 1
      %p344 = por %p342, %p343
      %p345 = scmp.ne.s32.totalorder %s336, %s337
      %p346 = scmp.eq.s32.totalorder %s32, 0
      %p347 = por %p345, %p346
      %p348 = scmp.ne.s32.totalorder %s336, %s337
      %p349 = scmp.eq.s32.totalorder %s33, 1
      %p350 = por %p348, %p349
      %p352 = scmp.ne.s32.totalorder %s337, %s351
      %p353 = scmp.eq.s32.totalorder %s33, 0
      %p354 = por %p352, %p353
      %s356 = sadd.s32 %s355, 1
      %p359 = scmp.eq.s32.totalorder %s27, 1
      %p360 = scmp.ne.s32.totalorder %s355, %s357
      %p361 = scmp.eq.s32.totalorder %s27, 0
      %p362 = por %p360, %p361
      %p363 = scmp.ne.s32.totalorder %s355, %s357
      %p364 = scmp.eq.s32.totalorder %s32, 1
      %p365 = por %p363, %p364
      %p366 = scmp.ne.s32.totalorder %s357, %s358
      %p367 = scmp.eq.s32.totalorder %s32, 0
      %p368 = por %p366, %p367
      %p369 = scmp.ne.s32.totalorder %s357, %s358
      %p370 = scmp.eq.s32.totalorder %s33, 1
      %p371 = por %p369, %p370
      %p373 = scmp.ne.s32.totalorder %s358, %s372
      %p374 = scmp.eq.s32.totalorder %s33, 0
      %p375 = por %p373, %p374
      %s377 = sadd.s32 %s376, 1
      %p380 = scmp.eq.s32.totalorder %s27, 1
      %p381 = scmp.ne.s32.totalorder %s376, %s378
      %p382 = scmp.eq.s32.totalorder %s27, 0
      %p383 = por %p381, %p382
      %p384 = scmp.ne.s32.totalorder %s376, %s378
      %p385 = scmp.eq.s32.totalorder %s32, 1
      %p386 = por %p384, %p385
      %p387 = scmp.ne.s32.totalorder %s378, %s379
      %p388 = scmp.eq.s32.totalorder %s32, 0
      %p389 = por %p387, %p388
      %p390 = scmp.ne.s32.totalorder %s378, %s379
      %p391 = scmp.eq.s32.totalorder %s33, 1
      %p392 = por %p390, %p391
      %p394 = scmp.ne.s32.totalorder %s379, %s393
      %p395 = scmp.eq.s32.totalorder %s33, 0
      %p396 = por %p394, %p395
      %s398 = sadd.s32 %s397, 1
      %p401 = scmp.eq.s32.totalorder %s27, 1
      %p402 = scmp.ne.s32.totalorder %s397, %s399
      %p403 = scmp.eq.s32.totalorder %s27, 0
      %p404 = por %p402, %p403
      %p405 = scmp.ne.s32.totalorder %s397, %s399
      %p406 = scmp.eq.s32.totalorder %s32, 1
      %p407 = por %p405, %p406
      %p408 = scmp.ne.s32.totalorder %s399, %s400
      %p409 = scmp.eq.s32.totalorder %s32, 0
      %p410 = por %p408, %p409
      %p411 = scmp.ne.s32.totalorder %s399, %s400
      %p412 = scmp.eq.s32.totalorder %s33, 1
      %p413 = por %p411, %p412
      %p415 = scmp.ne.s32.totalorder %s400, %s414
      %p416 = scmp.eq.s32.totalorder %s33, 0
      %p417 = por %p415, %p416
      %s418 = ssub.s32 %s27, %s34
      %p419 = scmp.eq.s32.totalorder %s418, 0
      %s421 = sadd.s32 %s420, 1
      %s422 = scalar_select %p419, %s420, %s421
      %p425 = pneg %p419
      %p426 = scmp.eq.s32.totalorder %s27, 1
      %p427 = por %p425, %p426
      %p428 = scmp.ne.s32.totalorder %s420, %s423
      %p429 = scmp.eq.s32.totalorder %s27, 0
      %p430 = por %p428, %p429
      %p431 = scmp.ne.s32.totalorder %s420, %s423
      %p432 = scmp.eq.s32.totalorder %s32, 1
      %p433 = por %p431, %p432
      %p434 = scmp.ne.s32.totalorder %s423, %s424
      %p435 = scmp.eq.s32.totalorder %s32, 0
      %p436 = por %p434, %p435
      %p437 = scmp.ne.s32.totalorder %s423, %s424
      %p438 = scmp.eq.s32.totalorder %s33, 1
      %p439 = por %p437, %p438
      %p441 = scmp.ne.s32.totalorder %s424, %s440
      %p442 = scmp.eq.s32.totalorder %s33, 0
      %p443 = por %p441, %p442
      %p444 = scmp.le.s32.totalorder 1, %s27
      %p445 = scmp.lt.s32.totalorder %s27, 3
      %p446 = pnand %p444, %p445
      %p447 = pneg %p446
      // Predicated region
      $region9: #{fine_tuned_ecapa_forward.1} parent=5 // pred_check
        _
      $region10: #{fine_tuned_ecapa_forward.1} parent=5 // pred_check_branch
        %449 = sbr.rel (%p446) target = $region12
      $region11: #{fine_tuned_ecapa_forward.1} parent=5 // pred_region
        %s450 = ssub.s32 %s27, 1
        // Predicated region
        $region13: #{fine_tuned_ecapa_forward.1} parent=11 // pred_check
          %p451 = pneg %p74
        $region14: #{fine_tuned_ecapa_forward.1} parent=11 // pred_check_branch
          %453 = sbr.rel (%p451) target = $region16
        $region15: #{fine_tuned_ecapa_forward.1} parent=11 // pred_region
          _
        $region16: #{fine_tuned_ecapa_forward.1} parent=11 // pred_fallthru
          _
        // Predicated region
        $region17: #{fine_tuned_ecapa_forward.1} parent=11 // pred_check
          %p454 = pneg %p95
        $region18: #{fine_tuned_ecapa_forward.1} parent=11 // pred_check_branch
          %456 = sbr.rel (%p454) target = $region20
        $region19: #{fine_tuned_ecapa_forward.1} parent=11 // pred_region
          _
        $region20: #{fine_tuned_ecapa_forward.1} parent=11 // pred_fallthru
          _
        // Predicated region
        $region21: #{fine_tuned_ecapa_forward.1} parent=11 // pred_check
          %p457 = pneg %p116
        $region22: #{fine_tuned_ecapa_forward.1} parent=11 // pred_check_branch
          %459 = sbr.rel (%p457) target = $region24
        $region23: #{fine_tuned_ecapa_forward.1} parent=11 // pred_region
          _
        $region24: #{fine_tuned_ecapa_forward.1} parent=11 // pred_fallthru
          _
        // Predicated region
        $region25: #{fine_tuned_ecapa_forward.1} parent=11 // pred_check
          %p460 = pneg %p137
        $region26: #{fine_tuned_ecapa_forward.1} parent=11 // pred_check_branch
          %462 = sbr.rel (%p460) target = $region28
        $region27: #{fine_tuned_ecapa_forward.1} parent=11 // pred_region
          _
        $region28: #{fine_tuned_ecapa_forward.1} parent=11 // pred_fallthru
          _
        // Predicated region
        $region29: #{fine_tuned_ecapa_forward.1} parent=11 // pred_check
          %p463 = pneg %p158
        $region30: #{fine_tuned_ecapa_forward.1} parent=11 // pred_check_branch
          %465 = sbr.rel (%p463) target = $region32
        $region31: #{fine_tuned_ecapa_forward.1} parent=11 // pred_region
          _
        $region32: #{fine_tuned_ecapa_forward.1} parent=11 // pred_fallthru
          _
        // Predicated region
        $region33: #{fine_tuned_ecapa_forward.1} parent=11 // pred_check
          %p466 = pneg %p179
        $region34: #{fine_tuned_ecapa_forward.1} parent=11 // pred_check_branch
          %468 = sbr.rel (%p466) target = $region36
        $region35: #{fine_tuned_ecapa_forward.1} parent=11 // pred_region
          _
        $region36: #{fine_tuned_ecapa_forward.1} parent=11 // pred_fallthru
          _
        // Predicated region
        $region37: #{fine_tuned_ecapa_forward.1} parent=11 // pred_check
          %p469 = pneg %p200
        $region38: #{fine_tuned_ecapa_forward.1} parent=11 // pred_check_branch
          %471 = sbr.rel (%p469) target = $region40
        $region39: #{fine_tuned_ecapa_forward.1} parent=11 // pred_region
          _
        $region40: #{fine_tuned_ecapa_forward.1} parent=11 // pred_fallthru
          _
        // Predicated region
        $region41: #{fine_tuned_ecapa_forward.1} parent=11 // pred_check
          %p472 = pneg %p221
        $region42: #{fine_tuned_ecapa_forward.1} parent=11 // pred_check_branch
          %474 = sbr.rel (%p472) target = $region44
        $region43: #{fine_tuned_ecapa_forward.1} parent=11 // pred_region
          _
        $region44: #{fine_tuned_ecapa_forward.1} parent=11 // pred_fallthru
          _
        // Predicated region
        $region45: #{fine_tuned_ecapa_forward.1} parent=11 // pred_check
          %p475 = pneg %p242
        $region46: #{fine_tuned_ecapa_forward.1} parent=11 // pred_check_branch
          %477 = sbr.rel (%p475) target = $region48
        $region47: #{fine_tuned_ecapa_forward.1} parent=11 // pred_region
          _
        $region48: #{fine_tuned_ecapa_forward.1} parent=11 // pred_fallthru
          _
        // Predicated region
        $region49: #{fine_tuned_ecapa_forward.1} parent=11 // pred_check
          %p478 = pneg %p263
        $region50: #{fine_tuned_ecapa_forward.1} parent=11 // pred_check_branch
          %480 = sbr.rel (%p478) target = $region52
        $region51: #{fine_tuned_ecapa_forward.1} parent=11 // pred_region
          _
        $region52: #{fine_tuned_ecapa_forward.1} parent=11 // pred_fallthru
          _
        // Predicated region
        $region53: #{fine_tuned_ecapa_forward.1} parent=11 // pred_check
          %p481 = pneg %p284
        $region54: #{fine_tuned_ecapa_forward.1} parent=11 // pred_check_branch
          %483 = sbr.rel (%p481) target = $region56
        $region55: #{fine_tuned_ecapa_forward.1} parent=11 // pred_region
          _
        $region56: #{fine_tuned_ecapa_forward.1} parent=11 // pred_fallthru
          _
        // Predicated region
        $region57: #{fine_tuned_ecapa_forward.1} parent=11 // pred_check
          %p484 = pneg %p305
        $region58: #{fine_tuned_ecapa_forward.1} parent=11 // pred_check_branch
          %486 = sbr.rel (%p484) target = $region60
        $region59: #{fine_tuned_ecapa_forward.1} parent=11 // pred_region
          _
        $region60: #{fine_tuned_ecapa_forward.1} parent=11 // pred_fallthru
          _
        // Predicated region
        $region61: #{fine_tuned_ecapa_forward.1} parent=11 // pred_check
          %p487 = pneg %p326
        $region62: #{fine_tuned_ecapa_forward.1} parent=11 // pred_check_branch
          %489 = sbr.rel (%p487) target = $region64
        $region63: #{fine_tuned_ecapa_forward.1} parent=11 // pred_region
          _
        $region64: #{fine_tuned_ecapa_forward.1} parent=11 // pred_fallthru
          _
        // Predicated region
        $region65: #{fine_tuned_ecapa_forward.1} parent=11 // pred_check
          %p490 = pneg %p347
        $region66: #{fine_tuned_ecapa_forward.1} parent=11 // pred_check_branch
          %492 = sbr.rel (%p490) target = $region68
        $region67: #{fine_tuned_ecapa_forward.1} parent=11 // pred_region
          _
        $region68: #{fine_tuned_ecapa_forward.1} parent=11 // pred_fallthru
          _
        // Predicated region
        $region69: #{fine_tuned_ecapa_forward.1} parent=11 // pred_check
          %p493 = pneg %p368
        $region70: #{fine_tuned_ecapa_forward.1} parent=11 // pred_check_branch
          %495 = sbr.rel (%p493) target = $region72
        $region71: #{fine_tuned_ecapa_forward.1} parent=11 // pred_region
          _
        $region72: #{fine_tuned_ecapa_forward.1} parent=11 // pred_fallthru
          _
        // Predicated region
        $region73: #{fine_tuned_ecapa_forward.1} parent=11 // pred_check
          %p496 = pneg %p389
        $region74: #{fine_tuned_ecapa_forward.1} parent=11 // pred_check_branch
          %498 = sbr.rel (%p496) target = $region76
        $region75: #{fine_tuned_ecapa_forward.1} parent=11 // pred_region
          _
        $region76: #{fine_tuned_ecapa_forward.1} parent=11 // pred_fallthru
          _
        // Predicated region
        $region77: #{fine_tuned_ecapa_forward.1} parent=11 // pred_check
          %p499 = pneg %p410
        $region78: #{fine_tuned_ecapa_forward.1} parent=11 // pred_check_branch
          %501 = sbr.rel (%p499) target = $region80
        $region79: #{fine_tuned_ecapa_forward.1} parent=11 // pred_region
          _
        $region80: #{fine_tuned_ecapa_forward.1} parent=11 // pred_fallthru
          _
      $region12: #{fine_tuned_ecapa_forward.1} parent=5 // pred_fallthru
        _
      %p502 = scmp.lt.s32.totalorder %s27, 2
      // Predicated region
      $region81: #{fine_tuned_ecapa_forward.1} parent=5 // pred_check
        %p503 = pneg %p502
      $region82: #{fine_tuned_ecapa_forward.1} parent=5 // pred_check_branch
        %505 = sbr.rel (%p503) target = $region84
      $region83: #{fine_tuned_ecapa_forward.1} parent=5 // pred_region
        // Predicated region
        $region85: #{fine_tuned_ecapa_forward.1} parent=83 // pred_check
          %p506 = pneg %p47
        $region86: #{fine_tuned_ecapa_forward.1} parent=83 // pred_check_branch
          %508 = sbr.rel (%p506) target = $region88
        $region87: #{fine_tuned_ecapa_forward.1} parent=83 // pred_region
          %p509 = scmp.lt.s32.totalorder %s27, 1
          %s510 = scalar_select %p509, %s27, 1
          %s511 = smul.addr %s510, 2
          %s512 = smul.addr %s511, 8
          %s513 = scalar_lea.vmem %s0, %s512
        $region88: #{fine_tuned_ecapa_forward.1} parent=83 // pred_fallthru
          _
      $region84: #{fine_tuned_ecapa_forward.1} parent=5 // pred_fallthru
        _
      %p514 = scmp.le.s32.totalorder 1, %s27
      %p515 = scmp.lt.s32.totalorder %s27, 3
      %p516 = pnand %p514, %p515
      %p517 = pneg %p516
      // Predicated region
      $region89: #{fine_tuned_ecapa_forward.1} parent=5 // pred_check
        _
      $region90: #{fine_tuned_ecapa_forward.1} parent=5 // pred_check_branch
        %519 = sbr.rel (%p516) target = $region92
      $region91: #{fine_tuned_ecapa_forward.1} parent=5 // pred_region
        %s520 = ssub.s32 %s27, 1
        %p521 = scmp.lt.s32.totalorder %s32, 1
        %s522 = scalar_select %p521, %s32, 1
        %s523 = smul.addr %s522, 2
        %s524 = smul.addr %s523, 8
        %s525 = scalar_lea.vmem %s0, %s524
        %p526 = pneg %p53
        %p527 = pneg %p50
        %p528 = pneg %p74
        %p529 = pneg %p71
        %p530 = pneg %p95
        %p531 = pneg %p92
        %p532 = pneg %p116
        %p533 = pneg %p113
        %p534 = pneg %p137
        %p535 = pneg %p134
        %p536 = pneg %p158
        %p537 = pneg %p155
        %p538 = pneg %p179
        %p539 = pneg %p176
        %p540 = pneg %p200
        %p541 = pneg %p197
        %p542 = pneg %p221
        %p543 = pneg %p218
        %p544 = pneg %p242
        %p545 = pneg %p239
        %p546 = pneg %p263
        %p547 = pneg %p260
        %p548 = pneg %p284
        %p549 = pneg %p281
        %p550 = pneg %p305
        %p551 = pneg %p302
        %p552 = pneg %p326
        %p553 = pneg %p323
        %p554 = pneg %p347
        %p555 = pneg %p344
        %p556 = pneg %p368
        %p557 = pneg %p365
        %p558 = pneg %p389
        %p559 = pneg %p386
        %p560 = pneg %p410
        %p561 = pneg %p407
        %p562 = pneg %p436
        %p563 = pneg %p433
        %s564 = sand.u32 %s423, 1
        %s565 = scalar_lea.sflag [#allocation4], %s564
        %s566 = sand.u32 %s423, 1
        %s567 = scalar_lea.vmem [#allocation3], %s566
        %p568 = scmp.lt.s32.totalorder %s32, 1
        %s569 = scalar_select %p568, %s32, 1
        %s570 = smul.addr %s569, 2
        %s571 = smul.addr %s570, 8
        %s572 = scalar_lea.vmem %s0, %s571
        %v573 = vld [vmem:[%s572] sm:$0xff]
        %v574 = vld [vmem:[%s572 + $0x8] sm:$0xff]
        %v575 = vld [vmem:[%s1] sm:$0x1]
        %v577 = vlaneseq
        %v578 = vshrl.u32 %v577, 7
        %v579 = vsub.s32 0, %v578
        %v580 = vrot.slane %v575, %v579
        %v582 = vmul.f32 %v573, %v580
        %v583 = vmul.f32 %v574, %v580
        %v584 = vld [vmem:[%s2] sm:$0xff]
        %v585 = vld [vmem:[%s2 + $0x8] sm:$0xff]
        %v586 = vld [vmem:[%s2 + $0x10] sm:$0xff]
        %v587 = vld [vmem:[%s2 + $0x18] sm:$0xff]
        %v588 = vld [vmem:[%s2 + $0x20] sm:$0xff]
        %v589 = vld [vmem:[%s2 + $0x28] sm:$0xff]
        %v590 = vld [vmem:[%s2 + $0x30] sm:$0xff]
        %v591 = vld [vmem:[%s2 + $0x38] sm:$0xff]
        %vm592 = vcmask 523264
        %v594 = vsel %vm592, %v582, 0
        %v597 = vsel %vm592, %v583, 0
        %599 = vmatprep.subr.mxu0 0.0
        %600 = vmatpush1.msra.mxu0 %v584
        %601 = vmatprep.subr.mxu0 0.0
        %602 = vmatpush1.msra.mxu0 %v585
        %603 = vmatprep.subr.mxu0 0.0
        %604 = vmatpush1.msra.mxu0 %v586
        %605 = vmatprep.subr.mxu0 0.0
        %606 = vmatpush1.msra.mxu0 %v587
        %607 = vmatprep.subr.mxu0 0.0
        %608 = vmatpush1.msra.mxu0 %v588
        %609 = vmatprep.subr.mxu0 0.0
        %610 = vmatpush1.msra.mxu0 %v589
        %611 = vmatprep.subr.mxu0 0.0
        %612 = vmatpush1.msra.mxu0 %v590
        %613 = vmatprep.subr.mxu0 0.0
        %614 = vmatpush1.msra.mxu0 %v591
        %615 = vmatprep.subr.mxu0 0.0
        %616 = vmatpush1.msra.mxu0 0.0
        %617 = vmatprep.subr.mxu0 0.0
        %618 = vmatpush1.msra.mxu0 0.0
        %619 = vmatprep.subr.mxu0 0.0
        %620 = vmatpush1.msra.mxu0 0.0
        %621 = vmatprep.subr.mxu0 0.0
        %622 = vmatpush1.msra.mxu0 0.0
        %623 = vmatprep.subr.mxu0 0.0
        %624 = vmatpush1.msra.mxu0 0.0
        %625 = vmatprep.subr.mxu0 0.0
        %626 = vmatpush1.msra.mxu0 0.0
        %627 = vmatprep.subr.mxu0 0.0
        %628 = vmatpush1.msra.mxu0 0.0
        %629 = vmatprep.subr.mxu0 0.0
        %630 = vmatpush1.msra.mxu0 0.0
        %631 = vmatprep.subr.mxu0 0.0
        %632 = vmatpush1.msra.mxu0 0.0
        %633 = vmatprep.subr.mxu0 0.0
        %634 = vmatpush1.msra.mxu0 0.0
        %635 = vmatprep.subr.mxu0 0.0
        %636 = vmatpush1.msra.mxu0 0.0
        %637 = vmatprep.subr.mxu0 0.0
        %638 = vmatpush1.msra.mxu0 0.0
        %639 = vmatprep.subr.mxu0 0.0
        %640 = vmatpush1.msra.mxu0 0.0
        %641 = vmatprep.subr.mxu0 0.0
        %642 = vmatpush1.msra.mxu0 0.0
        %643 = vmatprep.subr.mxu0 0.0
        %644 = vmatpush1.msra.mxu0 0.0
        %645 = vmatprep.subr.mxu0 0.0
        %646 = vmatpush1.msra.mxu0 0.0
        %647 = vmatprep.subr.mxu0 0.0
        %648 = vmatpush1.msra.mxu0 0.0
        %649 = vmatprep.subr.mxu0 0.0
        %650 = vmatpush1.msra.mxu0 0.0
        %651 = vmatprep.subr.mxu0 0.0
        %652 = vmatpush1.msra.mxu0 0.0
        %653 = vmatprep.subr.mxu0 0.0
        %654 = vmatpush1.msra.mxu0 0.0
        %655 = vmatprep.subr.mxu0 0.0
        %656 = vmatpush1.msra.mxu0 0.0
        %657 = vmatprep.subr.mxu0 0.0
        %658 = vmatpush1.msra.mxu0 0.0
        %659 = vmatprep.subr.mxu0 0.0
        %660 = vmatpush1.msra.mxu0 0.0
        %661 = vmatprep.subr.mxu0 0.0
        %662 = vmatpush1.msra.mxu0 0.0
        %663 = vmatprep.mubr.f32.mxu0 0.0
        %664 = vmatmul.mubr.f32.gmra.mrb[0].mxu0 %v594
        %v665 = vpop.f32.mrb[0].mxu0
        %v666 = vadd.f32 0.0, %v665
        %v667 = vpop.f32.mrb[0].mxu0
        %668 = vmatprep.mubr.f32.mxu0 0.0
        %669 = vmatmul.mubr.f32.gmra.mrb[0].mxu0 %v597
        %v670 = vpop.f32.mrb[0].mxu0
        %v671 = vadd.f32 0.0, %v670
        %v672 = vpop.f32.mrb[0].mxu0
        %673 = vdwg.mxu0
        %v674 = vmul.f32 %v666, %v666
        %v675 = vmul.f32 %v671, %v671
        %v676 = vld [vmem:[%s3] sm:$0xff]
        %v677 = vld [vmem:[%s3 + $0x8] sm:$0xff]
        %v678 = vld [vmem:[%s3 + $0x10] sm:$0xff]
        %v679 = vld [vmem:[%s3 + $0x18] sm:$0xff]
        %v680 = vld [vmem:[%s3 + $0x20] sm:$0xff]
        %v681 = vld [vmem:[%s3 + $0x28] sm:$0xff]
        %v682 = vld [vmem:[%s3 + $0x30] sm:$0xff]
        %v683 = vld [vmem:[%s3 + $0x38] sm:$0xff]
        %v685 = vsel %vm592, %v674, 0
        %v688 = vsel %vm592, %v675, 0
        %690 = vmatprep.subr.mxu0 0.0
        %691 = vmatpush1.msra.mxu0 %v676
        %692 = vmatprep.subr.mxu0 0.0
        %693 = vmatpush1.msra.mxu0 %v677
        %694 = vmatprep.subr.mxu0 0.0
        %695 = vmatpush1.msra.mxu0 %v678
        %696 = vmatprep.subr.mxu0 0.0
        %697 = vmatpush1.msra.mxu0 %v679
        %698 = vmatprep.subr.mxu0 0.0
        %699 = vmatpush1.msra.mxu0 %v680
        %700 = vmatprep.subr.mxu0 0.0
        %701 = vmatpush1.msra.mxu0 %v681
        %702 = vmatprep.subr.mxu0 0.0
        %703 = vmatpush1.msra.mxu0 %v682
        %704 = vmatprep.subr.mxu0 0.0
        %705 = vmatpush1.msra.mxu0 %v683
        %706 = vmatprep.subr.mxu0 0.0
        %707 = vmatpush1.msra.mxu0 0.0
        %708 = vmatprep.subr.mxu0 0.0
        %709 = vmatpush1.msra.mxu0 0.0
        %710 = vmatprep.subr.mxu0 0.0
        %711 = vmatpush1.msra.mxu0 0.0
        %712 = vmatprep.subr.mxu0 0.0
        %713 = vmatpush1.msra.mxu0 0.0
        %714 = vmatprep.subr.mxu0 0.0
        %715 = vmatpush1.msra.mxu0 0.0
        %716 = vmatprep.subr.mxu0 0.0
        %717 = vmatpush1.msra.mxu0 0.0
        %718 = vmatprep.subr.mxu0 0.0
        %719 = vmatpush1.msra.mxu0 0.0
        %720 = vmatprep.subr.mxu0 0.0
        %721 = vmatpush1.msra.mxu0 0.0
        %722 = vmatprep.subr.mxu0 0.0
        %723 = vmatpush1.msra.mxu0 0.0
        %724 = vmatprep.subr.mxu0 0.0
        %725 = vmatpush1.msra.mxu0 0.0
        %726 = vmatprep.subr.mxu0 0.0
        %727 = vmatpush1.msra.mxu0 0.0
        %728 = vmatprep.subr.mxu0 0.0
        %729 = vmatpush1.msra.mxu0 0.0
        %730 = vmatprep.subr.mxu0 0.0
        %731 = vmatpush1.msra.mxu0 0.0
        %732 = vmatprep.subr.mxu0 0.0
        %733 = vmatpush1.msra.mxu0 0.0
        %734 = vmatprep.subr.mxu0 0.0
        %735 = vmatpush1.msra.mxu0 0.0
        %736 = vmatprep.subr.mxu0 0.0
        %737 = vmatpush1.msra.mxu0 0.0
        %738 = vmatprep.subr.mxu0 0.0
        %739 = vmatpush1.msra.mxu0 0.0
        %740 = vmatprep.subr.mxu0 0.0
        %741 = vmatpush1.msra.mxu0 0.0
        %742 = vmatprep.subr.mxu0 0.0
        %743 = vmatpush1.msra.mxu0 0.0
        %744 = vmatprep.subr.mxu0 0.0
        %745 = vmatpush1.msra.mxu0 0.0
        %746 = vmatprep.subr.mxu0 0.0
        %747 = vmatpush1.msra.mxu0 0.0
        %748 = vmatprep.subr.mxu0 0.0
        %749 = vmatpush1.msra.mxu0 0.0
        %750 = vmatprep.subr.mxu0 0.0
        %751 = vmatpush1.msra.mxu0 0.0
        %752 = vmatprep.subr.mxu0 0.0
        %753 = vmatpush1.msra.mxu0 0.0
        %754 = vmatprep.mubr.f32.mxu0 0.0
        %755 = vmatmul.mubr.f32.gmra.mrb[0].mxu0 %v685
        %v756 = vpop.f32.mrb[0].mxu0
        %v757 = vadd.f32 1e-06, %v756
        %v758 = vpop.f32.mrb[0].mxu0
        %759 = vmatprep.mubr.f32.mxu0 0.0
        %760 = vmatmul.mubr.f32.gmra.mrb[0].mxu0 %v688
        %v761 = vpop.f32.mrb[0].mxu0
        %v762 = vadd.f32 1e-06, %v761
        %v763 = vpop.f32.mrb[0].mxu0
        %764 = vdwg.mxu0
        %v765 = vlog2.pop %v757
        %v766 = vmul.f32 %v765, 0.6931472
        %v767 = vlog2.pop %v762
        %v768 = vmul.f32 %v767, 0.6931472
        %vm769 = vcmask 195584
        %v770 = vsel %vm769, %v766, 0.0
        %v771 = vsel %vm769, %v768, 0.0
        %v772 = vadd.f32 %v770, %v771
        %v773 = vrot.slane %v772, 4
        %v774 = vadd.f32 %v772, %v773
        %v775 = vrot.slane %v774, 2
        %v776 = vadd.f32 %v774, %v775
        %v777 = vrot.slane %v776, 1
        %v778 = vadd.f32 %v776, %v777
        %v779 = vrcp.pop 16.0
        %v780 = vmul.f32 %v778, %v779
        %v781 = vsub.f32 %v766, %v780
        %v782 = vsub.f32 %v768, %v780
        %783 = vst.msk [vmem:[#allocation2] sm:$0xff] %vm592, 0.0
        %784 = vst.msk [vmem:[#allocation2 + $0x8] sm:$0xff] %vm592, 0.0
        %vm785 = vcmask 521216
        %786 = vst.msk [vmem:[#allocation2 + $0x10] sm:$0x3f] %vm785, 0.0
        %787 = vst.msk [vmem:[#allocation2 + $0x2] sm:$0xff] %vm769, %v781
        %788 = vst.msk [vmem:[#allocation2 + $0xa] sm:$0xff] %vm769, %v782
        %v789 = vld [vmem:[#allocation2] sm:$0xff]
        %v790 = vld [vmem:[#allocation2 + $0x8] sm:$0xff]
        %v791 = vld [vmem:[%s4] sm:$0xff]
        %v792 = vld [vmem:[%s4 + $0x8] sm:$0xff]
        %v793 = vld [vmem:[%s4 + $0x10] sm:$0xff]
        %v794 = vld [vmem:[#allocation2 + $0x1] sm:$0xff]
        %v795 = vld [vmem:[#allocation2 + $0x9] sm:$0xff]
        %v796 = vld [vmem:[%s4 + $0x18] sm:$0xff]
        %v797 = vld [vmem:[%s4 + $0x20] sm:$0xff]
        %v798 = vld [vmem:[%s4 + $0x28] sm:$0xff]
        %v800 = vsel %vm769, %v794, 0
        %v803 = vsel %vm769, %v795, 0
        %805 = vmatprep.subr.mxu0 0.0
        %806 = vmatpush1.msra.mxu0 %v796
        %807 = vmatprep.subr.mxu0 0.0
        %808 = vmatpush1.msra.mxu0 %v797
        %809 = vmatprep.subr.mxu0 0.0
        %810 = vmatpush1.msra.mxu0 %v798
        %811 = vmatprep.subr.mxu0 0.0
        %812 = vmatpush1.msra.mxu0 0.0
        %813 = vmatprep.subr.mxu0 0.0
        %814 = vmatpush1.msra.mxu0 0.0
        %815 = vmatprep.subr.mxu0 0.0
        %816 = vmatpush1.msra.mxu0 0.0
        %817 = vmatprep.subr.mxu0 0.0
        %818 = vmatpush1.msra.mxu0 0.0
        %819 = vmatprep.subr.mxu0 0.0
        %820 = vmatpush1.msra.mxu0 0.0
        %821 = vmatprep.subr.mxu0 0.0
        %822 = vmatpush1.msra.mxu0 0.0
        %823 = vmatprep.subr.mxu0 0.0
        %824 = vmatpush1.msra.mxu0 0.0
        %825 = vmatprep.subr.mxu0 0.0
        %826 = vmatpush1.msra.mxu0 0.0
        %827 = vmatprep.subr.mxu0 0.0
        %828 = vmatpush1.msra.mxu0 0.0
        %829 = vmatprep.subr.mxu0 0.0
        %830 = vmatpush1.msra.mxu0 0.0
        %831 = vmatprep.subr.mxu0 0.0
        %832 = vmatpush1.msra.mxu0 0.0
        %833 = vmatprep.subr.mxu0 0.0
        %834 = vmatpush1.msra.mxu0 0.0
        %835 = vmatprep.subr.mxu0 0.0
        %836 = vmatpush1.msra.mxu0 0.0
        %837 = vmatprep.subr.mxu0 0.0
        %838 = vmatpush1.msra.mxu0 0.0
        %839 = vmatprep.subr.mxu0 0.0
        %840 = vmatpush1.msra.mxu0 0.0
        %841 = vmatprep.subr.mxu0 0.0
        %842 = vmatpush1.msra.mxu0 0.0
        %843 = vmatprep.subr.mxu0 0.0
        %844 = vmatpush1.msra.mxu0 0.0
        %845 = vmatprep.subr.mxu0 0.0
        %846 = vmatpush1.msra.mxu0 0.0
        %847 = vmatprep.subr.mxu0 0.0
        %848 = vmatpush1.msra.mxu0 0.0
        %849 = vmatprep.subr.mxu0 0.0
        %850 = vmatpush1.msra.mxu0 0.0
        %851 = vmatprep.subr.mxu0 0.0
        %852 = vmatpush1.msra.mxu0 0.0
        %853 = vmatprep.subr.mxu0 0.0
        %854 = vmatpush1.msra.mxu0 0.0
        %855 = vmatprep.subr.mxu0 0.0
        %856 = vmatpush1.msra.mxu0 0.0
        %857 = vmatprep.subr.mxu0 0.0
        %858 = vmatpush1.msra.mxu0 0.0
        %859 = vmatprep.subr.mxu0 0.0
        %860 = vmatpush1.msra.mxu0 0.0
        %861 = vmatprep.subr.mxu0 0.0
        %862 = vmatpush1.msra.mxu0 0.0
        %863 = vmatprep.subr.mxu0 0.0
        %864 = vmatpush1.msra.mxu0 0.0
        %865 = vmatprep.subr.mxu0 0.0
        %866 = vmatpush1.msra.mxu0 0.0
        %867 = vmatprep.subr.mxu0 0.0
        %868 = vmatpush1.msra.mxu0 0.0
        %869 = vmatprep.mubr.f32.mxu0 0.0
        %870 = vmatmul.mubr.f32.gmra.mrb[0].mxu0 %v800
        %v871 = vpop.f32.mrb[0].mxu0
        %v872 = vadd.f32 0.0, %v871
        %v873 = vpop.f32.mrb[0].mxu0
        %874 = vmatprep.mubr.f32.mxu0 0.0
        %875 = vmatmul.mubr.f32.gmra.mrb[0].mxu0 %v803
        %v876 = vpop.f32.mrb[0].mxu0
        %v877 = vadd.f32 0.0, %v876
        %v878 = vpop.f32.mrb[0].mxu0
        %879 = vdwg.mxu0
        %v881 = vsel %vm769, %v789, 0
        %v884 = vsel %vm769, %v790, 0
        %886 = vmatprep.subr.mxu0 0.0
        %887 = vmatpush1.msra.mxu0 %v791
        %888 = vmatprep.subr.mxu0 0.0
        %889 = vmatpush1.msra.mxu0 %v792
        %890 = vmatprep.subr.mxu0 0.0
        %891 = vmatpush1.msra.mxu0 %v793
        %892 = vmatprep.subr.mxu0 0.0
        %893 = vmatpush1.msra.mxu0 0.0
        %894 = vmatprep.subr.mxu0 0.0
        %895 = vmatpush1.msra.mxu0 0.0
        %896 = vmatprep.subr.mxu0 0.0
        %897 = vmatpush1.msra.mxu0 0.0
        %898 = vmatprep.subr.mxu0 0.0
        %899 = vmatpush1.msra.mxu0 0.0
        %900 = vmatprep.subr.mxu0 0.0
        %901 = vmatpush1.msra.mxu0 0.0
        %902 = vmatprep.subr.mxu0 0.0
        %903 = vmatpush1.msra.mxu0 0.0
        %904 = vmatprep.subr.mxu0 0.0
        %905 = vmatpush1.msra.mxu0 0.0
        %906 = vmatprep.subr.mxu0 0.0
        %907 = vmatpush1.msra.mxu0 0.0
        %908 = vmatprep.subr.mxu0 0.0
        %909 = vmatpush1.msra.mxu0 0.0
        %910 = vmatprep.subr.mxu0 0.0
        %911 = vmatpush1.msra.mxu0 0.0
        %912 = vmatprep.subr.mxu0 0.0
        %913 = vmatpush1.msra.mxu0 0.0
        %914 = vmatprep.subr.mxu0 0.0
        %915 = vmatpush1.msra.mxu0 0.0
        %916 = vmatprep.subr.mxu0 0.0
        %917 = vmatpush1.msra.mxu0 0.0
        %918 = vmatprep.subr.mxu0 0.0
        %919 = vmatpush1.msra.mxu0 0.0
        %920 = vmatprep.subr.mxu0 0.0
        %921 = vmatpush1.msra.mxu0 0.0
        %922 = vmatprep.subr.mxu0 0.0
        %923 = vmatpush1.msra.mxu0 0.0
        %924 = vmatprep.subr.mxu0 0.0
        %925 = vmatpush1.msra.mxu0 0.0
        %926 = vmatprep.subr.mxu0 0.0
        %927 = vmatpush1.msra.mxu0 0.0
        %928 = vmatprep.subr.mxu0 0.0
        %929 = vmatpush1.msra.mxu0 0.0
        %930 = vmatprep.subr.mxu0 0.0
        %931 = vmatpush1.msra.mxu0 0.0
        %932 = vmatprep.subr.mxu0 0.0
        %933 = vmatpush1.msra.mxu0 0.0
        %934 = vmatprep.subr.mxu0 0.0
        %935 = vmatpush1.msra.mxu0 0.0
        %936 = vmatprep.subr.mxu0 0.0
        %937 = vmatpush1.msra.mxu0 0.0
        %938 = vmatprep.subr.mxu0 0.0
        %939 = vmatpush1.msra.mxu0 0.0
        %940 = vmatprep.subr.mxu0 0.0
        %941 = vmatpush1.msra.mxu0 0.0
        %942 = vmatprep.subr.mxu0 0.0
        %943 = vmatpush1.msra.mxu0 0.0
        %944 = vmatprep.subr.mxu0 0.0
        %945 = vmatpush1.msra.mxu0 0.0
        %946 = vmatprep.subr.mxu0 0.0
        %947 = vmatpush1.msra.mxu0 0.0
        %948 = vmatprep.subr.mxu0 0.0
        %949 = vmatpush1.msra.mxu0 0.0
        %950 = vmatprep.mubr.f32.mxu0 0.0
        %951 = vmatmul.mubr.f32.gmra.mrb[0].mxu0 %v881
        %v952 = vpop.f32.mrb[0].mxu0
        %v953 = vadd.f32 %v872, %v952
        %v954 = vpop.f32.mrb[0].mxu0
        %955 = vmatprep.mubr.f32.mxu0 0.0
        %956 = vmatmul.mubr.f32.gmra.mrb[0].mxu0 %v884
        %v957 = vpop.f32.mrb[0].mxu0
        %v958 = vadd.f32 %v877, %v957
        %v959 = vpop.f32.mrb[0].mxu0
        %960 = vdwg.mxu0
        %v961 = vld [vmem:[#allocation2 + $0x2] sm:$0xff]
        %v962 = vld [vmem:[#allocation2 + $0xa] sm:$0xff]
        %v963 = vld [vmem:[%s4 + $0x30] sm:$0xff]
        %v964 = vld [vmem:[%s4 + $0x38] sm:$0xff]
        %v965 = vld [vmem:[%s4 + $0x40] sm:$0xff]
        %v967 = vsel %vm769, %v961, 0
        %v970 = vsel %vm769, %v962, 0
        %972 = vmatprep.subr.mxu0 0.0
        %973 = vmatpush1.msra.mxu0 %v963
        %974 = vmatprep.subr.mxu0 0.0
        %975 = vmatpush1.msra.mxu0 %v964
        %976 = vmatprep.subr.mxu0 0.0
        %977 = vmatpush1.msra.mxu0 %v965
        %978 = vmatprep.subr.mxu0 0.0
        %979 = vmatpush1.msra.mxu0 0.0
        %980 = vmatprep.subr.mxu0 0.0
        %981 = vmatpush1.msra.mxu0 0.0
        %982 = vmatprep.subr.mxu0 0.0
        %983 = vmatpush1.msra.mxu0 0.0
        %984 = vmatprep.subr.mxu0 0.0
        %985 = vmatpush1.msra.mxu0 0.0
        %986 = vmatprep.subr.mxu0 0.0
        %987 = vmatpush1.msra.mxu0 0.0
        %988 = vmatprep.subr.mxu0 0.0
        %989 = vmatpush1.msra.mxu0 0.0
        %990 = vmatprep.subr.mxu0 0.0
        %991 = vmatpush1.msra.mxu0 0.0
        %992 = vmatprep.subr.mxu0 0.0
        %993 = vmatpush1.msra.mxu0 0.0
        %994 = vmatprep.subr.mxu0 0.0
        %995 = vmatpush1.msra.mxu0 0.0
        %996 = vmatprep.subr.mxu0 0.0
        %997 = vmatpush1.msra.mxu0 0.0
        %998 = vmatprep.subr.mxu0 0.0
        %999 = vmatpush1.msra.mxu0 0.0
        %1000 = vmatprep.subr.mxu0 0.0
        %1001 = vmatpush1.msra.mxu0 0.0
        %1002 = vmatprep.subr.mxu0 0.0
        %1003 = vmatpush1.msra.mxu0 0.0
        %1004 = vmatprep.subr.mxu0 0.0
        %1005 = vmatpush1.msra.mxu0 0.0
        %1006 = vmatprep.subr.mxu0 0.0
        %1007 = vmatpush1.msra.mxu0 0.0
        %1008 = vmatprep.subr.mxu0 0.0
        %1009 = vmatpush1.msra.mxu0 0.0
        %1010 = vmatprep.subr.mxu0 0.0
        %1011 = vmatpush1.msra.mxu0 0.0
        %1012 = vmatprep.subr.mxu0 0.0
        %1013 = vmatpush1.msra.mxu0 0.0
        %1014 = vmatprep.subr.mxu0 0.0
        %1015 = vmatpush1.msra.mxu0 0.0
        %1016 = vmatprep.subr.mxu0 0.0
        %1017 = vmatpush1.msra.mxu0 0.0
        %1018 = vmatprep.subr.mxu0 0.0
        %1019 = vmatpush1.msra.mxu0 0.0
        %1020 = vmatprep.subr.mxu0 0.0
        %1021 = vmatpush1.msra.mxu0 0.0
        %1022 = vmatprep.subr.mxu0 0.0
        %1023 = vmatpush1.msra.mxu0 0.0
        %1024 = vmatprep.subr.mxu0 0.0
        %1025 = vmatpush1.msra.mxu0 0.0
        %1026 = vmatprep.subr.mxu0 0.0
        %1027 = vmatpush1.msra.mxu0 0.0
        %1028 = vmatprep.subr.mxu0 0.0
        %1029 = vmatpush1.msra.mxu0 0.0
        %1030 = vmatprep.subr.mxu0 0.0
        %1031 = vmatpush1.msra.mxu0 0.0
        %1032 = vmatprep.subr.mxu0 0.0
        %1033 = vmatpush1.msra.mxu0 0.0
        %1034 = vmatprep.subr.mxu0 0.0
        %1035 = vmatpush1.msra.mxu0 0.0
        %1036 = vmatprep.mubr.f32.mxu0 0.0
        %1037 = vmatmul.mubr.f32.gmra.mrb[0].mxu0 %v967
        %v1038 = vpop.f32.mrb[0].mxu0
        %v1039 = vadd.f32 0.0, %v1038
        %v1040 = vpop.f32.mrb[0].mxu0
        %1041 = vmatprep.mubr.f32.mxu0 0.0
        %1042 = vmatmul.mubr.f32.gmra.mrb[0].mxu0 %v970
        %v1043 = vpop.f32.mrb[0].mxu0
        %v1044 = vadd.f32 0.0, %v1043
        %v1045 = vpop.f32.mrb[0].mxu0
        %1046 = vdwg.mxu0
        %v1047 = vadd.f32 %v953, %v1039
        %v1048 = vadd.f32 %v958, %v1044
        %v1049 = vld [vmem:[#allocation2 + $0x3] sm:$0xff]
        %v1050 = vld [vmem:[#allocation2 + $0xb] sm:$0xff]
        %v1051 = vld [vmem:[%s4 + $0x48] sm:$0xff]
        %v1052 = vld [vmem:[%s4 + $0x50] sm:$0xff]
        %v1053 = vld [vmem:[%s4 + $0x58] sm:$0xff]
        %v1055 = vsel %vm769, %v1049, 0
        %v1058 = vsel %vm769, %v1050, 0
        %1060 = vmatprep.subr.mxu0 0.0
        %1061 = vmatpush1.msra.mxu0 %v1051
        %1062 = vmatprep.subr.mxu0 0.0
        %1063 = vmatpush1.msra.mxu0 %v1052
        %1064 = vmatprep.subr.mxu0 0.0
        %1065 = vmatpush1.msra.mxu0 %v1053
        %1066 = vmatprep.subr.mxu0 0.0
        %1067 = vmatpush1.msra.mxu0 0.0
        %1068 = vmatprep.subr.mxu0 0.0
        %1069 = vmatpush1.msra.mxu0 0.0
        %1070 = vmatprep.subr.mxu0 0.0
        %1071 = vmatpush1.msra.mxu0 0.0
        %1072 = vmatprep.subr.mxu0 0.0
        %1073 = vmatpush1.msra.mxu0 0.0
        %1074 = vmatprep.subr.mxu0 0.0
        %1075 = vmatpush1.msra.mxu0 0.0
        %1076 = vmatprep.subr.mxu0 0.0
        %1077 = vmatpush1.msra.mxu0 0.0
        %1078 = vmatprep.subr.mxu0 0.0
        %1079 = vmatpush1.msra.mxu0 0.0
        %1080 = vmatprep.subr.mxu0 0.0
        %1081 = vmatpush1.msra.mxu0 0.0
        %1082 = vmatprep.subr.mxu0 0.0
        %1083 = vmatpush1.msra.mxu0 0.0
        %1084 = vmatprep.subr.mxu0 0.0
        %1085 = vmatpush1.msra.mxu0 0.0
        %1086 = vmatprep.subr.mxu0 0.0
        %1087 = vmatpush1.msra.mxu0 0.0
        %1088 = vmatprep.subr.mxu0 0.0
        %1089 = vmatpush1.msra.mxu0 0.0
        %1090 = vmatprep.subr.mxu0 0.0
        %1091 = vmatpush1.msra.mxu0 0.0
        %1092 = vmatprep.subr.mxu0 0.0
        %1093 = vmatpush1.msra.mxu0 0.0
        %1094 = vmatprep.subr.mxu0 0.0
        %1095 = vmatpush1.msra.mxu0 0.0
        %1096 = vmatprep.subr.mxu0 0.0
        %1097 = vmatpush1.msra.mxu0 0.0
        %1098 = vmatprep.subr.mxu0 0.0
        %1099 = vmatpush1.msra.mxu0 0.0
        %1100 = vmatprep.subr.mxu0 0.0
        %1101 = vmatpush1.msra.mxu0 0.0
        %1102 = vmatprep.subr.mxu0 0.0
        %1103 = vmatpush1.msra.mxu0 0.0
        %1104 = vmatprep.subr.mxu0 0.0
        %1105 = vmatpush1.msra.mxu0 0.0
        %1106 = vmatprep.subr.mxu0 0.0
        %1107 = vmatpush1.msra.mxu0 0.0
        %1108 = vmatprep.subr.mxu0 0.0
        %1109 = vmatpush1.msra.mxu0 0.0
        %1110 = vmatprep.subr.mxu0 0.0
        %1111 = vmatpush1.msra.mxu0 0.0
        %1112 = vmatprep.subr.mxu0 0.0
        %1113 = vmatpush1.msra.mxu0 0.0
        %1114 = vmatprep.subr.mxu0 0.0
        %1115 = vmatpush1.msra.mxu0 0.0
        %1116 = vmatprep.subr.mxu0 0.0
        %1117 = vmatpush1.msra.mxu0 0.0
        %1118 = vmatprep.subr.mxu0 0.0
        %1119 = vmatpush1.msra.mxu0 0.0
        %1120 = vmatprep.subr.mxu0 0.0
        %1121 = vmatpush1.msra.mxu0 0.0
        %1122 = vmatprep.subr.mxu0 0.0
        %1123 = vmatpush1.msra.mxu0 0.0
        %1124 = vmatprep.mubr.f32.mxu0 0.0
        %1125 = vmatmul.mubr.f32.gmra.mrb[0].mxu0 %v1055
        %v1126 = vpop.f32.mrb[0].mxu0
        %v1127 = vadd.f32 0.0, %v1126
        %v1128 = vpop.f32.mrb[0].mxu0
        %1129 = vmatprep.mubr.f32.mxu0 0.0
        %1130 = vmatmul.mubr.f32.gmra.mrb[0].mxu0 %v1058
        %v1131 = vpop.f32.mrb[0].mxu0
        %v1132 = vadd.f32 0.0, %v1131
        %v1133 = vpop.f32.mrb[0].mxu0
        %1134 = vdwg.mxu0
        %v1135 = vadd.f32 %v1047, %v1127
        %v1136 = vadd.f32 %v1048, %v1132
        %v1137 = vld [vmem:[#allocation2 + $0x4] sm:$0xff]
        %v1138 = vld [vmem:[#allocation2 + $0xc] sm:$0xff]
        %v1139 = vld [vmem:[%s4 + $0x60] sm:$0xff]
        %v1140 = vld [vmem:[%s4 + $0x68] sm:$0xff]
        %v1141 = vld [vmem:[%s4 + $0x70] sm:$0xff]
        %v1143 = vsel %vm769, %v1137, 0
        %v1146 = vsel %vm769, %v1138, 0
        %1148 = vmatprep.subr.mxu0 0.0
        %1149 = vmatpush1.msra.mxu0 %v1139
        %1150 = vmatprep.subr.mxu0 0.0
        %1151 = vmatpush1.msra.mxu0 %v1140
        %1152 = vmatprep.subr.mxu0 0.0
        %1153 = vmatpush1.msra.mxu0 %v1141
        %1154 = vmatprep.subr.mxu0 0.0
        %1155 = vmatpush1.msra.mxu0 0.0
        %1156 = vmatprep.subr.mxu0 0.0
        %1157 = vmatpush1.msra.mxu0 0.0
        %1158 = vmatprep.subr.mxu0 0.0
        %1159 = vmatpush1.msra.mxu0 0.0
        %1160 = vmatprep.subr.mxu0 0.0
        %1161 = vmatpush1.msra.mxu0 0.0
        %1162 = vmatprep.subr.mxu0 0.0
        %1163 = vmatpush1.msra.mxu0 0.0
        %1164 = vmatprep.subr.mxu0 0.0
        %1165 = vmatpush1.msra.mxu0 0.0
        %1166 = vmatprep.subr.mxu0 0.0
        %1167 = vmatpush1.msra.mxu0 0.0
        %1168 = vmatprep.subr.mxu0 0.0
        %1169 = vmatpush1.msra.mxu0 0.0
        %1170 = vmatprep.subr.mxu0 0.0
        %1171 = vmatpush1.msra.mxu0 0.0
        %1172 = vmatprep.subr.mxu0 0.0
        %1173 = vmatpush1.msra.mxu0 0.0
        %1174 = vmatprep.subr.mxu0 0.0
        %1175 = vmatpush1.msra.mxu0 0.0
        %1176 = vmatprep.subr.mxu0 0.0
        %1177 = vmatpush1.msra.mxu0 0.0
        %1178 = vmatprep.subr.mxu0 0.0
        %1179 = vmatpush1.msra.mxu0 0.0
        %1180 = vmatprep.subr.mxu0 0.0
        %1181 = vmatpush1.msra.mxu0 0.0
        %1182 = vmatprep.subr.mxu0 0.0
        %1183 = vmatpush1.msra.mxu0 0.0
        %1184 = vmatprep.subr.mxu0 0.0
        %1185 = vmatpush1.msra.mxu0 0.0
        %1186 = vmatprep.subr.mxu0 0.0
        %1187 = vmatpush1.msra.mxu0 0.0
        %1188 = vmatprep.subr.mxu0 0.0
        %1189 = vmatpush1.msra.mxu0 0.0
        %1190 = vmatprep.subr.mxu0 0.0
        %1191 = vmatpush1.msra.mxu0 0.0
        %1192 = vmatprep.subr.mxu0 0.0
        %1193 = vmatpush1.msra.mxu0 0.0
        %1194 = vmatprep.subr.mxu0 0.0
        %1195 = vmatpush1.msra.mxu0 0.0
        %1196 = vmatprep.subr.mxu0 0.0
        %1197 = vmatpush1.msra.mxu0 0.0
        %1198 = vmatprep.subr.mxu0 0.0
        %1199 = vmatpush1.msra.mxu0 0.0
        %1200 = vmatprep.subr.mxu0 0.0
        %1201 = vmatpush1.msra.mxu0 0.0
        %1202 = vmatprep.subr.mxu0 0.0
        %1203 = vmatpush1.msra.mxu0 0.0
        %1204 = vmatprep.subr.mxu0 0.0
        %1205 = vmatpush1.msra.mxu0 0.0
        %1206 = vmatprep.subr.mxu0 0.0
        %1207 = vmatpush1.msra.mxu0 0.0
        %1208 = vmatprep.subr.mxu0 0.0
        %1209 = vmatpush1.msra.mxu0 0.0
        %1210 = vmatprep.subr.mxu0 0.0
        %1211 = vmatpush1.msra.mxu0 0.0
        %1212 = vmatprep.mubr.f32.mxu0 0.0
        %1213 = vmatmul.mubr.f32.gmra.mrb[0].mxu0 %v1143
        %v1214 = vpop.f32.mrb[0].mxu0
        %v1215 = vadd.f32 0.0, %v1214
        %v1216 = vpop.f32.mrb[0].mxu0
        %1217 = vmatprep.mubr.f32.mxu0 0.0
        %1218 = vmatmul.mubr.f32.gmra.mrb[0].mxu0 %v1146
        %v1219 = vpop.f32.mrb[0].mxu0
        %v1220 = vadd.f32 0.0, %v1219
        %v1221 = vpop.f32.mrb[0].mxu0
        %1222 = vdwg.mxu0
        %v1223 = vadd.f32 %v1135, %v1215
        %v1224 = vadd.f32 %v1136, %v1220
        %v1225 = vld [vmem:[%s5] sm:$0x1]
        %v1226 = vlaneseq
        %v1227 = vshrl.u32 %v1226, 7
        %v1228 = vsub.s32 0, %v1227
        %v1229 = vrot.slane %v1225, %v1228
        %v1230 = vadd.f32 %v1223, %v1229
        %v1231 = vadd.f32 %v1224, %v1229
        %v1232 = vmax.f32 %v1230, 0.0
        %v1233 = vmax.f32 %v1231, 0.0
        %v1234 = vld [vmem:[%s5 + $0x1] sm:$0x1]
        %v1235 = vlaneseq
        %v1236 = vshrl.u32 %v1235, 7
        %v1237 = vsub.s32 0, %v1236
        %v1238 = vrot.slane %v1234, %v1237
        %v1239 = vadd.f32 %v1232, %v1238
        %v1240 = vadd.f32 %v1233, %v1238
        %1241 = vst.msk [vmem:[#allocation2] sm:$0xff] %vm592, 0.0
        %1242 = vst.msk [vmem:[#allocation2 + $0x8] sm:$0xff] %vm592, 0.0
        %1243 = vst.msk [vmem:[#allocation2 + $0x10] sm:$0x3f] %vm785, 0.0
        %1244 = vst.msk [vmem:[#allocation2 + $0x2] sm:$0xff] %vm592, %v1239
        %1245 = vst.msk [vmem:[#allocation2 + $0xa] sm:$0xff] %vm592, %v1240
        %v1246 = vld [vmem:[#allocation2] sm:$0xff]
        %v1247 = vld [vmem:[#allocation2 + $0x8] sm:$0xff]
        %v1248 = vld [vmem:[%s6] sm:$0xff]
        %v1249 = vld [vmem:[%s6 + $0x8] sm:$0xff]
        %v1250 = vld [vmem:[%s6 + $0x10] sm:$0xff]
        %v1251 = vld [vmem:[%s6 + $0x18] sm:$0xff]
        %v1252 = vld [vmem:[%s6 + $0x20] sm:$0xff]
        %v1253 = vld [vmem:[%s6 + $0x28] sm:$0xff]
        %v1254 = vld [vmem:[%s6 + $0x30] sm:$0xff]
        %v1255 = vld [vmem:[%s6 + $0x38] sm:$0xff]
        %v1256 = vld [vmem:[#allocation2 + $0x2] sm:$0xff]
        %v1257 = vld [vmem:[#allocation2 + $0xa] sm:$0xff]
        %v1258 = vld [vmem:[%s6 + $0x40] sm:$0xff]
        %v1259 = vld [vmem:[%s6 + $0x48] sm:$0xff]
        %v1260 = vld [vmem:[%s6 + $0x50] sm:$0xff]
        %v1261 = vld [vmem:[%s6 + $0x58] sm:$0xff]
        %v1262 = vld [vmem:[%s6 + $0x60] sm:$0xff]
        %v1263 = vld [vmem:[%s6 + $0x68] sm:$0xff]
        %v1264 = vld [vmem:[%s6 + $0x70] sm:$0xff]
        %v1265 = vld [vmem:[%s6 + $0x78] sm:$0xff]
        %v1267 = vsel %vm592, %v1256, 0
        %v1270 = vsel %vm592, %v1257, 0
        %1272 = vmatprep.subr.mxu0 0.0
        %1273 = vmatpush1.msra.mxu0 %v1258
        %1274 = vmatprep.subr.mxu0 0.0
        %1275 = vmatpush1.msra.mxu0 %v1259
        %1276 = vmatprep.subr.mxu0 0.0
        %1277 = vmatpush1.msra.mxu0 %v1260
        %1278 = vmatprep.subr.mxu0 0.0
        %1279 = vmatpush1.msra.mxu0 %v1261
        %1280 = vmatprep.subr.mxu0 0.0
        %1281 = vmatpush1.msra.mxu0 %v1262
        %1282 = vmatprep.subr.mxu0 0.0
        %1283 = vmatpush1.msra.mxu0 %v1263
        %1284 = vmatprep.subr.mxu0 0.0
        %1285 = vmatpush1.msra.mxu0 %v1264
        %1286 = vmatprep.subr.mxu0 0.0
        %1287 = vmatpush1.msra.mxu0 %v1265
        %1288 = vmatprep.subr.mxu0 0.0
        %1289 = vmatpush1.msra.mxu0 0.0
        %1290 = vmatprep.subr.mxu0 0.0
        %1291 = vmatpush1.msra.mxu0 0.0
        %1292 = vmatprep.subr.mxu0 0.0
        %1293 = vmatpush1.msra.mxu0 0.0
        %1294 = vmatprep.subr.mxu0 0.0
        %1295 = vmatpush1.msra.mxu0 0.0
        %1296 = vmatprep.subr.mxu0 0.0
        %1297 = vmatpush1.msra.mxu0 0.0
        %1298 = vmatprep.subr.mxu0 0.0
        %1299 = vmatpush1.msra.mxu0 0.0
        %1300 = vmatprep.subr.mxu0 0.0
        %1301 = vmatpush1.msra.mxu0 0.0
        %1302 = vmatprep.subr.mxu0 0.0
        %1303 = vmatpush1.msra.mxu0 0.0
        %1304 = vmatprep.subr.mxu0 0.0
        %1305 = vmatpush1.msra.mxu0 0.0
        %1306 = vmatprep.subr.mxu0 0.0
        %1307 = vmatpush1.msra.mxu0 0.0
        %1308 = vmatprep.subr.mxu0 0.0
        %1309 = vmatpush1.msra.mxu0 0.0
        %1310 = vmatprep.subr.mxu0 0.0
        %1311 = vmatpush1.msra.mxu0 0.0
        %1312 = vmatprep.subr.mxu0 0.0
        %1313 = vmatpush1.msra.mxu0 0.0
        %1314 = vmatprep.subr.mxu0 0.0
        %1315 = vmatpush1.msra.mxu0 0.0
        %1316 = vmatprep.subr.mxu0 0.0
        %1317 = vmatpush1.msra.mxu0 0.0
        %1318 = vmatprep.subr.mxu0 0.0
        %1319 = vmatpush1.msra.mxu0 0.0
        %1320 = vmatprep.subr.mxu0 0.0
        %1321 = vmatpush1.msra.mxu0 0.0
        %1322 = vmatprep.subr.mxu0 0.0
        %1323 = vmatpush1.msra.mxu0 0.0
        %1324 = vmatprep.subr.mxu0 0.0
        %1325 = vmatpush1.msra.mxu0 0.0
        %1326 = vmatprep.subr.mxu0 0.0
        %1327 = vmatpush1.msra.mxu0 0.0
        %1328 = vmatprep.subr.mxu0 0.0
        %1329 = vmatpush1.msra.mxu0 0.0
        %1330 = vmatprep.subr.mxu0 0.0
        %1331 = vmatpush1.msra.mxu0 0.0
        %1332 = vmatprep.subr.mxu0 0.0
        %1333 = vmatpush1.msra.mxu0 0.0
        %1334 = vmatprep.subr.mxu0 0.0
        %1335 = vmatpush1.msra.mxu0 0.0
        %1336 = vmatprep.mubr.f32.mxu0 0.0
        %1337 = vmatmul.mubr.f32.gmra.mrb[0].mxu0 %v1267
        %v1338 = vpop.f32.mrb[0].mxu0
        %v1339 = vadd.f32 0.0, %v1338
        %v1340 = vpop.f32.mrb[0].mxu0
        %1341 = vmatprep.mubr.f32.mxu0 0.0
        %1342 = vmatmul.mubr.f32.gmra.mrb[0].mxu0 %v1270
        %v1343 = vpop.f32.mrb[0].mxu0
        %v1344 = vadd.f32 0.0, %v1343
        %v1345 = vpop.f32.mrb[0].mxu0
        %1346 = vdwg.mxu0
        %v1348 = vsel %vm592, %v1246, 0
        %v1351 = vsel %vm592, %v1247, 0
        %1353 = vmatprep.subr.mxu0 0.0
        %1354 = vmatpush1.msra.mxu0 %v1248
        %1355 = vmatprep.subr.mxu0 0.0
        %1356 = vmatpush1.msra.mxu0 %v1249
        %1357 = vmatprep.subr.mxu0 0.0
        %1358 = vmatpush1.msra.mxu0 %v1250
        %1359 = vmatprep.subr.mxu0 0.0
        %1360 = vmatpush1.msra.mxu0 %v1251
        %1361 = vmatprep.subr.mxu0 0.0
        %1362 = vmatpush1.msra.mxu0 %v1252
        %1363 = vmatprep.subr.mxu0 0.0
        %1364 = vmatpush1.msra.mxu0 %v1253
        %1365 = vmatprep.subr.mxu0 0.0
        %1366 = vmatpush1.msra.mxu0 %v1254
        %1367 = vmatprep.subr.mxu0 0.0
        %1368 = vmatpush1.msra.mxu0 %v1255
        %1369 = vmatprep.subr.mxu0 0.0
        %1370 = vmatpush1.msra.mxu0 0.0
        %1371 = vmatprep.subr.mxu0 0.0
        %1372 = vmatpush1.msra.mxu0 0.0
        %1373 = vmatprep.subr.mxu0 0.0
        %1374 = vmatpush1.msra.mxu0 0.0
        %1375 = vmatprep.subr.mxu0 0.0
        %1376 = vmatpush1.msra.mxu0 0.0
        %1377 = vmatprep.subr.mxu0 0.0
        %1378 = vmatpush1.msra.mxu0 0.0
        %1379 = vmatprep.subr.mxu0 0.0
        %1380 = vmatpush1.msra.mxu0 0.0
        %1381 = vmatprep.subr.mxu0 0.0
        %1382 = vmatpush1.msra.mxu0 0.0
        %1383 = vmatprep.subr.mxu0 0.0
        %1384 = vmatpush1.msra.mxu0 0.0
        %1385 = vmatprep.subr.mxu0 0.0
        %1386 = vmatpush1.msra.mxu0 0.0
        %1387 = vmatprep.subr.mxu0 0.0
        %1388 = vmatpush1.msra.mxu0 0.0
        %1389 = vmatprep.subr.mxu0 0.0
        %1390 = vmatpush1.msra.mxu0 0.0
        %1391 = vmatprep.subr.mxu0 0.0
        %1392 = vmatpush1.msra.mxu0 0.0
        %1393 = vmatprep.subr.mxu0 0.0
        %1394 = vmatpush1.msra.mxu0 0.0
        %1395 = vmatprep.subr.mxu0 0.0
        %1396 = vmatpush1.msra.mxu0 0.0
        %1397 = vmatprep.subr.mxu0 0.0
        %1398 = vmatpush1.msra.mxu0 0.0
        %1399 = vmatprep.subr.mxu0 0.0
        %1400 = vmatpush1.msra.mxu0 0.0
        %1401 = vmatprep.subr.mxu0 0.0
        %1402 = vmatpush1.msra.mxu0 0.0
        %1403 = vmatprep.subr.mxu0 0.0
        %1404 = vmatpush1.msra.mxu0 0.0
        %1405 = vmatprep.subr.mxu0 0.0
        %1406 = vmatpush1.msra.mxu0 0.0
        %1407 = vmatprep.subr.mxu0 0.0
        %1408 = vmatpush1.msra.mxu0 0.0
        %1409 = vmatprep.subr.mxu0 0.0
        %1410 = vmatpush1.msra.mxu0 0.0
        %1411 = vmatprep.subr.mxu0 0.0
        %1412 = vmatpush1.msra.mxu0 0.0
        %1413 = vmatprep.subr.mxu0 0.0
        %1414 = vmatpush1.msra.mxu0 0.0
        %1415 = vmatprep.subr.mxu0 0.0
        %1416 = vmatpush1.msra.mxu0 0.0
        %1417 = vmatprep.mubr.f32.mxu0 0.0
        %1418 = vmatmul.mubr.f32.gmra.mrb[0].mxu0 %v1348
        %v1419 = vpop.f32.mrb[0].mxu0
        %v1420 = vadd.f32 %v1339, %v1419
        %v1421 = vpop.f32.mrb[0].mxu0
        %1422 = vmatprep.mubr.f32.mxu0 0.0
        %1423 = vmatmul.mubr.f32.gmra.mrb[0].mxu0 %v1351
        %v1424 = vpop.f32.mrb[0].mxu0
        %v1425 = vadd.f32 %v1344, %v1424
        %v1426 = vpop.f32.mrb[0].mxu0
        %1427 = vdwg.mxu0
        %v1428 = vld [vmem:[#allocation2 + $0x4] sm:$0xff]
        %v1429 = vld [vmem:[#allocation2 + $0xc] sm:$0xff]
        %v1430 = vld [vmem:[%s6 + $0x80] sm:$0xff]
        %v1431 = vld [vmem:[%s6 + $0x88] sm:$0xff]
        %v1432 = vld [vmem:[%s6 + $0x90] sm:$0xff]
        %v1433 = vld [vmem:[%s6 + $0x98] sm:$0xff]
        %v1434 = vld [vmem:[%s6 + $0xa0] sm:$0xff]
        %v1435 = vld [vmem:[%s6 + $0xa8] sm:$0xff]
        %v1436 = vld [vmem:[%s6 + $0xb0] sm:$0xff]
        %v1437 = vld [vmem:[%s6 + $0xb8] sm:$0xff]
        %v1439 = vsel %vm592, %v1428, 0
        %v1442 = vsel %vm592, %v1429, 0
        %1444 = vmatprep.subr.mxu0 0.0
        %1445 = vmatpush1.msra.mxu0 %v1430
        %1446 = vmatprep.subr.mxu0 0.0
        %1447 = vmatpush1.msra.mxu0 %v1431
        %1448 = vmatprep.subr.mxu0 0.0
        %1449 = vmatpush1.msra.mxu0 %v1432
        %1450 = vmatprep.subr.mxu0 0.0
        %1451 = vmatpush1.msra.mxu0 %v1433
        %1452 = vmatprep.subr.mxu0 0.0
        %1453 = vmatpush1.msra.mxu0 %v1434
        %1454 = vmatprep.subr.mxu0 0.0
        %1455 = vmatpush1.msra.mxu0 %v1435
        %1456 = vmatprep.subr.mxu0 0.0
        %1457 = vmatpush1.msra.mxu0 %v1436
        %1458 = vmatprep.subr.mxu0 0.0
        %1459 = vmatpush1.msra.mxu0 %v1437
        %1460 = vmatprep.subr.mxu0 0.0
        %1461 = vmatpush1.msra.mxu0 0.0
        %1462 = vmatprep.subr.mxu0 0.0
        %1463 = vmatpush1.msra.mxu0 0.0
        %1464 = vmatprep.subr.mxu0 0.0
        %1465 = vmatpush1.msra.mxu0 0.0
        %1466 = vmatprep.subr.mxu0 0.0
        %1467 = vmatpush1.msra.mxu0 0.0
        %1468 = vmatprep.subr.mxu0 0.0
        %1469 = vmatpush1.msra.mxu0 0.0
        %1470 = vmatprep.subr.mxu0 0.0
        %1471 = vmatpush1.msra.mxu0 0.0
        %1472 = vmatprep.subr.mxu0 0.0
        %1473 = vmatpush1.msra.mxu0 0.0
        %1474 = vmatprep.subr.mxu0 0.0
        %1475 = vmatpush1.msra.mxu0 0.0
        %1476 = vmatprep.subr.mxu0 0.0
        %1477 = vmatpush1.msra.mxu0 0.0
        %1478 = vmatprep.subr.mxu0 0.0
        %1479 = vmatpush1.msra.mxu0 0.0
        %1480 = vmatprep.subr.mxu0 0.0
        %1481 = vmatpush1.msra.mxu0 0.0
        %1482 = vmatprep.subr.mxu0 0.0
        %1483 = vmatpush1.msra.mxu0 0.0
        %1484 = vmatprep.subr.mxu0 0.0
        %1485 = vmatpush1.msra.mxu0 0.0
        %1486 = vmatprep.subr.mxu0 0.0
        %1487 = vmatpush1.msra.mxu0 0.0
        %1488 = vmatprep.subr.mxu0 0.0
        %1489 = vmatpush1.msra.mxu0 0.0
        %1490 = vmatprep.subr.mxu0 0.0
        %1491 = vmatpush1.msra.mxu0 0.0
        %1492 = vmatprep.subr.mxu0 0.0
        %1493 = vmatpush1.msra.mxu0 0.0
        %1494 = vmatprep.subr.mxu0 0.0
        %1495 = vmatpush1.msra.mxu0 0.0
        %1496 = vmatprep.subr.mxu0 0.0
        %1497 = vmatpush1.msra.mxu0 0.0
        %1498 = vmatprep.subr.mxu0 0.0
        %1499 = vmatpush1.msra.mxu0 0.0
        %1500 = vmatprep.subr.mxu0 0.0
        %1501 = vmatpush1.msra.mxu0 0.0
        %1502 = vmatprep.subr.mxu0 0.0
        %1503 = vmatpush1.msra.mxu0 0.0
        %1504 = vmatprep.subr.mxu0 0.0
        %1505 = vmatpush1.msra.mxu0 0.0
        %1506 = vmatprep.subr.mxu0 0.0
        %1507 = vmatpush1.msra.mxu0 0.0
        %1508 = vmatprep.mubr.f32.mxu0 0.0
        %1509 = vmatmul.mubr.f32.gmra.mrb[0].mxu0 %v1439
        %v1510 = vpop.f32.mrb[0].mxu0
        %v1511 = vadd.f32 0.0, %v1510
        %v1512 = vpop.f32.mrb[0].mxu0
        %1513 = vmatprep.mubr.f32.mxu0 0.0
        %1514 = vmatmul.mubr.f32.gmra.mrb[0].mxu0 %v1442
        %v1515 = vpop.f32.mrb[0].mxu0
        %v1516 = vadd.f32 0.0, %v1515
        %v1517 = vpop.f32.mrb[0].mxu0
        %1518 = vdwg.mxu0
        %v1519 = vadd.f32 %v1420, %v1511
        %v1520 = vadd.f32 %v1425, %v1516
        %v1521 = vld [vmem:[%s7] sm:$0x1]
        %v1522 = vlaneseq
        %v1523 = vshrl.u32 %v1522, 7
        %v1524 = vsub.s32 0, %v1523
        %v1525 = vrot.slane %v1521, %v1524
        %v1526 = vadd.f32 %v1519, %v1525
        %v1527 = vadd.f32 %v1520, %v1525
        %v1528 = vmax.f32 %v1526, 0.0
        %v1529 = vmax.f32 %v1527, 0.0
        %v1530 = vld [vmem:[%s7 + $0x1] sm:$0x1]
        %v1531 = vlaneseq
        %v1532 = vshrl.u32 %v1531, 7
        %v1533 = vsub.s32 0, %v1532
        %v1534 = vrot.slane %v1530, %v1533
        %v1535 = vadd.f32 %v1528, %v1534
        %v1536 = vadd.f32 %v1529, %v1534
        %1537 = vst.msk [vmem:[#allocation2] sm:$0xff] %vm592, 0.0
        %1538 = vst.msk [vmem:[#allocation2 + $0x8] sm:$0xff] %vm592, 0.0
        %1539 = vst.msk [vmem:[#allocation2 + $0x10] sm:$0x3f] %vm785, 0.0
        %1540 = vst.msk [vmem:[#allocation2 + $0x3] sm:$0xff] %vm592, %v1535
        %1541 = vst.msk [vmem:[#allocation2 + $0xb] sm:$0xff] %vm592, %v1536
        %v1542 = vld [vmem:[#allocation2] sm:$0xff]
        %v1543 = vld [vmem:[#allocation2 + $0x8] sm:$0xff]
        %v1544 = vld [vmem:[%s8] sm:$0xff]
        %v1545 = vld [vmem:[%s8 + $0x8] sm:$0xff]
        %v1546 = vld [vmem:[%s8 + $0x10] sm:$0xff]
        %v1547 = vld [vmem:[%s8 + $0x18] sm:$0xff]
        %v1548 = vld [vmem:[%s8 + $0x20] sm:$0xff]
        %v1549 = vld [vmem:[%s8 + $0x28] sm:$0xff]
        %v1550 = vld [vmem:[%s8 + $0x30] sm:$0xff]
        %v1551 = vld [vmem:[%s8 + $0x38] sm:$0xff]
        %v1552 = vld [vmem:[#allocation2 + $0x3] sm:$0xff]
        %v1553 = vld [vmem:[#allocation2 + $0xb] sm:$0xff]
        %v1554 = vld [vmem:[%s8 + $0x40] sm:$0xff]
        %v1555 = vld [vmem:[%s8 + $0x48] sm:$0xff]
        %v1556 = vld [vmem:[%s8 + $0x50] sm:$0xff]
        %v1557 = vld [vmem:[%s8 + $0x58] sm:$0xff]
        %v1558 = vld [vmem:[%s8 + $0x60] sm:$0xff]
        %v1559 = vld [vmem:[%s8 + $0x68] sm:$0xff]
        %v1560 = vld [vmem:[%s8 + $0x70] sm:$0xff]
        %v1561 = vld [vmem:[%s8 + $0x78] sm:$0xff]
        %v1563 = vsel %vm592, %v1552, 0
        %v1566 = vsel %vm592, %v1553, 0
        %1568 = vmatprep.subr.mxu0 0.0
        %1569 = vmatpush1.msra.mxu0 %v1554
        %1570 = vmatprep.subr.mxu0 0.0
        %1571 = vmatpush1.msra.mxu0 %v1555
        %1572 = vmatprep.subr.mxu0 0.0
        %1573 = vmatpush1.msra.mxu0 %v1556
        %1574 = vmatprep.subr.mxu0 0.0
        %1575 = vmatpush1.msra.mxu0 %v1557
        %1576 = vmatprep.subr.mxu0 0.0
        %1577 = vmatpush1.msra.mxu0 %v1558
        %1578 = vmatprep.subr.mxu0 0.0
        %1579 = vmatpush1.msra.mxu0 %v1559
        %1580 = vmatprep.subr.mxu0 0.0
        %1581 = vmatpush1.msra.mxu0 %v1560
        %1582 = vmatprep.subr.mxu0 0.0
        %1583 = vmatpush1.msra.mxu0 %v1561
        %1584 = vmatprep.subr.mxu0 0.0
        %1585 = vmatpush1.msra.mxu0 0.0
        %1586 = vmatprep.subr.mxu0 0.0
        %1587 = vmatpush1.msra.mxu0 0.0
        %1588 = vmatprep.subr.mxu0 0.0
        %1589 = vmatpush1.msra.mxu0 0.0
        %1590 = vmatprep.subr.mxu0 0.0
        %1591 = vmatpush1.msra.mxu0 0.0
        %1592 = vmatprep.subr.mxu0 0.0
        %1593 = vmatpush1.msra.mxu0 0.0
        %1594 = vmatprep.subr.mxu0 0.0
        %1595 = vmatpush1.msra.mxu0 0.0
        %1596 = vmatprep.subr.mxu0 0.0
        %1597 = vmatpush1.msra.mxu0 0.0
        %1598 = vmatprep.subr.mxu0 0.0
        %1599 = vmatpush1.msra.mxu0 0.0
        %1600 = vmatprep.subr.mxu0 0.0
        %1601 = vmatpush1.msra.mxu0 0.0
        %1602 = vmatprep.subr.mxu0 0.0
        %1603 = vmatpush1.msra.mxu0 0.0
        %1604 = vmatprep.subr.mxu0 0.0
        %1605 = vmatpush1.msra.mxu0 0.0
        %1606 = vmatprep.subr.mxu0 0.0
        %1607 = vmatpush1.msra.mxu0 0.0
        %1608 = vmatprep.subr.mxu0 0.0
        %1609 = vmatpush1.msra.mxu0 0.0
        %1610 = vmatprep.subr.mxu0 0.0
        %1611 = vmatpush1.msra.mxu0 0.0
        %1612 = vmatprep.subr.mxu0 0.0
        %1613 = vmatpush1.msra.mxu0 0.0
        %1614 = vmatprep.subr.mxu0 0.0
        %1615 = vmatpush1.msra.mxu0 0.0
        %1616 = vmatprep.subr.mxu0 0.0
        %1617 = vmatpush1.msra.mxu0 0.0
        %1618 = vmatprep.subr.mxu0 0.0
        %1619 = vmatpush1.msra.mxu0 0.0
        %1620 = vmatprep.subr.mxu0 0.0
        %1621 = vmatpush1.msra.mxu0 0.0
        %1622 = vmatprep.subr.mxu0 0.0
        %1623 = vmatpush1.msra.mxu0 0.0
        %1624 = vmatprep.subr.mxu0 0.0
        %1625 = vmatpush1.msra.mxu0 0.0
        %1626 = vmatprep.subr.mxu0 0.0
        %1627 = vmatpush1.msra.mxu0 0.0
        %1628 = vmatprep.subr.mxu0 0.0
        %1629 = vmatpush1.msra.mxu0 0.0
        %1630 = vmatprep.subr.mxu0 0.0
        %1631 = vmatpush1.msra.mxu0 0.0
        %1632 = vmatprep.mubr.f32.mxu0 0.0
        %1633 = vmatmul.mubr.f32.gmra.mrb[0].mxu0 %v1563
        %v1634 = vpop.f32.mrb[0].mxu0
        %v1635 = vadd.f32 0.0, %v1634
        %v1636 = vpop.f32.mrb[0].mxu0
        %1637 = vmatprep.mubr.f32.mxu0 0.0
        %1638 = vmatmul.mubr.f32.gmra.mrb[0].mxu0 %v1566
        %v1639 = vpop.f32.mrb[0].mxu0
        %v1640 = vadd.f32 0.0, %v1639
        %v1641 = vpop.f32.mrb[0].mxu0
        %1642 = vdwg.mxu0
        %v1644 = vsel %vm592, %v1542, 0
        %v1647 = vsel %vm592, %v1543, 0
        %1649 = vmatprep.subr.mxu0 0.0
        %1650 = vmatpush1.msra.mxu0 %v1544
        %1651 = vmatprep.subr.mxu0 0.0
        %1652 = vmatpush1.msra.mxu0 %v1545
        %1653 = vmatprep.subr.mxu0 0.0
        %1654 = vmatpush1.msra.mxu0 %v1546
        %1655 = vmatprep.subr.mxu0 0.0
        %1656 = vmatpush1.msra.mxu0 %v1547
        %1657 = vmatprep.subr.mxu0 0.0
        %1658 = vmatpush1.msra.mxu0 %v1548
        %1659 = vmatprep.subr.mxu0 0.0
        %1660 = vmatpush1.msra.mxu0 %v1549
        %1661 = vmatprep.subr.mxu0 0.0
        %1662 = vmatpush1.msra.mxu0 %v1550
        %1663 = vmatprep.subr.mxu0 0.0
        %1664 = vmatpush1.msra.mxu0 %v1551
        %1665 = vmatprep.subr.mxu0 0.0
        %1666 = vmatpush1.msra.mxu0 0.0
        %1667 = vmatprep.subr.mxu0 0.0
        %1668 = vmatpush1.msra.mxu0 0.0
        %1669 = vmatprep.subr.mxu0 0.0
        %1670 = vmatpush1.msra.mxu0 0.0
        %1671 = vmatprep.subr.mxu0 0.0
        %1672 = vmatpush1.msra.mxu0 0.0
        %1673 = vmatprep.subr.mxu0 0.0
        %1674 = vmatpush1.msra.mxu0 0.0
        %1675 = vmatprep.subr.mxu0 0.0
        %1676 = vmatpush1.msra.mxu0 0.0
        %1677 = vmatprep.subr.mxu0 0.0
        %1678 = vmatpush1.msra.mxu0 0.0
        %1679 = vmatprep.subr.mxu0 0.0
        %1680 = vmatpush1.msra.mxu0 0.0
        %1681 = vmatprep.subr.mxu0 0.0
        %1682 = vmatpush1.msra.mxu0 0.0
        %1683 = vmatprep.subr.mxu0 0.0
        %1684 = vmatpush1.msra.mxu0 0.0
        %1685 = vmatprep.subr.mxu0 0.0
        %1686 = vmatpush1.msra.mxu0 0.0
        %1687 = vmatprep.subr.mxu0 0.0
        %1688 = vmatpush1.msra.mxu0 0.0
        %1689 = vmatprep.subr.mxu0 0.0
        %1690 = vmatpush1.msra.mxu0 0.0
        %1691 = vmatprep.subr.mxu0 0.0
        %1692 = vmatpush1.msra.mxu0 0.0
        %1693 = vmatprep.subr.mxu0 0.0
        %1694 = vmatpush1.msra.mxu0 0.0
        %1695 = vmatprep.subr.mxu0 0.0
        %1696 = vmatpush1.msra.mxu0 0.0
        %1697 = vmatprep.subr.mxu0 0.0
        %1698 = vmatpush1.msra.mxu0 0.0
        %1699 = vmatprep.subr.mxu0 0.0
        %1700 = vmatpush1.msra.mxu0 0.0
        %1701 = vmatprep.subr.mxu0 0.0
        %1702 = vmatpush1.msra.mxu0 0.0
        %1703 = vmatprep.subr.mxu0 0.0
        %1704 = vmatpush1.msra.mxu0 0.0
        %1705 = vmatprep.subr.mxu0 0.0
        %1706 = vmatpush1.msra.mxu0 0.0
        %1707 = vmatprep.subr.mxu0 0.0
        %1708 = vmatpush1.msra.mxu0 0.0
        %1709 = vmatprep.subr.mxu0 0.0
        %1710 = vmatpush1.msra.mxu0 0.0
        %1711 = vmatprep.subr.mxu0 0.0
        %1712 = vmatpush1.msra.mxu0 0.0
        %1713 = vmatprep.mubr.f32.mxu0 0.0
        %1714 = vmatmul.mubr.f32.gmra.mrb[0].mxu0 %v1644
        %v1715 = vpop.f32.mrb[0].mxu0
        %v1716 = vadd.f32 %v1635, %v1715
        %v1717 = vpop.f32.mrb[0].mxu0
        %1718 = vmatprep.mubr.f32.mxu0 0.0
        %1719 = vmatmul.mubr.f32.gmra.mrb[0].mxu0 %v1647
        %v1720 = vpop.f32.mrb[0].mxu0
        %v1721 = vadd.f32 %v1640, %v1720
        %v1722 = vpop.f32.mrb[0].mxu0
        %1723 = vdwg.mxu0
        %v1724 = vld [vmem:[#allocation2 + $0x6] sm:$0xff]
        %v1725 = vld [vmem:[#allocation2 + $0xe] sm:$0xff]
        %v1726 = vld [vmem:[%s8 + $0x80] sm:$0xff]
        %v1727 = vld [vmem:[%s8 + $0x88] sm:$0xff]
        %v1728 = vld [vmem:[%s8 + $0x90] sm:$0xff]
        %v1729 = vld [vmem:[%s8 + $0x98] sm:$0xff]
        %v1730 = vld [vmem:[%s8 + $0xa0] sm:$0xff]
        %v1731 = vld [vmem:[%s8 + $0xa8] sm:$0xff]
        %v1732 = vld [vmem:[%s8 + $0xb0] sm:$0xff]
        %v1733 = vld [vmem:[%s8 + $0xb8] sm:$0xff]
        %v1735 = vsel %vm592, %v1724, 0
        %v1738 = vsel %vm592, %v1725, 0
        %1740 = vmatprep.subr.mxu0 0.0
        %1741 = vmatpush1.msra.mxu0 %v1726
        %1742 = vmatprep.subr.mxu0 0.0
        %1743 = vmatpush1.msra.mxu0 %v1727
        %1744 = vmatprep.subr.mxu0 0.0
        %1745 = vmatpush1.msra.mxu0 %v1728
        %1746 = vmatprep.subr.mxu0 0.0
        %1747 = vmatpush1.msra.mxu0 %v1729
        %1748 = vmatprep.subr.mxu0 0.0
        %1749 = vmatpush1.msra.mxu0 %v1730
        %1750 = vmatprep.subr.mxu0 0.0
        %1751 = vmatpush1.msra.mxu0 %v1731
        %1752 = vmatprep.subr.mxu0 0.0
        %1753 = vmatpush1.msra.mxu0 %v1732
        %1754 = vmatprep.subr.mxu0 0.0
        %1755 = vmatpush1.msra.mxu0 %v1733
        %1756 = vmatprep.subr.mxu0 0.0
        %1757 = vmatpush1.msra.mxu0 0.0
        %1758 = vmatprep.subr.mxu0 0.0
        %1759 = vmatpush1.msra.mxu0 0.0
        %1760 = vmatprep.subr.mxu0 0.0
        %1761 = vmatpush1.msra.mxu0 0.0
        %1762 = vmatprep.subr.mxu0 0.0
        %1763 = vmatpush1.msra.mxu0 0.0
        %1764 = vmatprep.subr.mxu0 0.0
        %1765 = vmatpush1.msra.mxu0 0.0
        %1766 = vmatprep.subr.mxu0 0.0
        %1767 = vmatpush1.msra.mxu0 0.0
        %1768 = vmatprep.subr.mxu0 0.0
        %1769 = vmatpush1.msra.mxu0 0.0
        %1770 = vmatprep.subr.mxu0 0.0
        %1771 = vmatpush1.msra.mxu0 0.0
        %1772 = vmatprep.subr.mxu0 0.0
        %1773 = vmatpush1.msra.mxu0 0.0
        %1774 = vmatprep.subr.mxu0 0.0
        %1775 = vmatpush1.msra.mxu0 0.0
        %1776 = vmatprep.subr.mxu0 0.0
        %1777 = vmatpush1.msra.mxu0 0.0
        %1778 = vmatprep.subr.mxu0 0.0
        %1779 = vmatpush1.msra.mxu0 0.0
        %1780 = vmatprep.subr.mxu0 0.0
        %1781 = vmatpush1.msra.mxu0 0.0
        %1782 = vmatprep.subr.mxu0 0.0
        %1783 = vmatpush1.msra.mxu0 0.0
        %1784 = vmatprep.subr.mxu0 0.0
        %1785 = vmatpush1.msra.mxu0 0.0
        %1786 = vmatprep.subr.mxu0 0.0
        %1787 = vmatpush1.msra.mxu0 0.0
        %1788 = vmatprep.subr.mxu0 0.0
        %1789 = vmatpush1.msra.mxu0 0.0
        %1790 = vmatprep.subr.mxu0 0.0
        %1791 = vmatpush1.msra.mxu0 0.0
        %1792 = vmatprep.subr.mxu0 0.0
        %1793 = vmatpush1.msra.mxu0 0.0
        %1794 = vmatprep.subr.mxu0 0.0
        %1795 = vmatpush1.msra.mxu0 0.0
        %1796 = vmatprep.subr.mxu0 0.0
        %1797 = vmatpush1.msra.mxu0 0.0
        %1798 = vmatprep.subr.mxu0 0.0
        %1799 = vmatpush1.msra.mxu0 0.0
        %1800 = vmatprep.subr.mxu0 0.0
        %1801 = vmatpush1.msra.mxu0 0.0
        %1802 = vmatprep.subr.mxu0 0.0
        %1803 = vmatpush1.msra.mxu0 0.0
        %1804 = vmatprep.mubr.f32.mxu0 0.0
        %1805 = vmatmul.mubr.f32.gmra.mrb[0].mxu0 %v1735
        %v1806 = vpop.f32.mrb[0].mxu0
        %v1807 = vadd.f32 0.0, %v1806
        %v1808 = vpop.f32.mrb[0].mxu0
        %1809 = vmatprep.mubr.f32.mxu0 0.0
        %1810 = vmatmul.mubr.f32.gmra.mrb[0].mxu0 %v1738
        %v1811 = vpop.f32.mrb[0].mxu0
        %v1812 = vadd.f32 0.0, %v1811
        %v1813 = vpop.f32.mrb[0].mxu0
        %1814 = vdwg.mxu0
        %v1815 = vadd.f32 %v1716, %v1807
        %v1816 = vadd.f32 %v1721, %v1812
        %v1817 = vld [vmem:[%s9] sm:$0x1]
        %v1818 = vlaneseq
        %v1819 = vshrl.u32 %v1818, 7
        %v1820 = vsub.s32 0, %v1819
        %v1821 = vrot.slane %v1817, %v1820
        %v1822 = vadd.f32 %v1815, %v1821
        %v1823 = vadd.f32 %v1816, %v1821
        %v1824 = vmax.f32 %v1822, 0.0
        %v1825 = vmax.f32 %v1823, 0.0
        %v1826 = vld [vmem:[%s9 + $0x1] sm:$0x1]
        %v1827 = vlaneseq
        %v1828 = vshrl.u32 %v1827, 7
        %v1829 = vsub.s32 0, %v1828
        %v1830 = vrot.slane %v1826, %v1829
        %v1831 = vadd.f32 %v1824, %v1830
        %v1832 = vadd.f32 %v1825, %v1830
        %v1833 = vld [vmem:[%s10] sm:$0xff]
        %v1834 = vld [vmem:[%s10 + $0x8] sm:$0xff]
        %v1835 = vld [vmem:[%s10 + $0x10] sm:$0xff]
        %v1836 = vld [vmem:[%s10 + $0x18] sm:$0xff]
        %v1837 = vld [vmem:[%s10 + $0x20] sm:$0xff]
        %v1838 = vld [vmem:[%s10 + $0x28] sm:$0xff]
        %v1839 = vld [vmem:[%s10 + $0x30] sm:$0xff]
        %v1840 = vld [vmem:[%s10 + $0x38] sm:$0xff]
        %v1841 = vld [vmem:[%s10 + $0x40] sm:$0xff]
        %v1842 = vld [vmem:[%s10 + $0x48] sm:$0xff]
        %v1843 = vld [vmem:[%s10 + $0x50] sm:$0xff]
        %v1844 = vld [vmem:[%s10 + $0x58] sm:$0xff]
        %v1845 = vld [vmem:[%s10 + $0x60] sm:$0xff]
        %v1846 = vld [vmem:[%s10 + $0x68] sm:$0xff]
        %v1847 = vld [vmem:[%s10 + $0x70] sm:$0xff]
        %v1848 = vld [vmem:[%s10 + $0x78] sm:$0xff]
        %v1850 = vsel %vm592, %v1535, 0
        %v1853 = vsel %vm592, %v1536, 0
        %1855 = vmatprep.subr.mxu0 0.0
        %1856 = vmatpush1.msra.mxu0 %v1841
        %1857 = vmatprep.subr.mxu0 0.0
        %1858 = vmatpush1.msra.mxu0 %v1842
        %1859 = vmatprep.subr.mxu0 0.0
        %1860 = vmatpush1.msra.mxu0 %v1843
        %1861 = vmatprep.subr.mxu0 0.0
        %1862 = vmatpush1.msra.mxu0 %v1844
        %1863 = vmatprep.subr.mxu0 0.0
        %1864 = vmatpush1.msra.mxu0 %v1845
        %1865 = vmatprep.subr.mxu0 0.0
        %1866 = vmatpush1.msra.mxu0 %v1846
        %1867 = vmatprep.subr.mxu0 0.0
        %1868 = vmatpush1.msra.mxu0 %v1847
        %1869 = vmatprep.subr.mxu0 0.0
        %1870 = vmatpush1.msra.mxu0 %v1848
        %1871 = vmatprep.subr.mxu0 0.0
        %1872 = vmatpush1.msra.mxu0 0.0
        %1873 = vmatprep.subr.mxu0 0.0
        %1874 = vmatpush1.msra.mxu0 0.0
        %1875 = vmatprep.subr.mxu0 0.0
        %1876 = vmatpush1.msra.mxu0 0.0
        %1877 = vmatprep.subr.mxu0 0.0
        %1878 = vmatpush1.msra.mxu0 0.0
        %1879 = vmatprep.subr.mxu0 0.0
        %1880 = vmatpush1.msra.mxu0 0.0
        %1881 = vmatprep.subr.mxu0 0.0
        %1882 = vmatpush1.msra.mxu0 0.0
        %1883 = vmatprep.subr.mxu0 0.0
        %1884 = vmatpush1.msra.mxu0 0.0
        %1885 = vmatprep.subr.mxu0 0.0
        %1886 = vmatpush1.msra.mxu0 0.0
        %1887 = vmatprep.subr.mxu0 0.0
        %1888 = vmatpush1.msra.mxu0 0.0
        %1889 = vmatprep.subr.mxu0 0.0
        %1890 = vmatpush1.msra.mxu0 0.0
        %1891 = vmatprep.subr.mxu0 0.0
        %1892 = vmatpush1.msra.mxu0 0.0
        %1893 = vmatprep.subr.mxu0 0.0
        %1894 = vmatpush1.msra.mxu0 0.0
        %1895 = vmatprep.subr.mxu0 0.0
        %1896 = vmatpush1.msra.mxu0 0.0
        %1897 = vmatprep.subr.mxu0 0.0
        %1898 = vmatpush1.msra.mxu0 0.0
        %1899 = vmatprep.subr.mxu0 0.0
        %1900 = vmatpush1.msra.mxu0 0.0
        %1901 = vmatprep.subr.mxu0 0.0
        %1902 = vmatpush1.msra.mxu0 0.0
        %1903 = vmatprep.subr.mxu0 0.0
        %1904 = vmatpush1.msra.mxu0 0.0
        %1905 = vmatprep.subr.mxu0 0.0
        %1906 = vmatpush1.msra.mxu0 0.0
        %1907 = vmatprep.subr.mxu0 0.0
        %1908 = vmatpush1.msra.mxu0 0.0
        %1909 = vmatprep.subr.mxu0 0.0
        %1910 = vmatpush1.msra.mxu0 0.0
        %1911 = vmatprep.subr.mxu0 0.0
        %1912 = vmatpush1.msra.mxu0 0.0
        %1913 = vmatprep.subr.mxu0 0.0
        %1914 = vmatpush1.msra.mxu0 0.0
        %1915 = vmatprep.subr.mxu0 0.0
        %1916 = vmatpush1.msra.mxu0 0.0
        %1917 = vmatprep.subr.mxu0 0.0
        %1918 = vmatpush1.msra.mxu0 0.0
        %1919 = vmatprep.mubr.f32.mxu0 0.0
        %1920 = vmatmul.mubr.f32.gmra.mrb[0].mxu0 %v1850
        %v1921 = vpop.f32.mrb[0].mxu0
        %v1922 = vadd.f32 0.0, %v1921
        %v1923 = vpop.f32.mrb[0].mxu0
        %1924 = vmatprep.mubr.f32.mxu0 0.0
        %1925 = vmatmul.mubr.f32.gmra.mrb[0].mxu0 %v1853
        %v1926 = vpop.f32.mrb[0].mxu0
        %v1927 = vadd.f32 0.0, %v1926
        %v1928 = vpop.f32.mrb[0].mxu0
        %1929 = vdwg.mxu0
        %v1931 = vsel %vm592, %v1239, 0
        %v1934 = vsel %vm592, %v1240, 0
        %1936 = vmatprep.subr.mxu0 0.0
        %1937 = vmatpush1.msra.mxu0 %v1833
        %1938 = vmatprep.subr.mxu0 0.0
        %1939 = vmatpush1.msra.mxu0 %v1834
        %1940 = vmatprep.subr.mxu0 0.0
        %1941 = vmatpush1.msra.mxu0 %v1835
        %1942 = vmatprep.subr.mxu0 0.0
        %1943 = vmatpush1.msra.mxu0 %v1836
        %1944 = vmatprep.subr.mxu0 0.0
        %1945 = vmatpush1.msra.mxu0 %v1837
        %1946 = vmatprep.subr.mxu0 0.0
        %1947 = vmatpush1.msra.mxu0 %v1838
        %1948 = vmatprep.subr.mxu0 0.0
        %1949 = vmatpush1.msra.mxu0 %v1839
        %1950 = vmatprep.subr.mxu0 0.0
        %1951 = vmatpush1.msra.mxu0 %v1840
        %1952 = vmatprep.subr.mxu0 0.0
        %1953 = vmatpush1.msra.mxu0 0.0
        %1954 = vmatprep.subr.mxu0 0.0
        %1955 = vmatpush1.msra.mxu0 0.0
        %1956 = vmatprep.subr.mxu0 0.0
        %1957 = vmatpush1.msra.mxu0 0.0
        %1958 = vmatprep.subr.mxu0 0.0
        %1959 = vmatpush1.msra.mxu0 0.0
        %1960 = vmatprep.subr.mxu0 0.0
        %1961 = vmatpush1.msra.mxu0 0.0
        %1962 = vmatprep.subr.mxu0 0.0
        %1963 = vmatpush1.msra.mxu0 0.0
        %1964 = vmatprep.subr.mxu0 0.0
        %1965 = vmatpush1.msra.mxu0 0.0
        %1966 = vmatprep.subr.mxu0 0.0
        %1967 = vmatpush1.msra.mxu0 0.0
        %1968 = vmatprep.subr.mxu0 0.0
        %1969 = vmatpush1.msra.mxu0 0.0
        %1970 = vmatprep.subr.mxu0 0.0
        %1971 = vmatpush1.msra.mxu0 0.0
        %1972 = vmatprep.subr.mxu0 0.0
        %1973 = vmatpush1.msra.mxu0 0.0
        %1974 = vmatprep.subr.mxu0 0.0
        %1975 = vmatpush1.msra.mxu0 0.0
        %1976 = vmatprep.subr.mxu0 0.0
        %1977 = vmatpush1.msra.mxu0 0.0
        %1978 = vmatprep.subr.mxu0 0.0
        %1979 = vmatpush1.msra.mxu0 0.0
        %1980 = vmatprep.subr.mxu0 0.0
        %1981 = vmatpush1.msra.mxu0 0.0
        %1982 = vmatprep.subr.mxu0 0.0
        %1983 = vmatpush1.msra.mxu0 0.0
        %1984 = vmatprep.subr.mxu0 0.0
        %1985 = vmatpush1.msra.mxu0 0.0
        %1986 = vmatprep.subr.mxu0 0.0
        %1987 = vmatpush1.msra.mxu0 0.0
        %1988 = vmatprep.subr.mxu0 0.0
        %1989 = vmatpush1.msra.mxu0 0.0
        %1990 = vmatprep.subr.mxu0 0.0
        %1991 = vmatpush1.msra.mxu0 0.0
        %1992 = vmatprep.subr.mxu0 0.0
        %1993 = vmatpush1.msra.mxu0 0.0
        %1994 = vmatprep.subr.mxu0 0.0
        %1995 = vmatpush1.msra.mxu0 0.0
        %1996 = vmatprep.subr.mxu0 0.0
        %1997 = vmatpush1.msra.mxu0 0.0
        %1998 = vmatprep.subr.mxu0 0.0
        %1999 = vmatpush1.msra.mxu0 0.0
        %2000 = vmatprep.mubr.f32.mxu0 0.0
        %2001 = vmatmul.mubr.f32.gmra.mrb[0].mxu0 %v1931
        %v2002 = vpop.f32.mrb[0].mxu0
        %v2003 = vadd.f32 %v1922, %v2002
        %v2004 = vpop.f32.mrb[0].mxu0
        %2005 = vmatprep.mubr.f32.mxu0 0.0
        %2006 = vmatmul.mubr.f32.gmra.mrb[0].mxu0 %v1934
        %v2007 = vpop.f32.mrb[0].mxu0
        %v2008 = vadd.f32 %v1927, %v2007
        %v2009 = vpop.f32.mrb[0].mxu0
        %2010 = vdwg.mxu0
        %v2011 = vld [vmem:[%s10 + $0x80] sm:$0xff]
        %v2012 = vld [vmem:[%s10 + $0x88] sm:$0xff]
        %v2013 = vld [vmem:[%s10 + $0x90] sm:$0xff]
        %v2014 = vld [vmem:[%s10 + $0x98] sm:$0xff]
        %v2015 = vld [vmem:[%s10 + $0xa0] sm:$0xff]
        %v2016 = vld [vmem:[%s10 + $0xa8] sm:$0xff]
        %v2017 = vld [vmem:[%s10 + $0xb0] sm:$0xff]
        %v2018 = vld [vmem:[%s10 + $0xb8] sm:$0xff]
        %v2020 = vsel %vm592, %v1831, 0
        %v2023 = vsel %vm592, %v1832, 0
        %2025 = vmatprep.subr.mxu0 0.0
        %2026 = vmatpush1.msra.mxu0 %v2011
        %2027 = vmatprep.subr.mxu0 0.0
        %2028 = vmatpush1.msra.mxu0 %v2012
        %2029 = vmatprep.subr.mxu0 0.0
        %2030 = vmatpush1.msra.mxu0 %v2013
        %2031 = vmatprep.subr.mxu0 0.0
        %2032 = vmatpush1.msra.mxu0 %v2014
        %2033 = vmatprep.subr.mxu0 0.0
        %2034 = vmatpush1.msra.mxu0 %v2015
        %2035 = vmatprep.subr.mxu0 0.0
        %2036 = vmatpush1.msra.mxu0 %v2016
        %2037 = vmatprep.subr.mxu0 0.0
        %2038 = vmatpush1.msra.mxu0 %v2017
        %2039 = vmatprep.subr.mxu0 0.0
        %2040 = vmatpush1.msra.mxu0 %v2018
        %2041 = vmatprep.subr.mxu0 0.0
        %2042 = vmatpush1.msra.mxu0 0.0
        %2043 = vmatprep.subr.mxu0 0.0
        %2044 = vmatpush1.msra.mxu0 0.0
        %2045 = vmatprep.subr.mxu0 0.0
        %2046 = vmatpush1.msra.mxu0 0.0
        %2047 = vmatprep.subr.mxu0 0.0
        %2048 = vmatpush1.msra.mxu0 0.0
        %2049 = vmatprep.subr.mxu0 0.0
        %2050 = vmatpush1.msra.mxu0 0.0
        %2051 = vmatprep.subr.mxu0 0.0
        %2052 = vmatpush1.msra.mxu0 0.0
        %2053 = vmatprep.subr.mxu0 0.0
        %2054 = vmatpush1.msra.mxu0 0.0
        %2055 = vmatprep.subr.mxu0 0.0
        %2056 = vmatpush1.msra.mxu0 0.0
        %2057 = vmatprep.subr.mxu0 0.0
        %2058 = vmatpush1.msra.mxu0 0.0
        %2059 = vmatprep.subr.mxu0 0.0
        %2060 = vmatpush1.msra.mxu0 0.0
        %2061 = vmatprep.subr.mxu0 0.0
        %2062 = vmatpush1.msra.mxu0 0.0
        %2063 = vmatprep.subr.mxu0 0.0
        %2064 = vmatpush1.msra.mxu0 0.0
        %2065 = vmatprep.subr.mxu0 0.0
        %2066 = vmatpush1.msra.mxu0 0.0
        %2067 = vmatprep.subr.mxu0 0.0
        %2068 = vmatpush1.msra.mxu0 0.0
        %2069 = vmatprep.subr.mxu0 0.0
        %2070 = vmatpush1.msra.mxu0 0.0
        %2071 = vmatprep.subr.mxu0 0.0
        %2072 = vmatpush1.msra.mxu0 0.0
        %2073 = vmatprep.subr.mxu0 0.0
        %2074 = vmatpush1.msra.mxu0 0.0
        %2075 = vmatprep.subr.mxu0 0.0
        %2076 = vmatpush1.msra.mxu0 0.0
        %2077 = vmatprep.subr.mxu0 0.0
        %2078 = vmatpush1.msra.mxu0 0.0
        %2079 = vmatprep.subr.mxu0 0.0
        %2080 = vmatpush1.msra.mxu0 0.0
        %2081 = vmatprep.subr.mxu0 0.0
        %2082 = vmatpush1.msra.mxu0 0.0
        %2083 = vmatprep.subr.mxu0 0.0
        %2084 = vmatpush1.msra.mxu0 0.0
        %2085 = vmatprep.subr.mxu0 0.0
        %2086 = vmatpush1.msra.mxu0 0.0
        %2087 = vmatprep.subr.mxu0 0.0
        %2088 = vmatpush1.msra.mxu0 0.0
        %2089 = vmatprep.mubr.f32.mxu0 0.0
        %2090 = vmatmul.mubr.f32.gmra.mrb[0].mxu0 %v2020
        %v2091 = vpop.f32.mrb[0].mxu0
        %v2092 = vadd.f32 0.0, %v2091
        %v2093 = vpop.f32.mrb[0].mxu0
        %2094 = vmatprep.mubr.f32.mxu0 0.0
        %2095 = vmatmul.mubr.f32.gmra.mrb[0].mxu0 %v2023
        %v2096 = vpop.f32.mrb[0].mxu0
        %v2097 = vadd.f32 0.0, %v2096
        %v2098 = vpop.f32.mrb[0].mxu0
        %2099 = vdwg.mxu0
        %v2100 = vadd.f32 %v2003, %v2092
        %v2101 = vadd.f32 %v2008, %v2097
        %v2102 = vld [vmem:[%s11] sm:$0x1]
        %v2103 = vlaneseq
        %v2104 = vshrl.u32 %v2103, 7
        %v2105 = vsub.s32 0, %v2104
        %v2106 = vrot.slane %v2102, %v2105
        %v2107 = vadd.f32 %v2100, %v2106
        %v2108 = vadd.f32 %v2101, %v2106
        %v2109 = vmax.f32 %v2107, 0.0
        %v2110 = vmax.f32 %v2108, 0.0
        %v2111 = vld [vmem:[%s11 + $0x1] sm:$0x1]
        %v2112 = vlaneseq
        %v2113 = vshrl.u32 %v2112, 7
        %v2114 = vsub.s32 0, %v2113
        %v2115 = vrot.slane %v2111, %v2114
        %v2116 = vadd.f32 %v2109, %v2115
        %v2117 = vadd.f32 %v2110, %v2115
        %v2118 = vld [vmem:[%s12] sm:$0xff]
        %v2119 = vld [vmem:[%s12 + $0x8] sm:$0xff]
        %v2120 = vld [vmem:[%s12 + $0x10] sm:$0xff]
        %v2121 = vld [vmem:[%s12 + $0x18] sm:$0xff]
        %v2122 = vld [vmem:[%s12 + $0x20] sm:$0xff]
        %v2123 = vld [vmem:[%s12 + $0x28] sm:$0xff]
        %v2124 = vld [vmem:[%s12 + $0x30] sm:$0xff]
        %v2125 = vld [vmem:[%s12 + $0x38] sm:$0xff]
        %v2126 = vld [vmem:[%s12 + $0x40] sm:$0xff]
        %v2127 = vld [vmem:[%s12 + $0x48] sm:$0xff]
        %v2128 = vld [vmem:[%s12 + $0x50] sm:$0xff]
        %v2129 = vld [vmem:[%s12 + $0x58] sm:$0xff]
        %v2130 = vld [vmem:[%s12 + $0x60] sm:$0xff]
        %v2131 = vld [vmem:[%s12 + $0x68] sm:$0xff]
        %v2132 = vld [vmem:[%s12 + $0x70] sm:$0xff]
        %v2133 = vld [vmem:[%s12 + $0x78] sm:$0xff]
        %v2134 = vld [vmem:[%s13] sm:$0x1]
        %v2136 = vlaneseq
        %v2137 = vshrl.u32 %v2136, 7
        %v2138 = vsub.s32 0, %v2137
        %v2139 = vrot.slane %v2134, %v2138
        %2141 = vmatprep.subr.mxu0 0.0
        %2142 = vmatpush1.msra.mxu0 %v2118
        %2143 = vmatprep.subr.mxu0 0.0
        %2144 = vmatpush1.msra.mxu0 %v2119
        %2145 = vmatprep.subr.mxu0 0.0
        %2146 = vmatpush1.msra.mxu0 %v2120
        %2147 = vmatprep.subr.mxu0 0.0
        %2148 = vmatpush1.msra.mxu0 %v2121
        %2149 = vmatprep.subr.mxu0 0.0
        %2150 = vmatpush1.msra.mxu0 %v2122
        %2151 = vmatprep.subr.mxu0 0.0
        %2152 = vmatpush1.msra.mxu0 %v2123
        %2153 = vmatprep.subr.mxu0 0.0
        %2154 = vmatpush1.msra.mxu0 %v2124
        %2155 = vmatprep.subr.mxu0 0.0
        %2156 = vmatpush1.msra.mxu0 %v2125
        %2157 = vmatprep.subr.mxu0 0.0
        %2158 = vmatpush1.msra.mxu0 %v2126
        %2159 = vmatprep.subr.mxu0 0.0
        %2160 = vmatpush1.msra.mxu0 %v2127
        %2161 = vmatprep.subr.mxu0 0.0
        %2162 = vmatpush1.msra.mxu0 %v2128
        %2163 = vmatprep.subr.mxu0 0.0
        %2164 = vmatpush1.msra.mxu0 %v2129
        %2165 = vmatprep.subr.mxu0 0.0
        %2166 = vmatpush1.msra.mxu0 %v2130
        %2167 = vmatprep.subr.mxu0 0.0
        %2168 = vmatpush1.msra.mxu0 %v2131
        %2169 = vmatprep.subr.mxu0 0.0
        %2170 = vmatpush1.msra.mxu0 %v2132
        %2171 = vmatprep.subr.mxu0 0.0
        %2172 = vmatpush1.msra.mxu0 %v2133
        %2173 = vmatprep.subr.mxu0 0.0
        %2174 = vmatpush1.msra.mxu0 0.0
        %2175 = vmatprep.subr.mxu0 0.0
        %2176 = vmatpush1.msra.mxu0 0.0
        %2177 = vmatprep.subr.mxu0 0.0
        %2178 = vmatpush1.msra.mxu0 0.0
        %2179 = vmatprep.subr.mxu0 0.0
        %2180 = vmatpush1.msra.mxu0 0.0
        %2181 = vmatprep.subr.mxu0 0.0
        %2182 = vmatpush1.msra.mxu0 0.0
        %2183 = vmatprep.subr.mxu0 0.0
        %2184 = vmatpush1.msra.mxu0 0.0
        %2185 = vmatprep.subr.mxu0 0.0
        %2186 = vmatpush1.msra.mxu0 0.0
        %2187 = vmatprep.subr.mxu0 0.0
        %2188 = vmatpush1.msra.mxu0 0.0
        %2189 = vmatprep.subr.mxu0 0.0
        %2190 = vmatpush1.msra.mxu0 0.0
        %2191 = vmatprep.subr.mxu0 0.0
        %2192 = vmatpush1.msra.mxu0 0.0
        %2193 = vmatprep.subr.mxu0 0.0
        %2194 = vmatpush1.msra.mxu0 0.0
        %2195 = vmatprep.subr.mxu0 0.0
        %2196 = vmatpush1.msra.mxu0 0.0
        %2197 = vmatprep.subr.mxu0 0.0
        %2198 = vmatpush1.msra.mxu0 0.0
        %2199 = vmatprep.subr.mxu0 0.0
        %2200 = vmatpush1.msra.mxu0 0.0
        %2201 = vmatprep.subr.mxu0 0.0
        %2202 = vmatpush1.msra.mxu0 0.0
        %2203 = vmatprep.subr.mxu0 0.0
        %2204 = vmatpush1.msra.mxu0 0.0
        %2205 = vmatprep.mubr.f32.mxu0 0.0
        %2206 = vmatmul.mubr.f32.gmra.mrb[0].mxu0 %v2116
        %v2207 = vpop.f32.mrb[0].mxu0
        %v2208 = vadd.f32 %v2139, %v2207
        %v2209 = vpop.f32.mrb[0].mxu0
        %2210 = vmatprep.mubr.f32.mxu0 0.0
        %2211 = vmatmul.mubr.f32.gmra.mrb[0].mxu0 %v2117
        %v2212 = vpop.f32.mrb[0].mxu0
        %v2213 = vadd.f32 %v2139, %v2212
        %v2214 = vpop.f32.mrb[0].mxu0
        %2215 = vdwg.mxu0
        %v2216 = vtanh.pop %v2208
        %v2217 = vtanh.pop %v2213
        %v2218 = vld [vmem:[%s14] sm:$0xff]
        %v2219 = vld [vmem:[%s14 + $0x8] sm:$0xff]
        %v2220 = vld [vmem:[%s14 + $0x10] sm:$0xff]
        %v2221 = vld [vmem:[%s14 + $0x18] sm:$0xff]
        %v2222 = vld [vmem:[%s14 + $0x20] sm:$0xff]
        %v2223 = vld [vmem:[%s14 + $0x28] sm:$0xff]
        %v2224 = vld [vmem:[%s14 + $0x30] sm:$0xff]
        %v2225 = vld [vmem:[%s14 + $0x38] sm:$0xff]
        %v2226 = vld [vmem:[%s15] sm:$0x1]
        %v2228 = vlaneseq
        %v2229 = vshrl.u32 %v2228, 7
        %v2230 = vsub.s32 0, %v2229
        %v2231 = vrot.slane %v2226, %v2230
        %v2234 = vsel %vm592, %v2216, 0
        %v2237 = vsel %vm592, %v2217, 0
        %2239 = vmatprep.subr.mxu0 0.0
        %2240 = vmatpush1.msra.mxu0 %v2218
        %2241 = vmatprep.subr.mxu0 0.0
        %2242 = vmatpush1.msra.mxu0 %v2219
        %2243 = vmatprep.subr.mxu0 0.0
        %2244 = vmatpush1.msra.mxu0 %v2220
        %2245 = vmatprep.subr.mxu0 0.0
        %2246 = vmatpush1.msra.mxu0 %v2221
        %2247 = vmatprep.subr.mxu0 0.0
        %2248 = vmatpush1.msra.mxu0 %v2222
        %2249 = vmatprep.subr.mxu0 0.0
        %2250 = vmatpush1.msra.mxu0 %v2223
        %2251 = vmatprep.subr.mxu0 0.0
        %2252 = vmatpush1.msra.mxu0 %v2224
        %2253 = vmatprep.subr.mxu0 0.0
        %2254 = vmatpush1.msra.mxu0 %v2225
        %2255 = vmatprep.subr.mxu0 0.0
        %2256 = vmatpush1.msra.mxu0 0.0
        %2257 = vmatprep.subr.mxu0 0.0
        %2258 = vmatpush1.msra.mxu0 0.0
        %2259 = vmatprep.subr.mxu0 0.0
        %2260 = vmatpush1.msra.mxu0 0.0
        %2261 = vmatprep.subr.mxu0 0.0
        %2262 = vmatpush1.msra.mxu0 0.0
        %2263 = vmatprep.subr.mxu0 0.0
        %2264 = vmatpush1.msra.mxu0 0.0
        %2265 = vmatprep.subr.mxu0 0.0
        %2266 = vmatpush1.msra.mxu0 0.0
        %2267 = vmatprep.subr.mxu0 0.0
        %2268 = vmatpush1.msra.mxu0 0.0
        %2269 = vmatprep.subr.mxu0 0.0
        %2270 = vmatpush1.msra.mxu0 0.0
        %2271 = vmatprep.subr.mxu0 0.0
        %2272 = vmatpush1.msra.mxu0 0.0
        %2273 = vmatprep.subr.mxu0 0.0
        %2274 = vmatpush1.msra.mxu0 0.0
        %2275 = vmatprep.subr.mxu0 0.0
        %2276 = vmatpush1.msra.mxu0 0.0
        %2277 = vmatprep.subr.mxu0 0.0
        %2278 = vmatpush1.msra.mxu0 0.0
        %2279 = vmatprep.subr.mxu0 0.0
        %2280 = vmatpush1.msra.mxu0 0.0
        %2281 = vmatprep.subr.mxu0 0.0
        %2282 = vmatpush1.msra.mxu0 0.0
        %2283 = vmatprep.subr.mxu0 0.0
        %2284 = vmatpush1.msra.mxu0 0.0
        %2285 = vmatprep.subr.mxu0 0.0
        %2286 = vmatpush1.msra.mxu0 0.0
        %2287 = vmatprep.subr.mxu0 0.0
        %2288 = vmatpush1.msra.mxu0 0.0
        %2289 = vmatprep.subr.mxu0 0.0
        %2290 = vmatpush1.msra.mxu0 0.0
        %2291 = vmatprep.subr.mxu0 0.0
        %2292 = vmatpush1.msra.mxu0 0.0
        %2293 = vmatprep.subr.mxu0 0.0
        %2294 = vmatpush1.msra.mxu0 0.0
        %2295 = vmatprep.subr.mxu0 0.0
        %2296 = vmatpush1.msra.mxu0 0.0
        %2297 = vmatprep.subr.mxu0 0.0
        %2298 = vmatpush1.msra.mxu0 0.0
        %2299 = vmatprep.subr.mxu0 0.0
        %2300 = vmatpush1.msra.mxu0 0.0
        %2301 = vmatprep.subr.mxu0 0.0
        %2302 = vmatpush1.msra.mxu0 0.0
        %2303 = vmatprep.mubr.f32.mxu0 0.0
        %2304 = vmatmul.mubr.f32.gmra.mrb[0].mxu0 %v2234
        %v2305 = vpop.f32.mrb[0].mxu0
        %v2306 = vadd.f32 %v2231, %v2305
        %v2307 = vpop.f32.mrb[0].mxu0
        %2308 = vmatprep.mubr.f32.mxu0 0.0
        %2309 = vmatmul.mubr.f32.gmra.mrb[0].mxu0 %v2237
        %v2310 = vpop.f32.mrb[0].mxu0
        %v2311 = vadd.f32 %v2231, %v2310
        %v2312 = vpop.f32.mrb[0].mxu0
        %2313 = vdwg.mxu0
        %v2314 = vmax.f32 %v2306, %v2311
        %v2315 = vrot.slane %v2314, 4
        %v2316 = vmax.f32 %v2314, %v2315
        %v2317 = vrot.slane %v2316, 2
        %v2318 = vmax.f32 %v2316, %v2317
        %v2319 = vrot.slane %v2318, 1
        %v2320 = vmax.f32 %v2318, %v2319
        %v2321 = vsub.f32 %v2306, %v2320
        %v2322 = vsub.f32 %v2311, %v2320
        %v2323 = vmul.f32 %v2321, 1.442695
        %v2324 = vpow.pop %v2323
        %v2325 = vmul.f32 %v2322, 1.442695
        %v2326 = vpow.pop %v2325
        %v2327 = vadd.f32 %v2324, %v2326
        %v2328 = vrot.slane %v2327, 4
        %v2329 = vadd.f32 %v2327, %v2328
        %v2330 = vrot.slane %v2329, 2
        %v2331 = vadd.f32 %v2329, %v2330
        %v2332 = vrot.slane %v2331, 1
        %v2333 = vadd.f32 %v2331, %v2332
        %v2334 = vrcp.pop %v2333
        %v2335 = vmul.f32 %v2324, %v2334
        %v2336 = vmul.f32 %v2326, %v2334
        %v2337 = vmul.f32 %v2335, %v2116
        %v2338 = vmul.f32 %v2336, %v2117
        %v2339 = vadd.f32 %v2337, %v2338
        %v2340 = vrot.slane %v2339, 4
        %v2341 = vadd.f32 %v2339, %v2340
        %v2342 = vrot.slane %v2341, 2
        %v2343 = vadd.f32 %v2341, %v2342
        %v2344 = vrot.slane %v2343, 1
        %v2345 = vadd.f32 %v2343, %v2344
        %v2346 = vmul.f32 %v2337, %v2116
        %v2347 = vmul.f32 %v2338, %v2117
        %v2348 = vadd.f32 %v2346, %v2347
        %v2349 = vrot.slane %v2348, 4
        %v2350 = vadd.f32 %v2348, %v2349
        %v2351 = vrot.slane %v2350, 2
        %v2352 = vadd.f32 %v2350, %v2351
        %v2353 = vrot.slane %v2352, 1
        %v2354 = vadd.f32 %v2352, %v2353
        %v2355 = vmul.f32 %v2345, %v2345
        %v2356 = vsub.f32 %v2354, %v2355
        %v2357 = vmax.f32 %v2356, 1e-06
        %v2358 = vrsqrt.pop %v2357
        %v2359 = vmul.f32 %v2357, %v2358
        %vm2360 = vcmp.eq.f32.partialorder %v2357, inf
        %v2361 = vsel %vm2360, %v2357, %v2359
        %vm2362 = vcmp.eq.f32.partialorder %v2357, 0.0
        %v2363 = vand.u32 %v2357, 2147483648
        %v2364 = vsel %vm2362, %v2363, %v2361
        %v2365 = vld [vmem:[%s16] sm:$0xff]
        %v2366 = vld [vmem:[%s16 + $0x8] sm:$0xff]
        %v2367 = vld [vmem:[%s16 + $0x10] sm:$0xff]
        %v2368 = vld [vmem:[%s16 + $0x18] sm:$0xff]
        %v2369 = vld [vmem:[%s16 + $0x20] sm:$0xff]
        %v2370 = vld [vmem:[%s16 + $0x28] sm:$0xff]
        %v2371 = vld [vmem:[%s16 + $0x30] sm:$0xff]
        %v2372 = vld [vmem:[%s16 + $0x38] sm:$0xff]
        %v2373 = vld [vmem:[%s16 + $0x40] sm:$0xff]
        %v2374 = vld [vmem:[%s16 + $0x48] sm:$0xff]
        %v2375 = vld [vmem:[%s16 + $0x50] sm:$0xff]
        %v2376 = vld [vmem:[%s16 + $0x58] sm:$0xff]
        %v2377 = vld [vmem:[%s16 + $0x60] sm:$0xff]
        %v2378 = vld [vmem:[%s16 + $0x68] sm:$0xff]
        %v2379 = vld [vmem:[%s16 + $0x70] sm:$0xff]
        %v2380 = vld [vmem:[%s16 + $0x78] sm:$0xff]
        %v2381 = vld [vmem:[%s16 + $0x80] sm:$0xff]
        %v2382 = vld [vmem:[%s16 + $0x88] sm:$0xff]
        %v2383 = vld [vmem:[%s16 + $0x90] sm:$0xff]
        %v2384 = vld [vmem:[%s16 + $0x98] sm:$0xff]
        %v2385 = vld [vmem:[%s16 + $0xa0] sm:$0xff]
        %v2386 = vld [vmem:[%s16 + $0xa8] sm:$0xff]
        %v2387 = vld [vmem:[%s16 + $0xb0] sm:$0xff]
        %v2388 = vld [vmem:[%s16 + $0xb8] sm:$0xff]
        %v2389 = vld [vmem:[%s16 + $0xc0] sm:$0xff]
        %v2390 = vld [vmem:[%s16 + $0xc8] sm:$0xff]
        %v2391 = vld [vmem:[%s16 + $0xd0] sm:$0xff]
        %v2392 = vld [vmem:[%s16 + $0xd8] sm:$0xff]
        %v2393 = vld [vmem:[%s16 + $0xe0] sm:$0xff]
        %v2394 = vld [vmem:[%s16 + $0xe8] sm:$0xff]
        %v2395 = vld [vmem:[%s16 + $0xf0] sm:$0xff]
        %v2396 = vld [vmem:[%s16 + $0xf8] sm:$0xff]
        %2397 = vmatprep.subr.mxu0 0.0
        %2398 = vmatpush1.msra.mxu0 %v2381
        %2399 = vmatprep.subr.mxu0 0.0
        %2400 = vmatpush1.msra.mxu0 %v2382
        %2401 = vmatprep.subr.mxu0 0.0
        %2402 = vmatpush1.msra.mxu0 %v2383
        %2403 = vmatprep.subr.mxu0 0.0
        %2404 = vmatpush1.msra.mxu0 %v2384
        %2405 = vmatprep.subr.mxu0 0.0
        %2406 = vmatpush1.msra.mxu0 %v2385
        %2407 = vmatprep.subr.mxu0 0.0
        %2408 = vmatpush1.msra.mxu0 %v2386
        %2409 = vmatprep.subr.mxu0 0.0
        %2410 = vmatpush1.msra.mxu0 %v2387
        %2411 = vmatprep.subr.mxu0 0.0
        %2412 = vmatpush1.msra.mxu0 %v2388
        %2413 = vmatprep.subr.mxu0 0.0
        %2414 = vmatpush1.msra.mxu0 %v2389
        %2415 = vmatprep.subr.mxu0 0.0
        %2416 = vmatpush1.msra.mxu0 %v2390
        %2417 = vmatprep.subr.mxu0 0.0
        %2418 = vmatpush1.msra.mxu0 %v2391
        %2419 = vmatprep.subr.mxu0 0.0
        %2420 = vmatpush1.msra.mxu0 %v2392
        %2421 = vmatprep.subr.mxu0 0.0
        %2422 = vmatpush1.msra.mxu0 %v2393
        %2423 = vmatprep.subr.mxu0 0.0
        %2424 = vmatpush1.msra.mxu0 %v2394
        %2425 = vmatprep.subr.mxu0 0.0
        %2426 = vmatpush1.msra.mxu0 %v2395
        %2427 = vmatprep.subr.mxu0 0.0
        %2428 = vmatpush1.msra.mxu0 %v2396
        %2429 = vmatprep.subr.mxu0 0.0
        %2430 = vmatpush1.msra.mxu0 0.0
        %2431 = vmatprep.subr.mxu0 0.0
        %2432 = vmatpush1.msra.mxu0 0.0
        %2433 = vmatprep.subr.mxu0 0.0
        %2434 = vmatpush1.msra.mxu0 0.0
        %2435 = vmatprep.subr.mxu0 0.0
        %2436 = vmatpush1.msra.mxu0 0.0
        %2437 = vmatprep.subr.mxu0 0.0
        %2438 = vmatpush1.msra.mxu0 0.0
        %2439 = vmatprep.subr.mxu0 0.0
        %2440 = vmatpush1.msra.mxu0 0.0
        %2441 = vmatprep.subr.mxu0 0.0
        %2442 = vmatpush1.msra.mxu0 0.0
        %2443 = vmatprep.subr.mxu0 0.0
        %2444 = vmatpush1.msra.mxu0 0.0
        %2445 = vmatprep.subr.mxu0 0.0
        %2446 = vmatpush1.msra.mxu0 0.0
        %2447 = vmatprep.subr.mxu0 0.0
        %2448 = vmatpush1.msra.mxu0 0.0
        %2449 = vmatprep.subr.mxu0 0.0
        %2450 = vmatpush1.msra.mxu0 0.0
        %2451 = vmatprep.subr.mxu0 0.0
        %2452 = vmatpush1.msra.mxu0 0.0
        %2453 = vmatprep.subr.mxu0 0.0
        %2454 = vmatpush1.msra.mxu0 0.0
        %2455 = vmatprep.subr.mxu0 0.0
        %2456 = vmatpush1.msra.mxu0 0.0
        %2457 = vmatprep.subr.mxu0 0.0
        %2458 = vmatpush1.msra.mxu0 0.0
        %2459 = vmatprep.subr.mxu0 0.0
        %2460 = vmatpush1.msra.mxu0 0.0
        %2461 = vmatprep.mubr.f32.mxu0 0.0
        %2462 = vmatmul.mubr.f32.gmra.mrb[0].mxu0 %v2364
        %v2463 = vpop.f32.mrb[0].mxu0
        %v2464 = vadd.f32 0.0, %v2463
        %v2465 = vpop.f32.mrb[0].mxu0
        %2466 = vdwg.mxu0
        %2467 = vmatprep.subr.mxu0 0.0
        %2468 = vmatpush1.msra.mxu0 %v2365
        %2469 = vmatprep.subr.mxu0 0.0
        %2470 = vmatpush1.msra.mxu0 %v2366
        %2471 = vmatprep.subr.mxu0 0.0
        %2472 = vmatpush1.msra.mxu0 %v2367
        %2473 = vmatprep.subr.mxu0 0.0
        %2474 = vmatpush1.msra.mxu0 %v2368
        %2475 = vmatprep.subr.mxu0 0.0
        %2476 = vmatpush1.msra.mxu0 %v2369
        %2477 = vmatprep.subr.mxu0 0.0
        %2478 = vmatpush1.msra.mxu0 %v2370
        %2479 = vmatprep.subr.mxu0 0.0
        %2480 = vmatpush1.msra.mxu0 %v2371
        %2481 = vmatprep.subr.mxu0 0.0
        %2482 = vmatpush1.msra.mxu0 %v2372
        %2483 = vmatprep.subr.mxu0 0.0
        %2484 = vmatpush1.msra.mxu0 %v2373
        %2485 = vmatprep.subr.mxu0 0.0
        %2486 = vmatpush1.msra.mxu0 %v2374
        %2487 = vmatprep.subr.mxu0 0.0
        %2488 = vmatpush1.msra.mxu0 %v2375
        %2489 = vmatprep.subr.mxu0 0.0
        %2490 = vmatpush1.msra.mxu0 %v2376
        %2491 = vmatprep.subr.mxu0 0.0
        %2492 = vmatpush1.msra.mxu0 %v2377
        %2493 = vmatprep.subr.mxu0 0.0
        %2494 = vmatpush1.msra.mxu0 %v2378
        %2495 = vmatprep.subr.mxu0 0.0
        %2496 = vmatpush1.msra.mxu0 %v2379
        %2497 = vmatprep.subr.mxu0 0.0
        %2498 = vmatpush1.msra.mxu0 %v2380
        %2499 = vmatprep.subr.mxu0 0.0
        %2500 = vmatpush1.msra.mxu0 0.0
        %2501 = vmatprep.subr.mxu0 0.0
        %2502 = vmatpush1.msra.mxu0 0.0
        %2503 = vmatprep.subr.mxu0 0.0
        %2504 = vmatpush1.msra.mxu0 0.0
        %2505 = vmatprep.subr.mxu0 0.0
        %2506 = vmatpush1.msra.mxu0 0.0
        %2507 = vmatprep.subr.mxu0 0.0
        %2508 = vmatpush1.msra.mxu0 0.0
        %2509 = vmatprep.subr.mxu0 0.0
        %2510 = vmatpush1.msra.mxu0 0.0
        %2511 = vmatprep.subr.mxu0 0.0
        %2512 = vmatpush1.msra.mxu0 0.0
        %2513 = vmatprep.subr.mxu0 0.0
        %2514 = vmatpush1.msra.mxu0 0.0
        %2515 = vmatprep.subr.mxu0 0.0
        %2516 = vmatpush1.msra.mxu0 0.0
        %2517 = vmatprep.subr.mxu0 0.0
        %2518 = vmatpush1.msra.mxu0 0.0
        %2519 = vmatprep.subr.mxu0 0.0
        %2520 = vmatpush1.msra.mxu0 0.0
        %2521 = vmatprep.subr.mxu0 0.0
        %2522 = vmatpush1.msra.mxu0 0.0
        %2523 = vmatprep.subr.mxu0 0.0
        %2524 = vmatpush1.msra.mxu0 0.0
        %2525 = vmatprep.subr.mxu0 0.0
        %2526 = vmatpush1.msra.mxu0 0.0
        %2527 = vmatprep.subr.mxu0 0.0
        %2528 = vmatpush1.msra.mxu0 0.0
        %2529 = vmatprep.subr.mxu0 0.0
        %2530 = vmatpush1.msra.mxu0 0.0
        %2531 = vmatprep.mubr.f32.mxu0 0.0
        %2532 = vmatmul.mubr.f32.gmra.mrb[0].mxu0 %v2345
        %v2533 = vpop.f32.mrb[0].mxu0
        %v2534 = vadd.f32 %v2464, %v2533
        %v2535 = vpop.f32.mrb[0].mxu0
        %2536 = vdwg.mxu0
        %v2537 = vld [vmem:[%s17] sm:$0x1]
        %v2538 = vadd.f32 %v2534, %v2537
        %vm2539 = vcmask 8192
        %2540 = vst.msk [vmem:[%s567] sm:$0x1] %vm2539, %v2538
        %s2541 = sand.u32 %s423, 1
        %s2542 = scalar_lea.sflag [#allocation4], %s2541
        %s2543 = sand.u32 %s423, 1
        %s2544 = scalar_lea.vmem [#allocation3], %s2543
        // Predicated region
        $region93: #{fine_tuned_ecapa_forward.1} parent=91 // pred_check
          %p2545 = pneg %p433
        $region94: #{fine_tuned_ecapa_forward.1} parent=91 // pred_check_branch
          %2547 = sbr.rel (%p2545) target = $region96
        $region95: #{fine_tuned_ecapa_forward.1} parent=91 // pred_region
          %s2549 = ssub.s32 16, 16
          %2550 = vsyncadd %s2542, %s2549
          %s2551 = smul.addr %s32, 16
          %s2552 = scalar_lea.hbm %s18, %s2551
          %s2554 = sshll.u32 %s2544, 4
          %s2555 = int_to_ptr.vmem [resolvable:$true] %s2554
          %2557 = dma.vmem_to_hbm [thread:$0]  %s2555, 16, %s2552, %s2542
        $region96: #{fine_tuned_ecapa_forward.1} parent=91 // pred_fallthru
          _
      $region92: #{fine_tuned_ecapa_forward.1} parent=5 // pred_fallthru
        _
      %p2558 = scmp.le.s32.totalorder 2, %s27
      // Predicated region
      $region97: #{fine_tuned_ecapa_forward.1} parent=5 // pred_check
        %p2559 = pneg %p2558
      $region98: #{fine_tuned_ecapa_forward.1} parent=5 // pred_check_branch
        %2561 = sbr.rel (%p2559) target = $region100
      $region99: #{fine_tuned_ecapa_forward.1} parent=5 // pred_region
        %s2562 = ssub.s32 %s27, 2
        // Predicated region
        $region101: #{fine_tuned_ecapa_forward.1} parent=99 // pred_check
          %p2563 = pneg %p439
        $region102: #{fine_tuned_ecapa_forward.1} parent=99 // pred_check_branch
          %2565 = sbr.rel (%p2563) target = $region104
        $region103: #{fine_tuned_ecapa_forward.1} parent=99 // pred_region
          %s2566 = sand.u32 %s424, 1
          %s2567 = scalar_lea.sflag [#allocation4], %s2566
          %s2568 = sand.u32 %s424, 1
          %s2569 = scalar_lea.vmem [#allocation3], %s2568
          %2570 = dma.done %s2567, 16
        $region104: #{fine_tuned_ecapa_forward.1} parent=99 // pred_fallthru
          _
      $region100: #{fine_tuned_ecapa_forward.1} parent=5 // pred_fallthru
        _
    $region6: #{fine_tuned_ecapa_forward.1} parent=1 // loop_footer
      %s31 = sadd.s32 1, %s27
    $region7: #{fine_tuned_ecapa_forward.1} parent=1 // loop_footer_branch
      %26 = sbr.rel target = $region3
    $region8: #{fine_tuned_ecapa_forward.1} parent=1 // loop_exit
      _
    %2571 = vsyncpa [#allocation4], 1
    %s2572 = scalar_lea.sflag [#allocation4], 1
    %2573 = vsyncpa %s2572, 1

</llo_original>
